<compile_context>
chip_gen: v5e
topology: v5e:2x2
jax: 0.10.0
libtpu: 0.0.40
codegen_flags: <defaults>
</compile_context>

<pallas_src>
import math
import jax
import jax.numpy as jnp
from jax.experimental import pallas as pl
from jax.experimental.pallas import tpu as pltpu

# ----- config consistent with VisionTransformer.__init__ (toy scale) -----
IMAGE_SIZE = 16
PATCH_SIZE = 4
NUM_LAYERS = 2
NUM_HEADS = 4
HIDDEN_DIM = 32
MLP_DIM = 64
NUM_CLASSES = 16
NUM_CLASS_TOKENS = 1
NUM_REGISTERS = 0          # TODO(synk): register-token path omitted (num_registers=0)
IN_CHANNELS = 3
BATCH = 2

HEAD_DIM = HIDDEN_DIM // NUM_HEADS
NUM_PATCHES = (IMAGE_SIZE // PATCH_SIZE) ** 2
SEQ_LEN = NUM_PATCHES + NUM_CLASS_TOKENS + NUM_REGISTERS        # 17
SEQ_PAD = ((SEQ_LEN + 7) // 8) * 8                              # 24, sublane aligned
PATCH_DIM = IN_CHANNELS * PATCH_SIZE * PATCH_SIZE               # 48
LN_EPS = 1e-5


# --------------------------------------------------------------------------
# Fused kernel: patch embedding + token assembly + encoder + pooling + head
# --------------------------------------------------------------------------
def _vit_kernel(
    patches_ref, w_pe_ref, b_pe_ref, cls_ref, pos_ref,
    ln1g_ref, ln1b_ref, wqkv_ref, bqkv_ref, wo_ref, bo_ref,
    ln2g_ref, ln2b_ref, w1_ref, b1_ref, w2_ref, b2_ref,
    lnfg_ref, lnfb_ref, wh_ref, bh_ref,
    out_ref,
):
    scale = 1.0 / math.sqrt(HEAD_DIM)

    def layernorm(v, g, b):
        mu = jnp.mean(v, axis=-1, keepdims=True)
        var = jnp.mean((v - mu) ** 2, axis=-1, keepdims=True)
        return (v - mu) * jax.lax.rsqrt(var + LN_EPS) * g + b

    def gelu(v):
        # TODO(synk): PyTorch nn.GELU default is exact erf; tanh approximation
        # used here for Mosaic-safe lowering.
        return 0.5 * v * (1.0 + jnp.tanh(0.7978845608028654 * (v + 0.044715 * v * v * v)))

    # --- patch embedding: one GEMM for the whole batch (== conv_proj) ---
    patch_tok = (
        jnp.dot(patches_ref[...], w_pe_ref[...], preferred_element_type=jnp.float32)
        + b_pe_ref[...]
    )                                                           # (N*P, D)

    # --- token assembly: [class | patches | pad] per sample, + pos-embedding ---
    pos = pos_ref[...]                                          # (SEQ_PAD, D), zero tail rows
    cls = cls_ref[...]                                          # (NUM_CLASS_TOKENS, D)
    pad = jnp.zeros((SEQ_PAD - NUM_CLASS_TOKENS - NUM_PATCHES, HIDDEN_DIM), jnp.float32)
    samples = []
    for n in range(BATCH):                                      # static unroll
        pt = patch_tok[n * NUM_PATCHES:(n + 1) * NUM_PATCHES, :]
        samples.append(jnp.concatenate([cls, pt, pad], axis=0) + pos)
    x = jnp.concatenate(samples, axis=0)                        # (N*SEQ_PAD, D)

    # key-padding mask: padded rows must never act as attention keys
    col = jax.lax.broadcasted_iota(jnp.int32, (SEQ_PAD, SEQ_PAD), 1)
    key_valid = col < SEQ_LEN

    # --- transformer layers (statically unrolled: static weight addressing) ---
    for l in range(NUM_LAYERS):
        # attention branch
        h = layernorm(x, ln1g_ref[l], ln1b_ref[l])
        qkv = (
            jnp.dot(h, wqkv_ref[l], preferred_element_type=jnp.float32) + bqkv_ref[l]
        )                                                       # (N*SEQ_PAD, 3*D)
        per_sample = []
        for n in range(BATCH):                                  # static unroll
            r0 = n * SEQ_PAD
            heads = []
            for hh in range(NUM_HEADS):                         # static unroll
                c0 = hh * HEAD_DIM
                qh = qkv[r0:r0 + SEQ_PAD, c0:c0 + HEAD_DIM]
                kh = qkv[r0:r0 + SEQ_PAD, HIDDEN_DIM + c0:HIDDEN_DIM + c0 + HEAD_DIM]
                vh = qkv[r0:r0 + SEQ_PAD, 2 * HIDDEN_DIM + c0:2 * HIDDEN_DIM + c0 + HEAD_DIM]
                s = jax.lax.dot_general(
                    qh, kh, (((1,), (1,)), ((), ())),
                    preferred_element_type=jnp.float32) * scale  # (SEQ_PAD, SEQ_PAD)
                s = jnp.where(key_valid, s, -1e30)
                s = s - jnp.max(s, axis=-1, keepdims=True)
                e = jnp.exp(s)
                p = e * pl.reciprocal(jnp.sum(e, axis=-1, keepdims=True), approx=True)
                heads.append(jnp.dot(p, vh, preferred_element_type=jnp.float32))
            per_sample.append(jnp.concatenate(heads, axis=-1))   # (SEQ_PAD, D)
        attn = jnp.concatenate(per_sample, axis=0)               # (N*SEQ_PAD, D)
        attn = jnp.dot(attn, wo_ref[l], preferred_element_type=jnp.float32) + bo_ref[l]
        x = x + attn                                             # residual 1

        # MLP branch
        y = layernorm(x, ln2g_ref[l], ln2b_ref[l])
        y = jnp.dot(y, w1_ref[l], preferred_element_type=jnp.float32) + b1_ref[l]
        y = gelu(y)
        y = jnp.dot(y, w2_ref[l], preferred_element_type=jnp.float32) + b2_ref[l]
        x = x + y                                                # residual 2

    # final encoder LayerNorm
    x = layernorm(x, lnfg_ref[...], lnfb_ref[...])

    # class-token pooling (sum over class tokens per sample), then classifier head
    pooled = jnp.concatenate(
        [jnp.sum(x[n * SEQ_PAD:n * SEQ_PAD + NUM_CLASS_TOKENS, :], axis=0, keepdims=True)
         for n in range(BATCH)],
        axis=0)                                                  # (N, D)
    out_ref[...] = (
        jnp.dot(pooled, wh_ref[...], preferred_element_type=jnp.float32) + bh_ref[...]
    )


# --------------------------------------------------------------------------
# Parameter init (deterministic, shapes from the module's __init__)
# --------------------------------------------------------------------------
def init_params(key):
    keys = iter(jax.random.split(key, 8))

    def nrm(shape, std):
        return jax.random.normal(next(keys), shape, jnp.float32) * std

    L = NUM_LAYERS
    fan_in = IN_CHANNELS * PATCH_SIZE * PATCH_SIZE
    p = {}

    conv_w = nrm((HIDDEN_DIM, IN_CHANNELS, PATCH_SIZE, PATCH_SIZE), math.sqrt(1.0 / fan_in))
    p["w_pe"] = conv_w.reshape(HIDDEN_DIM, PATCH_DIM).T          # (C*p*p, D)
    p["b_pe"] = jnp.zeros((1, HIDDEN_DIM), jnp.float32)

    p["cls"] = jnp.zeros((NUM_CLASS_TOKENS, HIDDEN_DIM), jnp.float32)
    pos = nrm((SEQ_LEN, HIDDEN_DIM), 0.02)
    p["pos"] = jnp.concatenate(
        [pos, jnp.zeros((SEQ_PAD - SEQ_LEN, HIDDEN_DIM), jnp.float32)], axis=0)

    p["ln1_g"] = jnp.ones((L, 1, HIDDEN_DIM), jnp.float32)
    p["ln1_b"] = jnp.zeros((L, 1, HIDDEN_DIM), jnp.float32)
    p["ln2_g"] = jnp.ones((L, 1, HIDDEN_DIM), jnp.float32)
    p["ln2_b"] = jnp.zeros((L, 1, HIDDEN_DIM), jnp.float32)

    std_a = 1.0 / math.sqrt(HIDDEN_DIM)
    # packed [Wq | Wk | Wv], each with heads laid out in HEAD_DIM lane chunks
    p["wqkv"] = nrm((L, HIDDEN_DIM, 3 * HIDDEN_DIM), std_a)
    p["bqkv"] = jnp.zeros((L, 1, 3 * HIDDEN_DIM), jnp.float32)
    p["wo"] = nrm((L, HIDDEN_DIM, HIDDEN_DIM), std_a)
    p["bo"] = jnp.zeros((L, 1, HIDDEN_DIM), jnp.float32)

    p["w1"] = nrm((L, HIDDEN_DIM, MLP_DIM), std_a)
    p["b1"] = jnp.zeros((L, 1, MLP_DIM), jnp.float32)
    p["w2"] = nrm((L, MLP_DIM, HIDDEN_DIM), 1.0 / math.sqrt(MLP_DIM))
    p["b2"] = jnp.zeros((L, 1, HIDDEN_DIM), jnp.float32)

    p["lnf_g"] = jnp.ones((1, HIDDEN_DIM), jnp.float32)
    p["lnf_b"] = jnp.zeros((1, HIDDEN_DIM), jnp.float32)

    # NOTE: the torch module zero-inits the head; use small random weights here
    # (deterministic) so the kernel output is non-trivial.
    p["w_head"] = nrm((HIDDEN_DIM, NUM_CLASSES), 0.02)
    p["b_head"] = jnp.zeros((1, NUM_CLASSES), jnp.float32)
    return p


# --------------------------------------------------------------------------
# Forward pass (glue is patchify reshape/transpose only)
# --------------------------------------------------------------------------
def vit_forward(x_nchw, params):
    n, c, h, w = x_nchw.shape
    assert n == BATCH and c == IN_CHANNELS and h == IMAGE_SIZE and w == IMAGE_SIZE
    p = PATCH_SIZE
    nh, nw = h // p, w // p
    # patchify: (N, C, H, W) -> (N*num_patches, C*p*p); conv(k=p, stride=p) == patchify + GEMM
    patches = (
        x_nchw.reshape(n, c, nh, p, nw, p)
        .transpose(0, 2, 4, 1, 3, 5)
        .reshape(n * nh * nw, c * p * p)
    )

    args = [
        patches, params["w_pe"], params["b_pe"], params["cls"], params["pos"],
        params["ln1_g"], params["ln1_b"], params["wqkv"], params["bqkv"],
        params["wo"], params["bo"], params["ln2_g"], params["ln2_b"],
        params["w1"], params["b1"], params["w2"], params["b2"],
        params["lnf_g"], params["lnf_b"], params["w_head"], params["b_head"],
    ]

    def full_spec(a):
        return pl.BlockSpec(a.shape, lambda i, _nd=a.ndim: (0,) * _nd)

    # Single fused launch: the whole batch (working set << 1 MiB) lives in VMEM.
    # TODO(synk): on v7x a parallel batch grid axis would engage the 2nd TensorCore;
    # the batch is folded into one grid step here since v5e/v6e are single-TC and
    # per-step grid overhead dominates this tiny workload.
    return pl.pallas_call(
        _vit_kernel,
        out_shape=jax.ShapeDtypeStruct((n, NUM_CLASSES), jnp.float32),
        grid=(1,),
        in_specs=[full_spec(a) for a in args],
        out_specs=pl.BlockSpec((n, NUM_CLASSES), lambda i: (0, 0)),
        compiler_params=pltpu.CompilerParams(dimension_semantics=("arbitrary",)),
    )(*args)


if __name__ == "__main__":
    key = jax.random.PRNGKey(0)
    pkey, xkey = jax.random.split(key)
    params = init_params(pkey)
    x = jax.random.normal(xkey, (BATCH, IN_CHANNELS, IMAGE_SIZE, IMAGE_SIZE), jnp.float32)

    logits = jax.jit(vit_forward)(x, params)
    logits = jax.block_until_ready(logits)

    assert logits.shape == (BATCH, NUM_CLASSES), logits.shape
    assert bool(jnp.all(jnp.isfinite(logits)))
    print("KERNEL_OK")
</pallas_src>

<mosaic_0001>
module attributes {stable_mosaic.version = 11 : i64} {
  func.func @_vit_kernel(%arg0: i32, %arg1: memref<32x48xf32, #tpu.memory_space<vmem>>, %arg2: memref<48x32xf32, #tpu.memory_space<vmem>>, %arg3: memref<1x32xf32, #tpu.memory_space<vmem>>, %arg4: memref<1x32xf32, #tpu.memory_space<vmem>>, %arg5: memref<24x32xf32, #tpu.memory_space<vmem>>, %arg6: memref<2x1x32xf32, #tpu.memory_space<vmem>>, %arg7: memref<2x1x32xf32, #tpu.memory_space<vmem>>, %arg8: memref<2x32x96xf32, #tpu.memory_space<vmem>>, %arg9: memref<2x1x96xf32, #tpu.memory_space<vmem>>, %arg10: memref<2x32x32xf32, #tpu.memory_space<vmem>>, %arg11: memref<2x1x32xf32, #tpu.memory_space<vmem>>, %arg12: memref<2x1x32xf32, #tpu.memory_space<vmem>>, %arg13: memref<2x1x32xf32, #tpu.memory_space<vmem>>, %arg14: memref<2x32x64xf32, #tpu.memory_space<vmem>>, %arg15: memref<2x1x64xf32, #tpu.memory_space<vmem>>, %arg16: memref<2x64x32xf32, #tpu.memory_space<vmem>>, %arg17: memref<2x1x32xf32, #tpu.memory_space<vmem>>, %arg18: memref<1x32xf32, #tpu.memory_space<vmem>>, %arg19: memref<1x32xf32, #tpu.memory_space<vmem>>, %arg20: memref<32x16xf32, #tpu.memory_space<vmem>>, %arg21: memref<1x16xf32, #tpu.memory_space<vmem>>, %arg22: memref<2x16xf32, #tpu.memory_space<vmem>>) attributes {dimension_semantics = [#tpu.dimension_semantics<arbitrary>], iteration_bounds = array<i64: 1>, scalar_prefetch = 0 : i64, scratch_operands = 0 : i64, tpu.core_type = #tpu.core_type<tc>, window_params = [{pipeline_mode = #tpu.pipeline_mode<synchronous>, transform_indices = @transform_0, window_bounds = array<i64: 32, 48>}, {pipeline_mode = #tpu.pipeline_mode<synchronous>, transform_indices = @transform_1, window_bounds = array<i64: 48, 32>}, {pipeline_mode = #tpu.pipeline_mode<synchronous>, transform_indices = @transform_2, window_bounds = array<i64: 1, 32>}, {pipeline_mode = #tpu.pipeline_mode<synchronous>, transform_indices = @transform_3, window_bounds = array<i64: 1, 32>}, {pipeline_mode = #tpu.pipeline_mode<synchronous>, transform_indices = @transform_4, window_bounds = array<i64: 24, 32>}, {pipeline_mode = #tpu.pipeline_mode<synchronous>, transform_indices = @transform_5, window_bounds = array<i64: 2, 1, 32>}, {pipeline_mode = #tpu.pipeline_mode<synchronous>, transform_indices = @transform_6, window_bounds = array<i64: 2, 1, 32>}, {pipeline_mode = #tpu.pipeline_mode<synchronous>, transform_indices = @transform_7, window_bounds = array<i64: 2, 32, 96>}, {pipeline_mode = #tpu.pipeline_mode<synchronous>, transform_indices = @transform_8, window_bounds = array<i64: 2, 1, 96>}, {pipeline_mode = #tpu.pipeline_mode<synchronous>, transform_indices = @transform_9, window_bounds = array<i64: 2, 32, 32>}, {pipeline_mode = #tpu.pipeline_mode<synchronous>, transform_indices = @transform_10, window_bounds = array<i64: 2, 1, 32>}, {pipeline_mode = #tpu.pipeline_mode<synchronous>, transform_indices = @transform_11, window_bounds = array<i64: 2, 1, 32>}, {pipeline_mode = #tpu.pipeline_mode<synchronous>, transform_indices = @transform_12, window_bounds = array<i64: 2, 1, 32>}, {pipeline_mode = #tpu.pipeline_mode<synchronous>, transform_indices = @transform_13, window_bounds = array<i64: 2, 32, 64>}, {pipeline_mode = #tpu.pipeline_mode<synchronous>, transform_indices = @transform_14, window_bounds = array<i64: 2, 1, 64>}, {pipeline_mode = #tpu.pipeline_mode<synchronous>, transform_indices = @transform_15, window_bounds = array<i64: 2, 64, 32>}, {pipeline_mode = #tpu.pipeline_mode<synchronous>, transform_indices = @transform_16, window_bounds = array<i64: 2, 1, 32>}, {pipeline_mode = #tpu.pipeline_mode<synchronous>, transform_indices = @transform_17, window_bounds = array<i64: 1, 32>}, {pipeline_mode = #tpu.pipeline_mode<synchronous>, transform_indices = @transform_18, window_bounds = array<i64: 1, 32>}, {pipeline_mode = #tpu.pipeline_mode<synchronous>, transform_indices = @transform_19, window_bounds = array<i64: 32, 16>}, {pipeline_mode = #tpu.pipeline_mode<synchronous>, transform_indices = @transform_20, window_bounds = array<i64: 1, 16>}, {pipeline_mode = #tpu.pipeline_mode<synchronous>, transform_indices = @transform_21, window_bounds = array<i64: 2, 16>}]} {
    %c0 = arith.constant 0 : index
    %c0_0 = arith.constant 0 : index
    %0 = vector.load %arg1[%c0, %c0_0] : memref<32x48xf32, #tpu.memory_space<vmem>>, vector<32x48xf32>
    %c0_1 = arith.constant 0 : index
    %c0_2 = arith.constant 0 : index
    %1 = vector.load %arg2[%c0_1, %c0_2] : memref<48x32xf32, #tpu.memory_space<vmem>>, vector<48x32xf32>
    %cst = arith.constant dense<0.000000e+00> : vector<32x32xf32>
    %2 = tpu.matmul %0, %1, %cst {dimension_numbers = #tpu.dot_dimension_numbers<[1], [0], [0], [1], [0, 0, 1, 1], [], []>} : vector<32x48xf32>, vector<48x32xf32>, vector<32x32xf32> -> vector<32x32xf32>
    %c0_3 = arith.constant 0 : index
    %c0_4 = arith.constant 0 : index
    %3 = vector.load %arg3[%c0_3, %c0_4] : memref<1x32xf32, #tpu.memory_space<vmem>>, vector<1x32xf32>
    %4 = vector.broadcast %3 : vector<1x32xf32> to vector<32x32xf32>
    %5 = arith.addf %2, %4 : vector<32x32xf32>
    %c0_5 = arith.constant 0 : index
    %c0_6 = arith.constant 0 : index
    %6 = vector.load %arg5[%c0_5, %c0_6] : memref<24x32xf32, #tpu.memory_space<vmem>>, vector<24x32xf32>
    %c0_7 = arith.constant 0 : index
    %c0_8 = arith.constant 0 : index
    %7 = vector.load %arg4[%c0_7, %c0_8] : memref<1x32xf32, #tpu.memory_space<vmem>>, vector<1x32xf32>
    %cst_9 = arith.constant 0.000000e+00 : f32
    %8 = vector.broadcast %cst_9 : f32 to vector<7x32xf32>
    %9 = vector.extract_strided_slice %5 {offsets = [0, 0], sizes = [16, 32], strides = [1, 1]} : vector<32x32xf32> to vector<16x32xf32>
    %10 = tpu.concatenate %7, %9, %8 in 0 : vector<1x32xf32>, vector<16x32xf32>, vector<7x32xf32> -> vector<24x32xf32>
    %11 = arith.addf %10, %6 : vector<24x32xf32>
    %12 = vector.extract_strided_slice %5 {offsets = [16, 0], sizes = [16, 32], strides = [1, 1]} : vector<32x32xf32> to vector<16x32xf32>
    %13 = tpu.concatenate %7, %12, %8 in 0 : vector<1x32xf32>, vector<16x32xf32>, vector<7x32xf32> -> vector<24x32xf32>
    %14 = arith.addf %13, %6 : vector<24x32xf32>
    %15 = tpu.concatenate %11, %14 in 0 : vector<24x32xf32>, vector<24x32xf32> -> vector<48x32xf32>
    %16 = tpu.iota {dimensions = array<i32: 1>} : vector<24x24xi32>
    %c17_i32 = arith.constant 17 : i32
    %17 = vector.broadcast %c17_i32 : i32 to vector<24x24xi32>
    %18 = arith.cmpi slt, %16, %17 : vector<24x24xi32>
    %c0_10 = arith.constant 0 : index
    %c0_11 = arith.constant 0 : index
    %c0_12 = arith.constant 0 : index
    %19 = vector.load %arg6[%c0_10, %c0_11, %c0_12] : memref<2x1x32xf32, #tpu.memory_space<vmem>>, vector<1x1x32xf32>
    %20 = vector.shape_cast %19 : vector<1x1x32xf32> to vector<1x32xf32>
    %c0_13 = arith.constant 0 : index
    %c0_14 = arith.constant 0 : index
    %c0_15 = arith.constant 0 : index
    %21 = vector.load %arg7[%c0_13, %c0_14, %c0_15] : memref<2x1x32xf32, #tpu.memory_space<vmem>>, vector<1x1x32xf32>
    %22 = vector.shape_cast %21 : vector<1x1x32xf32> to vector<1x32xf32>
    %cst_16 = arith.constant dense<0.000000e+00> : vector<48xf32>
    %23 = vector.multi_reduction <add>, %15, %cst_16 [1] : vector<48x32xf32> to vector<48xf32>
    %24 = vector.shape_cast %23 : vector<48xf32> to vector<48x1xf32>
    %cst_17 = arith.constant 3.200000e+01 : f32
    %25 = vector.broadcast %cst_17 : f32 to vector<48x1xf32>
    %26 = arith.divf %24, %25 : vector<48x1xf32>
    %27 = vector.broadcast %26 : vector<48x1xf32> to vector<48x32xf32>
    %28 = arith.subf %15, %27 : vector<48x32xf32>
    %29 = arith.mulf %28, %28 : vector<48x32xf32>
    %cst_18 = arith.constant dense<0.000000e+00> : vector<48xf32>
    %30 = vector.multi_reduction <add>, %29, %cst_18 [1] : vector<48x32xf32> to vector<48xf32>
    %31 = vector.shape_cast %30 : vector<48xf32> to vector<48x1xf32>
    %cst_19 = arith.constant 3.200000e+01 : f32
    %32 = vector.broadcast %cst_19 : f32 to vector<48x1xf32>
    %33 = arith.divf %31, %32 : vector<48x1xf32>
    %34 = vector.broadcast %26 : vector<48x1xf32> to vector<48x32xf32>
    %35 = arith.subf %15, %34 : vector<48x32xf32>
    %cst_20 = arith.constant 9.99999974E-6 : f32
    %36 = vector.broadcast %cst_20 : f32 to vector<48x1xf32>
    %37 = arith.addf %33, %36 : vector<48x1xf32>
    %38 = math.rsqrt %37 : vector<48x1xf32>
    %39 = vector.broadcast %38 : vector<48x1xf32> to vector<48x32xf32>
    %40 = arith.mulf %35, %39 : vector<48x32xf32>
    %41 = vector.broadcast %20 : vector<1x32xf32> to vector<48x32xf32>
    %42 = arith.mulf %40, %41 : vector<48x32xf32>
    %43 = vector.broadcast %22 : vector<1x32xf32> to vector<48x32xf32>
    %44 = arith.addf %42, %43 : vector<48x32xf32>
    %c0_21 = arith.constant 0 : index
    %c0_22 = arith.constant 0 : index
    %c0_23 = arith.constant 0 : index
    %45 = vector.load %arg8[%c0_21, %c0_22, %c0_23] : memref<2x32x96xf32, #tpu.memory_space<vmem>>, vector<1x32x96xf32>
    %46 = vector.shape_cast %45 : vector<1x32x96xf32> to vector<32x96xf32>
    %cst_24 = arith.constant dense<0.000000e+00> : vector<48x96xf32>
    %47 = tpu.matmul %44, %46, %cst_24 {dimension_numbers = #tpu.dot_dimension_numbers<[1], [0], [0], [1], [0, 0, 1, 1], [], []>} : vector<48x32xf32>, vector<32x96xf32>, vector<48x96xf32> -> vector<48x96xf32>
    %c0_25 = arith.constant 0 : index
    %c0_26 = arith.constant 0 : index
    %c0_27 = arith.constant 0 : index
    %48 = vector.load %arg9[%c0_25, %c0_26, %c0_27] : memref<2x1x96xf32, #tpu.memory_space<vmem>>, vector<1x1x96xf32>
    %49 = vector.shape_cast %48 : vector<1x1x96xf32> to vector<1x96xf32>
    %50 = vector.broadcast %49 : vector<1x96xf32> to vector<48x96xf32>
    %51 = arith.addf %47, %50 : vector<48x96xf32>
    %52 = vector.extract_strided_slice %51 {offsets = [0, 0], sizes = [24, 8], strides = [1, 1]} : vector<48x96xf32> to vector<24x8xf32>
    %53 = vector.extract_strided_slice %51 {offsets = [0, 32], sizes = [24, 8], strides = [1, 1]} : vector<48x96xf32> to vector<24x8xf32>
    %54 = vector.extract_strided_slice %51 {offsets = [0, 64], sizes = [24, 8], strides = [1, 1]} : vector<48x96xf32> to vector<24x8xf32>
    %cst_28 = arith.constant dense<0.000000e+00> : vector<24x24xf32>
    %55 = tpu.matmul %52, %53, %cst_28 {dimension_numbers = #tpu.dot_dimension_numbers<[1], [1], [0], [0], [0, 0, 1, 0], [], []>} : vector<24x8xf32>, vector<24x8xf32>, vector<24x24xf32> -> vector<24x24xf32>
    %cst_29 = arith.constant 0.353553385 : f32
    %56 = vector.broadcast %cst_29 : f32 to vector<24x24xf32>
    %57 = arith.mulf %55, %56 : vector<24x24xf32>
    %cst_30 = arith.constant -1.000000e+30 : f32
    %58 = vector.broadcast %cst_30 : f32 to vector<24x24xf32>
    %59 = arith.select %18, %57, %58 : vector<24x24xi1>, vector<24x24xf32>
    %cst_31 = arith.constant dense<0xFF800000> : vector<24xf32>
    %60 = vector.multi_reduction <maximumf>, %59, %cst_31 [1] : vector<24x24xf32> to vector<24xf32>
    %61 = vector.shape_cast %60 : vector<24xf32> to vector<24x1xf32>
    %62 = vector.broadcast %61 : vector<24x1xf32> to vector<24x24xf32>
    %63 = arith.subf %59, %62 : vector<24x24xf32>
    %64 = math.exp %63 : vector<24x24xf32>
    %cst_32 = arith.constant dense<0.000000e+00> : vector<24xf32>
    %65 = vector.multi_reduction <add>, %64, %cst_32 [1] : vector<24x24xf32> to vector<24xf32>
    %66 = vector.shape_cast %65 : vector<24xf32> to vector<24x1xf32>
    %67 = tpu.reciprocal %66 {approx = true} : vector<24x1xf32> -> vector<24x1xf32>
    %68 = vector.broadcast %67 : vector<24x1xf32> to vector<24x24xf32>
    %69 = arith.mulf %64, %68 : vector<24x24xf32>
    %cst_33 = arith.constant dense<0.000000e+00> : vector<24x8xf32>
    %70 = tpu.matmul %69, %54, %cst_33 {dimension_numbers = #tpu.dot_dimension_numbers<[1], [0], [0], [1], [0, 0, 1, 1], [], []>} : vector<24x24xf32>, vector<24x8xf32>, vector<24x8xf32> -> vector<24x8xf32>
    %71 = vector.extract_strided_slice %51 {offsets = [0, 8], sizes = [24, 8], strides = [1, 1]} : vector<48x96xf32> to vector<24x8xf32>
    %72 = vector.extract_strided_slice %51 {offsets = [0, 40], sizes = [24, 8], strides = [1, 1]} : vector<48x96xf32> to vector<24x8xf32>
    %73 = vector.extract_strided_slice %51 {offsets = [0, 72], sizes = [24, 8], strides = [1, 1]} : vector<48x96xf32> to vector<24x8xf32>
    %cst_34 = arith.constant dense<0.000000e+00> : vector<24x24xf32>
    %74 = tpu.matmul %71, %72, %cst_34 {dimension_numbers = #tpu.dot_dimension_numbers<[1], [1], [0], [0], [0, 0, 1, 0], [], []>} : vector<24x8xf32>, vector<24x8xf32>, vector<24x24xf32> -> vector<24x24xf32>
    %cst_35 = arith.constant 0.353553385 : f32
    %75 = vector.broadcast %cst_35 : f32 to vector<24x24xf32>
    %76 = arith.mulf %74, %75 : vector<24x24xf32>
    %cst_36 = arith.constant -1.000000e+30 : f32
    %77 = vector.broadcast %cst_36 : f32 to vector<24x24xf32>
    %78 = arith.select %18, %76, %77 : vector<24x24xi1>, vector<24x24xf32>
    %cst_37 = arith.constant dense<0xFF800000> : vector<24xf32>
    %79 = vector.multi_reduction <maximumf>, %78, %cst_37 [1] : vector<24x24xf32> to vector<24xf32>
    %80 = vector.shape_cast %79 : vector<24xf32> to vector<24x1xf32>
    %81 = vector.broadcast %80 : vector<24x1xf32> to vector<24x24xf32>
    %82 = arith.subf %78, %81 : vector<24x24xf32>
    %83 = math.exp %82 : vector<24x24xf32>
    %cst_38 = arith.constant dense<0.000000e+00> : vector<24xf32>
    %84 = vector.multi_reduction <add>, %83, %cst_38 [1] : vector<24x24xf32> to vector<24xf32>
    %85 = vector.shape_cast %84 : vector<24xf32> to vector<24x1xf32>
    %86 = tpu.reciprocal %85 {approx = true} : vector<24x1xf32> -> vector<24x1xf32>
    %87 = vector.broadcast %86 : vector<24x1xf32> to vector<24x24xf32>
    %88 = arith.mulf %83, %87 : vector<24x24xf32>
    %cst_39 = arith.constant dense<0.000000e+00> : vector<24x8xf32>
    %89 = tpu.matmul %88, %73, %cst_39 {dimension_numbers = #tpu.dot_dimension_numbers<[1], [0], [0], [1], [0, 0, 1, 1], [], []>} : vector<24x24xf32>, vector<24x8xf32>, vector<24x8xf32> -> vector<24x8xf32>
    %90 = vector.extract_strided_slice %51 {offsets = [0, 16], sizes = [24, 8], strides = [1, 1]} : vector<48x96xf32> to vector<24x8xf32>
    %91 = vector.extract_strided_slice %51 {offsets = [0, 48], sizes = [24, 8], strides = [1, 1]} : vector<48x96xf32> to vector<24x8xf32>
    %92 = vector.extract_strided_slice %51 {offsets = [0, 80], sizes = [24, 8], strides = [1, 1]} : vector<48x96xf32> to vector<24x8xf32>
    %cst_40 = arith.constant dense<0.000000e+00> : vector<24x24xf32>
    %93 = tpu.matmul %90, %91, %cst_40 {dimension_numbers = #tpu.dot_dimension_numbers<[1], [1], [0], [0], [0, 0, 1, 0], [], []>} : vector<24x8xf32>, vector<24x8xf32>, vector<24x24xf32> -> vector<24x24xf32>
    %cst_41 = arith.constant 0.353553385 : f32
    %94 = vector.broadcast %cst_41 : f32 to vector<24x24xf32>
    %95 = arith.mulf %93, %94 : vector<24x24xf32>
    %cst_42 = arith.constant -1.000000e+30 : f32
    %96 = vector.broadcast %cst_42 : f32 to vector<24x24xf32>
    %97 = arith.select %18, %95, %96 : vector<24x24xi1>, vector<24x24xf32>
    %cst_43 = arith.constant dense<0xFF800000> : vector<24xf32>
    %98 = vector.multi_reduction <maximumf>, %97, %cst_43 [1] : vector<24x24xf32> to vector<24xf32>
    %99 = vector.shape_cast %98 : vector<24xf32> to vector<24x1xf32>
    %100 = vector.broadcast %99 : vector<24x1xf32> to vector<24x24xf32>
    %101 = arith.subf %97, %100 : vector<24x24xf32>
    %102 = math.exp %101 : vector<24x24xf32>
    %cst_44 = arith.constant dense<0.000000e+00> : vector<24xf32>
    %103 = vector.multi_reduction <add>, %102, %cst_44 [1] : vector<24x24xf32> to vector<24xf32>
    %104 = vector.shape_cast %103 : vector<24xf32> to vector<24x1xf32>
    %105 = tpu.reciprocal %104 {approx = true} : vector<24x1xf32> -> vector<24x1xf32>
    %106 = vector.broadcast %105 : vector<24x1xf32> to vector<24x24xf32>
    %107 = arith.mulf %102, %106 : vector<24x24xf32>
    %cst_45 = arith.constant dense<0.000000e+00> : vector<24x8xf32>
    %108 = tpu.matmul %107, %92, %cst_45 {dimension_numbers = #tpu.dot_dimension_numbers<[1], [0], [0], [1], [0, 0, 1, 1], [], []>} : vector<24x24xf32>, vector<24x8xf32>, vector<24x8xf32> -> vector<24x8xf32>
    %109 = vector.extract_strided_slice %51 {offsets = [0, 24], sizes = [24, 8], strides = [1, 1]} : vector<48x96xf32> to vector<24x8xf32>
    %110 = vector.extract_strided_slice %51 {offsets = [0, 56], sizes = [24, 8], strides = [1, 1]} : vector<48x96xf32> to vector<24x8xf32>
    %111 = vector.extract_strided_slice %51 {offsets = [0, 88], sizes = [24, 8], strides = [1, 1]} : vector<48x96xf32> to vector<24x8xf32>
    %cst_46 = arith.constant dense<0.000000e+00> : vector<24x24xf32>
    %112 = tpu.matmul %109, %110, %cst_46 {dimension_numbers = #tpu.dot_dimension_numbers<[1], [1], [0], [0], [0, 0, 1, 0], [], []>} : vector<24x8xf32>, vector<24x8xf32>, vector<24x24xf32> -> vector<24x24xf32>
    %cst_47 = arith.constant 0.353553385 : f32
    %113 = vector.broadcast %cst_47 : f32 to vector<24x24xf32>
    %114 = arith.mulf %112, %113 : vector<24x24xf32>
    %cst_48 = arith.constant -1.000000e+30 : f32
    %115 = vector.broadcast %cst_48 : f32 to vector<24x24xf32>
    %116 = arith.select %18, %114, %115 : vector<24x24xi1>, vector<24x24xf32>
    %cst_49 = arith.constant dense<0xFF800000> : vector<24xf32>
    %117 = vector.multi_reduction <maximumf>, %116, %cst_49 [1] : vector<24x24xf32> to vector<24xf32>
    %118 = vector.shape_cast %117 : vector<24xf32> to vector<24x1xf32>
    %119 = vector.broadcast %118 : vector<24x1xf32> to vector<24x24xf32>
    %120 = arith.subf %116, %119 : vector<24x24xf32>
    %121 = math.exp %120 : vector<24x24xf32>
    %cst_50 = arith.constant dense<0.000000e+00> : vector<24xf32>
    %122 = vector.multi_reduction <add>, %121, %cst_50 [1] : vector<24x24xf32> to vector<24xf32>
    %123 = vector.shape_cast %122 : vector<24xf32> to vector<24x1xf32>
    %124 = tpu.reciprocal %123 {approx = true} : vector<24x1xf32> -> vector<24x1xf32>
    %125 = vector.broadcast %124 : vector<24x1xf32> to vector<24x24xf32>
    %126 = arith.mulf %121, %125 : vector<24x24xf32>
    %cst_51 = arith.constant dense<0.000000e+00> : vector<24x8xf32>
    %127 = tpu.matmul %126, %111, %cst_51 {dimension_numbers = #tpu.dot_dimension_numbers<[1], [0], [0], [1], [0, 0, 1, 1], [], []>} : vector<24x24xf32>, vector<24x8xf32>, vector<24x8xf32> -> vector<24x8xf32>
    %128 = tpu.concatenate %70, %89, %108, %127 in 1 : vector<24x8xf32>, vector<24x8xf32>, vector<24x8xf32>, vector<24x8xf32> -> vector<24x32xf32>
    %129 = vector.extract_strided_slice %51 {offsets = [24, 0], sizes = [24, 8], strides = [1, 1]} : vector<48x96xf32> to vector<24x8xf32>
    %130 = vector.extract_strided_slice %51 {offsets = [24, 32], sizes = [24, 8], strides = [1, 1]} : vector<48x96xf32> to vector<24x8xf32>
    %131 = vector.extract_strided_slice %51 {offsets = [24, 64], sizes = [24, 8], strides = [1, 1]} : vector<48x96xf32> to vector<24x8xf32>
    %cst_52 = arith.constant dense<0.000000e+00> : vector<24x24xf32>
    %132 = tpu.matmul %129, %130, %cst_52 {dimension_numbers = #tpu.dot_dimension_numbers<[1], [1], [0], [0], [0, 0, 1, 0], [], []>} : vector<24x8xf32>, vector<24x8xf32>, vector<24x24xf32> -> vector<24x24xf32>
    %cst_53 = arith.constant 0.353553385 : f32
    %133 = vector.broadcast %cst_53 : f32 to vector<24x24xf32>
    %134 = arith.mulf %132, %133 : vector<24x24xf32>
    %cst_54 = arith.constant -1.000000e+30 : f32
    %135 = vector.broadcast %cst_54 : f32 to vector<24x24xf32>
    %136 = arith.select %18, %134, %135 : vector<24x24xi1>, vector<24x24xf32>
    %cst_55 = arith.constant dense<0xFF800000> : vector<24xf32>
    %137 = vector.multi_reduction <maximumf>, %136, %cst_55 [1] : vector<24x24xf32> to vector<24xf32>
    %138 = vector.shape_cast %137 : vector<24xf32> to vector<24x1xf32>
    %139 = vector.broadcast %138 : vector<24x1xf32> to vector<24x24xf32>
    %140 = arith.subf %136, %139 : vector<24x24xf32>
    %141 = math.exp %140 : vector<24x24xf32>
    %cst_56 = arith.constant dense<0.000000e+00> : vector<24xf32>
    %142 = vector.multi_reduction <add>, %141, %cst_56 [1] : vector<24x24xf32> to vector<24xf32>
    %143 = vector.shape_cast %142 : vector<24xf32> to vector<24x1xf32>
    %144 = tpu.reciprocal %143 {approx = true} : vector<24x1xf32> -> vector<24x1xf32>
    %145 = vector.broadcast %144 : vector<24x1xf32> to vector<24x24xf32>
    %146 = arith.mulf %141, %145 : vector<24x24xf32>
    %cst_57 = arith.constant dense<0.000000e+00> : vector<24x8xf32>
    %147 = tpu.matmul %146, %131, %cst_57 {dimension_numbers = #tpu.dot_dimension_numbers<[1], [0], [0], [1], [0, 0, 1, 1], [], []>} : vector<24x24xf32>, vector<24x8xf32>, vector<24x8xf32> -> vector<24x8xf32>
    %148 = vector.extract_strided_slice %51 {offsets = [24, 8], sizes = [24, 8], strides = [1, 1]} : vector<48x96xf32> to vector<24x8xf32>
    %149 = vector.extract_strided_slice %51 {offsets = [24, 40], sizes = [24, 8], strides = [1, 1]} : vector<48x96xf32> to vector<24x8xf32>
    %150 = vector.extract_strided_slice %51 {offsets = [24, 72], sizes = [24, 8], strides = [1, 1]} : vector<48x96xf32> to vector<24x8xf32>
    %cst_58 = arith.constant dense<0.000000e+00> : vector<24x24xf32>
    %151 = tpu.matmul %148, %149, %cst_58 {dimension_numbers = #tpu.dot_dimension_numbers<[1], [1], [0], [0], [0, 0, 1, 0], [], []>} : vector<24x8xf32>, vector<24x8xf32>, vector<24x24xf32> -> vector<24x24xf32>
    %cst_59 = arith.constant 0.353553385 : f32
    %152 = vector.broadcast %cst_59 : f32 to vector<24x24xf32>
    %153 = arith.mulf %151, %152 : vector<24x24xf32>
    %cst_60 = arith.constant -1.000000e+30 : f32
    %154 = vector.broadcast %cst_60 : f32 to vector<24x24xf32>
    %155 = arith.select %18, %153, %154 : vector<24x24xi1>, vector<24x24xf32>
    %cst_61 = arith.constant dense<0xFF800000> : vector<24xf32>
    %156 = vector.multi_reduction <maximumf>, %155, %cst_61 [1] : vector<24x24xf32> to vector<24xf32>
    %157 = vector.shape_cast %156 : vector<24xf32> to vector<24x1xf32>
    %158 = vector.broadcast %157 : vector<24x1xf32> to vector<24x24xf32>
    %159 = arith.subf %155, %158 : vector<24x24xf32>
    %160 = math.exp %159 : vector<24x24xf32>
    %cst_62 = arith.constant dense<0.000000e+00> : vector<24xf32>
    %161 = vector.multi_reduction <add>, %160, %cst_62 [1] : vector<24x24xf32> to vector<24xf32>
    %162 = vector.shape_cast %161 : vector<24xf32> to vector<24x1xf32>
    %163 = tpu.reciprocal %162 {approx = true} : vector<24x1xf32> -> vector<24x1xf32>
    %164 = vector.broadcast %163 : vector<24x1xf32> to vector<24x24xf32>
    %165 = arith.mulf %160, %164 : vector<24x24xf32>
    %cst_63 = arith.constant dense<0.000000e+00> : vector<24x8xf32>
    %166 = tpu.matmul %165, %150, %cst_63 {dimension_numbers = #tpu.dot_dimension_numbers<[1], [0], [0], [1], [0, 0, 1, 1], [], []>} : vector<24x24xf32>, vector<24x8xf32>, vector<24x8xf32> -> vector<24x8xf32>
    %167 = vector.extract_strided_slice %51 {offsets = [24, 16], sizes = [24, 8], strides = [1, 1]} : vector<48x96xf32> to vector<24x8xf32>
    %168 = vector.extract_strided_slice %51 {offsets = [24, 48], sizes = [24, 8], strides = [1, 1]} : vector<48x96xf32> to vector<24x8xf32>
    %169 = vector.extract_strided_slice %51 {offsets = [24, 80], sizes = [24, 8], strides = [1, 1]} : vector<48x96xf32> to vector<24x8xf32>
    %cst_64 = arith.constant dense<0.000000e+00> : vector<24x24xf32>
    %170 = tpu.matmul %167, %168, %cst_64 {dimension_numbers = #tpu.dot_dimension_numbers<[1], [1], [0], [0], [0, 0, 1, 0], [], []>} : vector<24x8xf32>, vector<24x8xf32>, vector<24x24xf32> -> vector<24x24xf32>
    %cst_65 = arith.constant 0.353553385 : f32
    %171 = vector.broadcast %cst_65 : f32 to vector<24x24xf32>
    %172 = arith.mulf %170, %171 : vector<24x24xf32>
    %cst_66 = arith.constant -1.000000e+30 : f32
    %173 = vector.broadcast %cst_66 : f32 to vector<24x24xf32>
    %174 = arith.select %18, %172, %173 : vector<24x24xi1>, vector<24x24xf32>
    %cst_67 = arith.constant dense<0xFF800000> : vector<24xf32>
    %175 = vector.multi_reduction <maximumf>, %174, %cst_67 [1] : vector<24x24xf32> to vector<24xf32>
    %176 = vector.shape_cast %175 : vector<24xf32> to vector<24x1xf32>
    %177 = vector.broadcast %176 : vector<24x1xf32> to vector<24x24xf32>
    %178 = arith.subf %174, %177 : vector<24x24xf32>
    %179 = math.exp %178 : vector<24x24xf32>
    %cst_68 = arith.constant dense<0.000000e+00> : vector<24xf32>
    %180 = vector.multi_reduction <add>, %179, %cst_68 [1] : vector<24x24xf32> to vector<24xf32>
    %181 = vector.shape_cast %180 : vector<24xf32> to vector<24x1xf32>
    %182 = tpu.reciprocal %181 {approx = true} : vector<24x1xf32> -> vector<24x1xf32>
    %183 = vector.broadcast %182 : vector<24x1xf32> to vector<24x24xf32>
    %184 = arith.mulf %179, %183 : vector<24x24xf32>
    %cst_69 = arith.constant dense<0.000000e+00> : vector<24x8xf32>
    %185 = tpu.matmul %184, %169, %cst_69 {dimension_numbers = #tpu.dot_dimension_numbers<[1], [0], [0], [1], [0, 0, 1, 1], [], []>} : vector<24x24xf32>, vector<24x8xf32>, vector<24x8xf32> -> vector<24x8xf32>
    %186 = vector.extract_strided_slice %51 {offsets = [24, 24], sizes = [24, 8], strides = [1, 1]} : vector<48x96xf32> to vector<24x8xf32>
    %187 = vector.extract_strided_slice %51 {offsets = [24, 56], sizes = [24, 8], strides = [1, 1]} : vector<48x96xf32> to vector<24x8xf32>
    %188 = vector.extract_strided_slice %51 {offsets = [24, 88], sizes = [24, 8], strides = [1, 1]} : vector<48x96xf32> to vector<24x8xf32>
    %cst_70 = arith.constant dense<0.000000e+00> : vector<24x24xf32>
    %189 = tpu.matmul %186, %187, %cst_70 {dimension_numbers = #tpu.dot_dimension_numbers<[1], [1], [0], [0], [0, 0, 1, 0], [], []>} : vector<24x8xf32>, vector<24x8xf32>, vector<24x24xf32> -> vector<24x24xf32>
    %cst_71 = arith.constant 0.353553385 : f32
    %190 = vector.broadcast %cst_71 : f32 to vector<24x24xf32>
    %191 = arith.mulf %189, %190 : vector<24x24xf32>
    %cst_72 = arith.constant -1.000000e+30 : f32
    %192 = vector.broadcast %cst_72 : f32 to vector<24x24xf32>
    %193 = arith.select %18, %191, %192 : vector<24x24xi1>, vector<24x24xf32>
    %cst_73 = arith.constant dense<0xFF800000> : vector<24xf32>
    %194 = vector.multi_reduction <maximumf>, %193, %cst_73 [1] : vector<24x24xf32> to vector<24xf32>
    %195 = vector.shape_cast %194 : vector<24xf32> to vector<24x1xf32>
    %196 = vector.broadcast %195 : vector<24x1xf32> to vector<24x24xf32>
    %197 = arith.subf %193, %196 : vector<24x24xf32>
    %198 = math.exp %197 : vector<24x24xf32>
    %cst_74 = arith.constant dense<0.000000e+00> : vector<24xf32>
    %199 = vector.multi_reduction <add>, %198, %cst_74 [1] : vector<24x24xf32> to vector<24xf32>
    %200 = vector.shape_cast %199 : vector<24xf32> to vector<24x1xf32>
    %201 = tpu.reciprocal %200 {approx = true} : vector<24x1xf32> -> vector<24x1xf32>
    %202 = vector.broadcast %201 : vector<24x1xf32> to vector<24x24xf32>
    %203 = arith.mulf %198, %202 : vector<24x24xf32>
    %cst_75 = arith.constant dense<0.000000e+00> : vector<24x8xf32>
    %204 = tpu.matmul %203, %188, %cst_75 {dimension_numbers = #tpu.dot_dimension_numbers<[1], [0], [0], [1], [0, 0, 1, 1], [], []>} : vector<24x24xf32>, vector<24x8xf32>, vector<24x8xf32> -> vector<24x8xf32>
    %205 = tpu.concatenate %147, %166, %185, %204 in 1 : vector<24x8xf32>, vector<24x8xf32>, vector<24x8xf32>, vector<24x8xf32> -> vector<24x32xf32>
    %206 = tpu.concatenate %128, %205 in 0 : vector<24x32xf32>, vector<24x32xf32> -> vector<48x32xf32>
    %c0_76 = arith.constant 0 : index
    %c0_77 = arith.constant 0 : index
    %c0_78 = arith.constant 0 : index
    %207 = vector.load %arg10[%c0_76, %c0_77, %c0_78] : memref<2x32x32xf32, #tpu.memory_space<vmem>>, vector<1x32x32xf32>
    %208 = vector.shape_cast %207 : vector<1x32x32xf32> to vector<32x32xf32>
    %cst_79 = arith.constant dense<0.000000e+00> : vector<48x32xf32>
    %209 = tpu.matmul %206, %208, %cst_79 {dimension_numbers = #tpu.dot_dimension_numbers<[1], [0], [0], [1], [0, 0, 1, 1], [], []>} : vector<48x32xf32>, vector<32x32xf32>, vector<48x32xf32> -> vector<48x32xf32>
    %c0_80 = arith.constant 0 : index
    %c0_81 = arith.constant 0 : index
    %c0_82 = arith.constant 0 : index
    %210 = vector.load %arg11[%c0_80, %c0_81, %c0_82] : memref<2x1x32xf32, #tpu.memory_space<vmem>>, vector<1x1x32xf32>
    %211 = vector.shape_cast %210 : vector<1x1x32xf32> to vector<1x32xf32>
    %212 = vector.broadcast %211 : vector<1x32xf32> to vector<48x32xf32>
    %213 = arith.addf %209, %212 : vector<48x32xf32>
    %214 = arith.addf %15, %213 : vector<48x32xf32>
    %c0_83 = arith.constant 0 : index
    %c0_84 = arith.constant 0 : index
    %c0_85 = arith.constant 0 : index
    %215 = vector.load %arg12[%c0_83, %c0_84, %c0_85] : memref<2x1x32xf32, #tpu.memory_space<vmem>>, vector<1x1x32xf32>
    %216 = vector.shape_cast %215 : vector<1x1x32xf32> to vector<1x32xf32>
    %c0_86 = arith.constant 0 : index
    %c0_87 = arith.constant 0 : index
    %c0_88 = arith.constant 0 : index
    %217 = vector.load %arg13[%c0_86, %c0_87, %c0_88] : memref<2x1x32xf32, #tpu.memory_space<vmem>>, vector<1x1x32xf32>
    %218 = vector.shape_cast %217 : vector<1x1x32xf32> to vector<1x32xf32>
    %cst_89 = arith.constant dense<0.000000e+00> : vector<48xf32>
    %219 = vector.multi_reduction <add>, %214, %cst_89 [1] : vector<48x32xf32> to vector<48xf32>
    %220 = vector.shape_cast %219 : vector<48xf32> to vector<48x1xf32>
    %cst_90 = arith.constant 3.200000e+01 : f32
    %221 = vector.broadcast %cst_90 : f32 to vector<48x1xf32>
    %222 = arith.divf %220, %221 : vector<48x1xf32>
    %223 = vector.broadcast %222 : vector<48x1xf32> to vector<48x32xf32>
    %224 = arith.subf %214, %223 : vector<48x32xf32>
    %225 = arith.mulf %224, %224 : vector<48x32xf32>
    %cst_91 = arith.constant dense<0.000000e+00> : vector<48xf32>
    %226 = vector.multi_reduction <add>, %225, %cst_91 [1] : vector<48x32xf32> to vector<48xf32>
    %227 = vector.shape_cast %226 : vector<48xf32> to vector<48x1xf32>
    %cst_92 = arith.constant 3.200000e+01 : f32
    %228 = vector.broadcast %cst_92 : f32 to vector<48x1xf32>
    %229 = arith.divf %227, %228 : vector<48x1xf32>
    %230 = vector.broadcast %222 : vector<48x1xf32> to vector<48x32xf32>
    %231 = arith.subf %214, %230 : vector<48x32xf32>
    %cst_93 = arith.constant 9.99999974E-6 : f32
    %232 = vector.broadcast %cst_93 : f32 to vector<48x1xf32>
    %233 = arith.addf %229, %232 : vector<48x1xf32>
    %234 = math.rsqrt %233 : vector<48x1xf32>
    %235 = vector.broadcast %234 : vector<48x1xf32> to vector<48x32xf32>
    %236 = arith.mulf %231, %235 : vector<48x32xf32>
    %237 = vector.broadcast %216 : vector<1x32xf32> to vector<48x32xf32>
    %238 = arith.mulf %236, %237 : vector<48x32xf32>
    %239 = vector.broadcast %218 : vector<1x32xf32> to vector<48x32xf32>
    %240 = arith.addf %238, %239 : vector<48x32xf32>
    %c0_94 = arith.constant 0 : index
    %c0_95 = arith.constant 0 : index
    %c0_96 = arith.constant 0 : index
    %241 = vector.load %arg14[%c0_94, %c0_95, %c0_96] : memref<2x32x64xf32, #tpu.memory_space<vmem>>, vector<1x32x64xf32>
    %242 = vector.shape_cast %241 : vector<1x32x64xf32> to vector<32x64xf32>
    %cst_97 = arith.constant dense<0.000000e+00> : vector<48x64xf32>
    %243 = tpu.matmul %240, %242, %cst_97 {dimension_numbers = #tpu.dot_dimension_numbers<[1], [0], [0], [1], [0, 0, 1, 1], [], []>} : vector<48x32xf32>, vector<32x64xf32>, vector<48x64xf32> -> vector<48x64xf32>
    %c0_98 = arith.constant 0 : index
    %c0_99 = arith.constant 0 : index
    %c0_100 = arith.constant 0 : index
    %244 = vector.load %arg15[%c0_98, %c0_99, %c0_100] : memref<2x1x64xf32, #tpu.memory_space<vmem>>, vector<1x1x64xf32>
    %245 = vector.shape_cast %244 : vector<1x1x64xf32> to vector<1x64xf32>
    %246 = vector.broadcast %245 : vector<1x64xf32> to vector<48x64xf32>
    %247 = arith.addf %243, %246 : vector<48x64xf32>
    %cst_101 = arith.constant 5.000000e-01 : f32
    %248 = vector.broadcast %cst_101 : f32 to vector<48x64xf32>
    %249 = arith.mulf %248, %247 : vector<48x64xf32>
    %cst_102 = arith.constant 4.471500e-02 : f32
    %250 = vector.broadcast %cst_102 : f32 to vector<48x64xf32>
    %251 = arith.mulf %250, %247 : vector<48x64xf32>
    %252 = arith.mulf %251, %247 : vector<48x64xf32>
    %253 = arith.mulf %252, %247 : vector<48x64xf32>
    %254 = arith.addf %247, %253 : vector<48x64xf32>
    %cst_103 = arith.constant 0.797884583 : f32
    %255 = vector.broadcast %cst_103 : f32 to vector<48x64xf32>
    %256 = arith.mulf %255, %254 : vector<48x64xf32>
    %257 = math.tanh %256 : vector<48x64xf32>
    %cst_104 = arith.constant 1.000000e+00 : f32
    %258 = vector.broadcast %cst_104 : f32 to vector<48x64xf32>
    %259 = arith.addf %258, %257 : vector<48x64xf32>
    %260 = arith.mulf %249, %259 : vector<48x64xf32>
    %c0_105 = arith.constant 0 : index
    %c0_106 = arith.constant 0 : index
    %c0_107 = arith.constant 0 : index
    %261 = vector.load %arg16[%c0_105, %c0_106, %c0_107] : memref<2x64x32xf32, #tpu.memory_space<vmem>>, vector<1x64x32xf32>
    %262 = vector.shape_cast %261 : vector<1x64x32xf32> to vector<64x32xf32>
    %cst_108 = arith.constant dense<0.000000e+00> : vector<48x32xf32>
    %263 = tpu.matmul %260, %262, %cst_108 {dimension_numbers = #tpu.dot_dimension_numbers<[1], [0], [0], [1], [0, 0, 1, 1], [], []>} : vector<48x64xf32>, vector<64x32xf32>, vector<48x32xf32> -> vector<48x32xf32>
    %c0_109 = arith.constant 0 : index
    %c0_110 = arith.constant 0 : index
    %c0_111 = arith.constant 0 : index
    %264 = vector.load %arg17[%c0_109, %c0_110, %c0_111] : memref<2x1x32xf32, #tpu.memory_space<vmem>>, vector<1x1x32xf32>
    %265 = vector.shape_cast %264 : vector<1x1x32xf32> to vector<1x32xf32>
    %266 = vector.broadcast %265 : vector<1x32xf32> to vector<48x32xf32>
    %267 = arith.addf %263, %266 : vector<48x32xf32>
    %268 = arith.addf %214, %267 : vector<48x32xf32>
    %c1 = arith.constant 1 : index
    %c0_112 = arith.constant 0 : index
    %c0_113 = arith.constant 0 : index
    %269 = vector.load %arg6[%c1, %c0_112, %c0_113] : memref<2x1x32xf32, #tpu.memory_space<vmem>>, vector<1x1x32xf32>
    %270 = vector.shape_cast %269 : vector<1x1x32xf32> to vector<1x32xf32>
    %c1_114 = arith.constant 1 : index
    %c0_115 = arith.constant 0 : index
    %c0_116 = arith.constant 0 : index
    %271 = vector.load %arg7[%c1_114, %c0_115, %c0_116] : memref<2x1x32xf32, #tpu.memory_space<vmem>>, vector<1x1x32xf32>
    %272 = vector.shape_cast %271 : vector<1x1x32xf32> to vector<1x32xf32>
    %cst_117 = arith.constant dense<0.000000e+00> : vector<48xf32>
    %273 = vector.multi_reduction <add>, %268, %cst_117 [1] : vector<48x32xf32> to vector<48xf32>
    %274 = vector.shape_cast %273 : vector<48xf32> to vector<48x1xf32>
    %cst_118 = arith.constant 3.200000e+01 : f32
    %275 = vector.broadcast %cst_118 : f32 to vector<48x1xf32>
    %276 = arith.divf %274, %275 : vector<48x1xf32>
    %277 = vector.broadcast %276 : vector<48x1xf32> to vector<48x32xf32>
    %278 = arith.subf %268, %277 : vector<48x32xf32>
    %279 = arith.mulf %278, %278 : vector<48x32xf32>
    %cst_119 = arith.constant dense<0.000000e+00> : vector<48xf32>
    %280 = vector.multi_reduction <add>, %279, %cst_119 [1] : vector<48x32xf32> to vector<48xf32>
    %281 = vector.shape_cast %280 : vector<48xf32> to vector<48x1xf32>
    %cst_120 = arith.constant 3.200000e+01 : f32
    %282 = vector.broadcast %cst_120 : f32 to vector<48x1xf32>
    %283 = arith.divf %281, %282 : vector<48x1xf32>
    %284 = vector.broadcast %276 : vector<48x1xf32> to vector<48x32xf32>
    %285 = arith.subf %268, %284 : vector<48x32xf32>
    %cst_121 = arith.constant 9.99999974E-6 : f32
    %286 = vector.broadcast %cst_121 : f32 to vector<48x1xf32>
    %287 = arith.addf %283, %286 : vector<48x1xf32>
    %288 = math.rsqrt %287 : vector<48x1xf32>
    %289 = vector.broadcast %288 : vector<48x1xf32> to vector<48x32xf32>
    %290 = arith.mulf %285, %289 : vector<48x32xf32>
    %291 = vector.broadcast %270 : vector<1x32xf32> to vector<48x32xf32>
    %292 = arith.mulf %290, %291 : vector<48x32xf32>
    %293 = vector.broadcast %272 : vector<1x32xf32> to vector<48x32xf32>
    %294 = arith.addf %292, %293 : vector<48x32xf32>
    %c1_122 = arith.constant 1 : index
    %c0_123 = arith.constant 0 : index
    %c0_124 = arith.constant 0 : index
    %295 = vector.load %arg8[%c1_122, %c0_123, %c0_124] : memref<2x32x96xf32, #tpu.memory_space<vmem>>, vector<1x32x96xf32>
    %296 = vector.shape_cast %295 : vector<1x32x96xf32> to vector<32x96xf32>
    %cst_125 = arith.constant dense<0.000000e+00> : vector<48x96xf32>
    %297 = tpu.matmul %294, %296, %cst_125 {dimension_numbers = #tpu.dot_dimension_numbers<[1], [0], [0], [1], [0, 0, 1, 1], [], []>} : vector<48x32xf32>, vector<32x96xf32>, vector<48x96xf32> -> vector<48x96xf32>
    %c1_126 = arith.constant 1 : index
    %c0_127 = arith.constant 0 : index
    %c0_128 = arith.constant 0 : index
    %298 = vector.load %arg9[%c1_126, %c0_127, %c0_128] : memref<2x1x96xf32, #tpu.memory_space<vmem>>, vector<1x1x96xf32>
    %299 = vector.shape_cast %298 : vector<1x1x96xf32> to vector<1x96xf32>
    %300 = vector.broadcast %299 : vector<1x96xf32> to vector<48x96xf32>
    %301 = arith.addf %297, %300 : vector<48x96xf32>
    %302 = vector.extract_strided_slice %301 {offsets = [0, 0], sizes = [24, 8], strides = [1, 1]} : vector<48x96xf32> to vector<24x8xf32>
    %303 = vector.extract_strided_slice %301 {offsets = [0, 32], sizes = [24, 8], strides = [1, 1]} : vector<48x96xf32> to vector<24x8xf32>
    %304 = vector.extract_strided_slice %301 {offsets = [0, 64], sizes = [24, 8], strides = [1, 1]} : vector<48x96xf32> to vector<24x8xf32>
    %cst_129 = arith.constant dense<0.000000e+00> : vector<24x24xf32>
    %305 = tpu.matmul %302, %303, %cst_129 {dimension_numbers = #tpu.dot_dimension_numbers<[1], [1], [0], [0], [0, 0, 1, 0], [], []>} : vector<24x8xf32>, vector<24x8xf32>, vector<24x24xf32> -> vector<24x24xf32>
    %cst_130 = arith.constant 0.353553385 : f32
    %306 = vector.broadcast %cst_130 : f32 to vector<24x24xf32>
    %307 = arith.mulf %305, %306 : vector<24x24xf32>
    %cst_131 = arith.constant -1.000000e+30 : f32
    %308 = vector.broadcast %cst_131 : f32 to vector<24x24xf32>
    %309 = arith.select %18, %307, %308 : vector<24x24xi1>, vector<24x24xf32>
    %cst_132 = arith.constant dense<0xFF800000> : vector<24xf32>
    %310 = vector.multi_reduction <maximumf>, %309, %cst_132 [1] : vector<24x24xf32> to vector<24xf32>
    %311 = vector.shape_cast %310 : vector<24xf32> to vector<24x1xf32>
    %312 = vector.broadcast %311 : vector<24x1xf32> to vector<24x24xf32>
    %313 = arith.subf %309, %312 : vector<24x24xf32>
    %314 = math.exp %313 : vector<24x24xf32>
    %cst_133 = arith.constant dense<0.000000e+00> : vector<24xf32>
    %315 = vector.multi_reduction <add>, %314, %cst_133 [1] : vector<24x24xf32> to vector<24xf32>
    %316 = vector.shape_cast %315 : vector<24xf32> to vector<24x1xf32>
    %317 = tpu.reciprocal %316 {approx = true} : vector<24x1xf32> -> vector<24x1xf32>
    %318 = vector.broadcast %317 : vector<24x1xf32> to vector<24x24xf32>
    %319 = arith.mulf %314, %318 : vector<24x24xf32>
    %cst_134 = arith.constant dense<0.000000e+00> : vector<24x8xf32>
    %320 = tpu.matmul %319, %304, %cst_134 {dimension_numbers = #tpu.dot_dimension_numbers<[1], [0], [0], [1], [0, 0, 1, 1], [], []>} : vector<24x24xf32>, vector<24x8xf32>, vector<24x8xf32> -> vector<24x8xf32>
    %321 = vector.extract_strided_slice %301 {offsets = [0, 8], sizes = [24, 8], strides = [1, 1]} : vector<48x96xf32> to vector<24x8xf32>
    %322 = vector.extract_strided_slice %301 {offsets = [0, 40], sizes = [24, 8], strides = [1, 1]} : vector<48x96xf32> to vector<24x8xf32>
    %323 = vector.extract_strided_slice %301 {offsets = [0, 72], sizes = [24, 8], strides = [1, 1]} : vector<48x96xf32> to vector<24x8xf32>
    %cst_135 = arith.constant dense<0.000000e+00> : vector<24x24xf32>
    %324 = tpu.matmul %321, %322, %cst_135 {dimension_numbers = #tpu.dot_dimension_numbers<[1], [1], [0], [0], [0, 0, 1, 0], [], []>} : vector<24x8xf32>, vector<24x8xf32>, vector<24x24xf32> -> vector<24x24xf32>
    %cst_136 = arith.constant 0.353553385 : f32
    %325 = vector.broadcast %cst_136 : f32 to vector<24x24xf32>
    %326 = arith.mulf %324, %325 : vector<24x24xf32>
    %cst_137 = arith.constant -1.000000e+30 : f32
    %327 = vector.broadcast %cst_137 : f32 to vector<24x24xf32>
    %328 = arith.select %18, %326, %327 : vector<24x24xi1>, vector<24x24xf32>
    %cst_138 = arith.constant dense<0xFF800000> : vector<24xf32>
    %329 = vector.multi_reduction <maximumf>, %328, %cst_138 [1] : vector<24x24xf32> to vector<24xf32>
    %330 = vector.shape_cast %329 : vector<24xf32> to vector<24x1xf32>
    %331 = vector.broadcast %330 : vector<24x1xf32> to vector<24x24xf32>
    %332 = arith.subf %328, %331 : vector<24x24xf32>
    %333 = math.exp %332 : vector<24x24xf32>
    %cst_139 = arith.constant dense<0.000000e+00> : vector<24xf32>
    %334 = vector.multi_reduction <add>, %333, %cst_139 [1] : vector<24x24xf32> to vector<24xf32>
    %335 = vector.shape_cast %334 : vector<24xf32> to vector<24x1xf32>
    %336 = tpu.reciprocal %335 {approx = true} : vector<24x1xf32> -> vector<24x1xf32>
    %337 = vector.broadcast %336 : vector<24x1xf32> to vector<24x24xf32>
    %338 = arith.mulf %333, %337 : vector<24x24xf32>
    %cst_140 = arith.constant dense<0.000000e+00> : vector<24x8xf32>
    %339 = tpu.matmul %338, %323, %cst_140 {dimension_numbers = #tpu.dot_dimension_numbers<[1], [0], [0], [1], [0, 0, 1, 1], [], []>} : vector<24x24xf32>, vector<24x8xf32>, vector<24x8xf32> -> vector<24x8xf32>
    %340 = vector.extract_strided_slice %301 {offsets = [0, 16], sizes = [24, 8], strides = [1, 1]} : vector<48x96xf32> to vector<24x8xf32>
    %341 = vector.extract_strided_slice %301 {offsets = [0, 48], sizes = [24, 8], strides = [1, 1]} : vector<48x96xf32> to vector<24x8xf32>
    %342 = vector.extract_strided_slice %301 {offsets = [0, 80], sizes = [24, 8], strides = [1, 1]} : vector<48x96xf32> to vector<24x8xf32>
    %cst_141 = arith.constant dense<0.000000e+00> : vector<24x24xf32>
    %343 = tpu.matmul %340, %341, %cst_141 {dimension_numbers = #tpu.dot_dimension_numbers<[1], [1], [0], [0], [0, 0, 1, 0], [], []>} : vector<24x8xf32>, vector<24x8xf32>, vector<24x24xf32> -> vector<24x24xf32>
    %cst_142 = arith.constant 0.353553385 : f32
    %344 = vector.broadcast %cst_142 : f32 to vector<24x24xf32>
    %345 = arith.mulf %343, %344 : vector<24x24xf32>
    %cst_143 = arith.constant -1.000000e+30 : f32
    %346 = vector.broadcast %cst_143 : f32 to vector<24x24xf32>
    %347 = arith.select %18, %345, %346 : vector<24x24xi1>, vector<24x24xf32>
    %cst_144 = arith.constant dense<0xFF800000> : vector<24xf32>
    %348 = vector.multi_reduction <maximumf>, %347, %cst_144 [1] : vector<24x24xf32> to vector<24xf32>
    %349 = vector.shape_cast %348 : vector<24xf32> to vector<24x1xf32>
    %350 = vector.broadcast %349 : vector<24x1xf32> to vector<24x24xf32>
    %351 = arith.subf %347, %350 : vector<24x24xf32>
    %352 = math.exp %351 : vector<24x24xf32>
    %cst_145 = arith.constant dense<0.000000e+00> : vector<24xf32>
    %353 = vector.multi_reduction <add>, %352, %cst_145 [1] : vector<24x24xf32> to vector<24xf32>
    %354 = vector.shape_cast %353 : vector<24xf32> to vector<24x1xf32>
    %355 = tpu.reciprocal %354 {approx = true} : vector<24x1xf32> -> vector<24x1xf32>
    %356 = vector.broadcast %355 : vector<24x1xf32> to vector<24x24xf32>
    %357 = arith.mulf %352, %356 : vector<24x24xf32>
    %cst_146 = arith.constant dense<0.000000e+00> : vector<24x8xf32>
    %358 = tpu.matmul %357, %342, %cst_146 {dimension_numbers = #tpu.dot_dimension_numbers<[1], [0], [0], [1], [0, 0, 1, 1], [], []>} : vector<24x24xf32>, vector<24x8xf32>, vector<24x8xf32> -> vector<24x8xf32>
    %359 = vector.extract_strided_slice %301 {offsets = [0, 24], sizes = [24, 8], strides = [1, 1]} : vector<48x96xf32> to vector<24x8xf32>
    %360 = vector.extract_strided_slice %301 {offsets = [0, 56], sizes = [24, 8], strides = [1, 1]} : vector<48x96xf32> to vector<24x8xf32>
    %361 = vector.extract_strided_slice %301 {offsets = [0, 88], sizes = [24, 8], strides = [1, 1]} : vector<48x96xf32> to vector<24x8xf32>
    %cst_147 = arith.constant dense<0.000000e+00> : vector<24x24xf32>
    %362 = tpu.matmul %359, %360, %cst_147 {dimension_numbers = #tpu.dot_dimension_numbers<[1], [1], [0], [0], [0, 0, 1, 0], [], []>} : vector<24x8xf32>, vector<24x8xf32>, vector<24x24xf32> -> vector<24x24xf32>
    %cst_148 = arith.constant 0.353553385 : f32
    %363 = vector.broadcast %cst_148 : f32 to vector<24x24xf32>
    %364 = arith.mulf %362, %363 : vector<24x24xf32>
    %cst_149 = arith.constant -1.000000e+30 : f32
    %365 = vector.broadcast %cst_149 : f32 to vector<24x24xf32>
    %366 = arith.select %18, %364, %365 : vector<24x24xi1>, vector<24x24xf32>
    %cst_150 = arith.constant dense<0xFF800000> : vector<24xf32>
    %367 = vector.multi_reduction <maximumf>, %366, %cst_150 [1] : vector<24x24xf32> to vector<24xf32>
    %368 = vector.shape_cast %367 : vector<24xf32> to vector<24x1xf32>
    %369 = vector.broadcast %368 : vector<24x1xf32> to vector<24x24xf32>
    %370 = arith.subf %366, %369 : vector<24x24xf32>
    %371 = math.exp %370 : vector<24x24xf32>
    %cst_151 = arith.constant dense<0.000000e+00> : vector<24xf32>
    %372 = vector.multi_reduction <add>, %371, %cst_151 [1] : vector<24x24xf32> to vector<24xf32>
    %373 = vector.shape_cast %372 : vector<24xf32> to vector<24x1xf32>
    %374 = tpu.reciprocal %373 {approx = true} : vector<24x1xf32> -> vector<24x1xf32>
    %375 = vector.broadcast %374 : vector<24x1xf32> to vector<24x24xf32>
    %376 = arith.mulf %371, %375 : vector<24x24xf32>
    %cst_152 = arith.constant dense<0.000000e+00> : vector<24x8xf32>
    %377 = tpu.matmul %376, %361, %cst_152 {dimension_numbers = #tpu.dot_dimension_numbers<[1], [0], [0], [1], [0, 0, 1, 1], [], []>} : vector<24x24xf32>, vector<24x8xf32>, vector<24x8xf32> -> vector<24x8xf32>
    %378 = tpu.concatenate %320, %339, %358, %377 in 1 : vector<24x8xf32>, vector<24x8xf32>, vector<24x8xf32>, vector<24x8xf32> -> vector<24x32xf32>
    %379 = vector.extract_strided_slice %301 {offsets = [24, 0], sizes = [24, 8], strides = [1, 1]} : vector<48x96xf32> to vector<24x8xf32>
    %380 = vector.extract_strided_slice %301 {offsets = [24, 32], sizes = [24, 8], strides = [1, 1]} : vector<48x96xf32> to vector<24x8xf32>
    %381 = vector.extract_strided_slice %301 {offsets = [24, 64], sizes = [24, 8], strides = [1, 1]} : vector<48x96xf32> to vector<24x8xf32>
    %cst_153 = arith.constant dense<0.000000e+00> : vector<24x24xf32>
    %382 = tpu.matmul %379, %380, %cst_153 {dimension_numbers = #tpu.dot_dimension_numbers<[1], [1], [0], [0], [0, 0, 1, 0], [], []>} : vector<24x8xf32>, vector<24x8xf32>, vector<24x24xf32> -> vector<24x24xf32>
    %cst_154 = arith.constant 0.353553385 : f32
    %383 = vector.broadcast %cst_154 : f32 to vector<24x24xf32>
    %384 = arith.mulf %382, %383 : vector<24x24xf32>
    %cst_155 = arith.constant -1.000000e+30 : f32
    %385 = vector.broadcast %cst_155 : f32 to vector<24x24xf32>
    %386 = arith.select %18, %384, %385 : vector<24x24xi1>, vector<24x24xf32>
    %cst_156 = arith.constant dense<0xFF800000> : vector<24xf32>
    %387 = vector.multi_reduction <maximumf>, %386, %cst_156 [1] : vector<24x24xf32> to vector<24xf32>
    %388 = vector.shape_cast %387 : vector<24xf32> to vector<24x1xf32>
    %389 = vector.broadcast %388 : vector<24x1xf32> to vector<24x24xf32>
    %390 = arith.subf %386, %389 : vector<24x24xf32>
    %391 = math.exp %390 : vector<24x24xf32>
    %cst_157 = arith.constant dense<0.000000e+00> : vector<24xf32>
    %392 = vector.multi_reduction <add>, %391, %cst_157 [1] : vector<24x24xf32> to vector<24xf32>
    %393 = vector.shape_cast %392 : vector<24xf32> to vector<24x1xf32>
    %394 = tpu.reciprocal %393 {approx = true} : vector<24x1xf32> -> vector<24x1xf32>
    %395 = vector.broadcast %394 : vector<24x1xf32> to vector<24x24xf32>
    %396 = arith.mulf %391, %395 : vector<24x24xf32>
    %cst_158 = arith.constant dense<0.000000e+00> : vector<24x8xf32>
    %397 = tpu.matmul %396, %381, %cst_158 {dimension_numbers = #tpu.dot_dimension_numbers<[1], [0], [0], [1], [0, 0, 1, 1], [], []>} : vector<24x24xf32>, vector<24x8xf32>, vector<24x8xf32> -> vector<24x8xf32>
    %398 = vector.extract_strided_slice %301 {offsets = [24, 8], sizes = [24, 8], strides = [1, 1]} : vector<48x96xf32> to vector<24x8xf32>
    %399 = vector.extract_strided_slice %301 {offsets = [24, 40], sizes = [24, 8], strides = [1, 1]} : vector<48x96xf32> to vector<24x8xf32>
    %400 = vector.extract_strided_slice %301 {offsets = [24, 72], sizes = [24, 8], strides = [1, 1]} : vector<48x96xf32> to vector<24x8xf32>
    %cst_159 = arith.constant dense<0.000000e+00> : vector<24x24xf32>
    %401 = tpu.matmul %398, %399, %cst_159 {dimension_numbers = #tpu.dot_dimension_numbers<[1], [1], [0], [0], [0, 0, 1, 0], [], []>} : vector<24x8xf32>, vector<24x8xf32>, vector<24x24xf32> -> vector<24x24xf32>
    %cst_160 = arith.constant 0.353553385 : f32
    %402 = vector.broadcast %cst_160 : f32 to vector<24x24xf32>
    %403 = arith.mulf %401, %402 : vector<24x24xf32>
    %cst_161 = arith.constant -1.000000e+30 : f32
    %404 = vector.broadcast %cst_161 : f32 to vector<24x24xf32>
    %405 = arith.select %18, %403, %404 : vector<24x24xi1>, vector<24x24xf32>
    %cst_162 = arith.constant dense<0xFF800000> : vector<24xf32>
    %406 = vector.multi_reduction <maximumf>, %405, %cst_162 [1] : vector<24x24xf32> to vector<24xf32>
    %407 = vector.shape_cast %406 : vector<24xf32> to vector<24x1xf32>
    %408 = vector.broadcast %407 : vector<24x1xf32> to vector<24x24xf32>
    %409 = arith.subf %405, %408 : vector<24x24xf32>
    %410 = math.exp %409 : vector<24x24xf32>
    %cst_163 = arith.constant dense<0.000000e+00> : vector<24xf32>
    %411 = vector.multi_reduction <add>, %410, %cst_163 [1] : vector<24x24xf32> to vector<24xf32>
    %412 = vector.shape_cast %411 : vector<24xf32> to vector<24x1xf32>
    %413 = tpu.reciprocal %412 {approx = true} : vector<24x1xf32> -> vector<24x1xf32>
    %414 = vector.broadcast %413 : vector<24x1xf32> to vector<24x24xf32>
    %415 = arith.mulf %410, %414 : vector<24x24xf32>
    %cst_164 = arith.constant dense<0.000000e+00> : vector<24x8xf32>
    %416 = tpu.matmul %415, %400, %cst_164 {dimension_numbers = #tpu.dot_dimension_numbers<[1], [0], [0], [1], [0, 0, 1, 1], [], []>} : vector<24x24xf32>, vector<24x8xf32>, vector<24x8xf32> -> vector<24x8xf32>
    %417 = vector.extract_strided_slice %301 {offsets = [24, 16], sizes = [24, 8], strides = [1, 1]} : vector<48x96xf32> to vector<24x8xf32>
    %418 = vector.extract_strided_slice %301 {offsets = [24, 48], sizes = [24, 8], strides = [1, 1]} : vector<48x96xf32> to vector<24x8xf32>
    %419 = vector.extract_strided_slice %301 {offsets = [24, 80], sizes = [24, 8], strides = [1, 1]} : vector<48x96xf32> to vector<24x8xf32>
    %cst_165 = arith.constant dense<0.000000e+00> : vector<24x24xf32>
    %420 = tpu.matmul %417, %418, %cst_165 {dimension_numbers = #tpu.dot_dimension_numbers<[1], [1], [0], [0], [0, 0, 1, 0], [], []>} : vector<24x8xf32>, vector<24x8xf32>, vector<24x24xf32> -> vector<24x24xf32>
    %cst_166 = arith.constant 0.353553385 : f32
    %421 = vector.broadcast %cst_166 : f32 to vector<24x24xf32>
    %422 = arith.mulf %420, %421 : vector<24x24xf32>
    %cst_167 = arith.constant -1.000000e+30 : f32
    %423 = vector.broadcast %cst_167 : f32 to vector<24x24xf32>
    %424 = arith.select %18, %422, %423 : vector<24x24xi1>, vector<24x24xf32>
    %cst_168 = arith.constant dense<0xFF800000> : vector<24xf32>
    %425 = vector.multi_reduction <maximumf>, %424, %cst_168 [1] : vector<24x24xf32> to vector<24xf32>
    %426 = vector.shape_cast %425 : vector<24xf32> to vector<24x1xf32>
    %427 = vector.broadcast %426 : vector<24x1xf32> to vector<24x24xf32>
    %428 = arith.subf %424, %427 : vector<24x24xf32>
    %429 = math.exp %428 : vector<24x24xf32>
    %cst_169 = arith.constant dense<0.000000e+00> : vector<24xf32>
    %430 = vector.multi_reduction <add>, %429, %cst_169 [1] : vector<24x24xf32> to vector<24xf32>
    %431 = vector.shape_cast %430 : vector<24xf32> to vector<24x1xf32>
    %432 = tpu.reciprocal %431 {approx = true} : vector<24x1xf32> -> vector<24x1xf32>
    %433 = vector.broadcast %432 : vector<24x1xf32> to vector<24x24xf32>
    %434 = arith.mulf %429, %433 : vector<24x24xf32>
    %cst_170 = arith.constant dense<0.000000e+00> : vector<24x8xf32>
    %435 = tpu.matmul %434, %419, %cst_170 {dimension_numbers = #tpu.dot_dimension_numbers<[1], [0], [0], [1], [0, 0, 1, 1], [], []>} : vector<24x24xf32>, vector<24x8xf32>, vector<24x8xf32> -> vector<24x8xf32>
    %436 = vector.extract_strided_slice %301 {offsets = [24, 24], sizes = [24, 8], strides = [1, 1]} : vector<48x96xf32> to vector<24x8xf32>
    %437 = vector.extract_strided_slice %301 {offsets = [24, 56], sizes = [24, 8], strides = [1, 1]} : vector<48x96xf32> to vector<24x8xf32>
    %438 = vector.extract_strided_slice %301 {offsets = [24, 88], sizes = [24, 8], strides = [1, 1]} : vector<48x96xf32> to vector<24x8xf32>
    %cst_171 = arith.constant dense<0.000000e+00> : vector<24x24xf32>
    %439 = tpu.matmul %436, %437, %cst_171 {dimension_numbers = #tpu.dot_dimension_numbers<[1], [1], [0], [0], [0, 0, 1, 0], [], []>} : vector<24x8xf32>, vector<24x8xf32>, vector<24x24xf32> -> vector<24x24xf32>
    %cst_172 = arith.constant 0.353553385 : f32
    %440 = vector.broadcast %cst_172 : f32 to vector<24x24xf32>
    %441 = arith.mulf %439, %440 : vector<24x24xf32>
    %cst_173 = arith.constant -1.000000e+30 : f32
    %442 = vector.broadcast %cst_173 : f32 to vector<24x24xf32>
    %443 = arith.select %18, %441, %442 : vector<24x24xi1>, vector<24x24xf32>
    %cst_174 = arith.constant dense<0xFF800000> : vector<24xf32>
    %444 = vector.multi_reduction <maximumf>, %443, %cst_174 [1] : vector<24x24xf32> to vector<24xf32>
    %445 = vector.shape_cast %444 : vector<24xf32> to vector<24x1xf32>
    %446 = vector.broadcast %445 : vector<24x1xf32> to vector<24x24xf32>
    %447 = arith.subf %443, %446 : vector<24x24xf32>
    %448 = math.exp %447 : vector<24x24xf32>
    %cst_175 = arith.constant dense<0.000000e+00> : vector<24xf32>
    %449 = vector.multi_reduction <add>, %448, %cst_175 [1] : vector<24x24xf32> to vector<24xf32>
    %450 = vector.shape_cast %449 : vector<24xf32> to vector<24x1xf32>
    %451 = tpu.reciprocal %450 {approx = true} : vector<24x1xf32> -> vector<24x1xf32>
    %452 = vector.broadcast %451 : vector<24x1xf32> to vector<24x24xf32>
    %453 = arith.mulf %448, %452 : vector<24x24xf32>
    %cst_176 = arith.constant dense<0.000000e+00> : vector<24x8xf32>
    %454 = tpu.matmul %453, %438, %cst_176 {dimension_numbers = #tpu.dot_dimension_numbers<[1], [0], [0], [1], [0, 0, 1, 1], [], []>} : vector<24x24xf32>, vector<24x8xf32>, vector<24x8xf32> -> vector<24x8xf32>
    %455 = tpu.concatenate %397, %416, %435, %454 in 1 : vector<24x8xf32>, vector<24x8xf32>, vector<24x8xf32>, vector<24x8xf32> -> vector<24x32xf32>
    %456 = tpu.concatenate %378, %455 in 0 : vector<24x32xf32>, vector<24x32xf32> -> vector<48x32xf32>
    %c1_177 = arith.constant 1 : index
    %c0_178 = arith.constant 0 : index
    %c0_179 = arith.constant 0 : index
    %457 = vector.load %arg10[%c1_177, %c0_178, %c0_179] : memref<2x32x32xf32, #tpu.memory_space<vmem>>, vector<1x32x32xf32>
    %458 = vector.shape_cast %457 : vector<1x32x32xf32> to vector<32x32xf32>
    %cst_180 = arith.constant dense<0.000000e+00> : vector<48x32xf32>
    %459 = tpu.matmul %456, %458, %cst_180 {dimension_numbers = #tpu.dot_dimension_numbers<[1], [0], [0], [1], [0, 0, 1, 1], [], []>} : vector<48x32xf32>, vector<32x32xf32>, vector<48x32xf32> -> vector<48x32xf32>
    %c1_181 = arith.constant 1 : index
    %c0_182 = arith.constant 0 : index
    %c0_183 = arith.constant 0 : index
    %460 = vector.load %arg11[%c1_181, %c0_182, %c0_183] : memref<2x1x32xf32, #tpu.memory_space<vmem>>, vector<1x1x32xf32>
    %461 = vector.shape_cast %460 : vector<1x1x32xf32> to vector<1x32xf32>
    %462 = vector.broadcast %461 : vector<1x32xf32> to vector<48x32xf32>
    %463 = arith.addf %459, %462 : vector<48x32xf32>
    %464 = arith.addf %268, %463 : vector<48x32xf32>
    %c1_184 = arith.constant 1 : index
    %c0_185 = arith.constant 0 : index
    %c0_186 = arith.constant 0 : index
    %465 = vector.load %arg12[%c1_184, %c0_185, %c0_186] : memref<2x1x32xf32, #tpu.memory_space<vmem>>, vector<1x1x32xf32>
    %466 = vector.shape_cast %465 : vector<1x1x32xf32> to vector<1x32xf32>
    %c1_187 = arith.constant 1 : index
    %c0_188 = arith.constant 0 : index
    %c0_189 = arith.constant 0 : index
    %467 = vector.load %arg13[%c1_187, %c0_188, %c0_189] : memref<2x1x32xf32, #tpu.memory_space<vmem>>, vector<1x1x32xf32>
    %468 = vector.shape_cast %467 : vector<1x1x32xf32> to vector<1x32xf32>
    %cst_190 = arith.constant dense<0.000000e+00> : vector<48xf32>
    %469 = vector.multi_reduction <add>, %464, %cst_190 [1] : vector<48x32xf32> to vector<48xf32>
    %470 = vector.shape_cast %469 : vector<48xf32> to vector<48x1xf32>
    %cst_191 = arith.constant 3.200000e+01 : f32
    %471 = vector.broadcast %cst_191 : f32 to vector<48x1xf32>
    %472 = arith.divf %470, %471 : vector<48x1xf32>
    %473 = vector.broadcast %472 : vector<48x1xf32> to vector<48x32xf32>
    %474 = arith.subf %464, %473 : vector<48x32xf32>
    %475 = arith.mulf %474, %474 : vector<48x32xf32>
    %cst_192 = arith.constant dense<0.000000e+00> : vector<48xf32>
    %476 = vector.multi_reduction <add>, %475, %cst_192 [1] : vector<48x32xf32> to vector<48xf32>
    %477 = vector.shape_cast %476 : vector<48xf32> to vector<48x1xf32>
    %cst_193 = arith.constant 3.200000e+01 : f32
    %478 = vector.broadcast %cst_193 : f32 to vector<48x1xf32>
    %479 = arith.divf %477, %478 : vector<48x1xf32>
    %480 = vector.broadcast %472 : vector<48x1xf32> to vector<48x32xf32>
    %481 = arith.subf %464, %480 : vector<48x32xf32>
    %cst_194 = arith.constant 9.99999974E-6 : f32
    %482 = vector.broadcast %cst_194 : f32 to vector<48x1xf32>
    %483 = arith.addf %479, %482 : vector<48x1xf32>
    %484 = math.rsqrt %483 : vector<48x1xf32>
    %485 = vector.broadcast %484 : vector<48x1xf32> to vector<48x32xf32>
    %486 = arith.mulf %481, %485 : vector<48x32xf32>
    %487 = vector.broadcast %466 : vector<1x32xf32> to vector<48x32xf32>
    %488 = arith.mulf %486, %487 : vector<48x32xf32>
    %489 = vector.broadcast %468 : vector<1x32xf32> to vector<48x32xf32>
    %490 = arith.addf %488, %489 : vector<48x32xf32>
    %c1_195 = arith.constant 1 : index
    %c0_196 = arith.constant 0 : index
    %c0_197 = arith.constant 0 : index
    %491 = vector.load %arg14[%c1_195, %c0_196, %c0_197] : memref<2x32x64xf32, #tpu.memory_space<vmem>>, vector<1x32x64xf32>
    %492 = vector.shape_cast %491 : vector<1x32x64xf32> to vector<32x64xf32>
    %cst_198 = arith.constant dense<0.000000e+00> : vector<48x64xf32>
    %493 = tpu.matmul %490, %492, %cst_198 {dimension_numbers = #tpu.dot_dimension_numbers<[1], [0], [0], [1], [0, 0, 1, 1], [], []>} : vector<48x32xf32>, vector<32x64xf32>, vector<48x64xf32> -> vector<48x64xf32>
    %c1_199 = arith.constant 1 : index
    %c0_200 = arith.constant 0 : index
    %c0_201 = arith.constant 0 : index
    %494 = vector.load %arg15[%c1_199, %c0_200, %c0_201] : memref<2x1x64xf32, #tpu.memory_space<vmem>>, vector<1x1x64xf32>
    %495 = vector.shape_cast %494 : vector<1x1x64xf32> to vector<1x64xf32>
    %496 = vector.broadcast %495 : vector<1x64xf32> to vector<48x64xf32>
    %497 = arith.addf %493, %496 : vector<48x64xf32>
    %cst_202 = arith.constant 5.000000e-01 : f32
    %498 = vector.broadcast %cst_202 : f32 to vector<48x64xf32>
    %499 = arith.mulf %498, %497 : vector<48x64xf32>
    %cst_203 = arith.constant 4.471500e-02 : f32
    %500 = vector.broadcast %cst_203 : f32 to vector<48x64xf32>
    %501 = arith.mulf %500, %497 : vector<48x64xf32>
    %502 = arith.mulf %501, %497 : vector<48x64xf32>
    %503 = arith.mulf %502, %497 : vector<48x64xf32>
    %504 = arith.addf %497, %503 : vector<48x64xf32>
    %cst_204 = arith.constant 0.797884583 : f32
    %505 = vector.broadcast %cst_204 : f32 to vector<48x64xf32>
    %506 = arith.mulf %505, %504 : vector<48x64xf32>
    %507 = math.tanh %506 : vector<48x64xf32>
    %cst_205 = arith.constant 1.000000e+00 : f32
    %508 = vector.broadcast %cst_205 : f32 to vector<48x64xf32>
    %509 = arith.addf %508, %507 : vector<48x64xf32>
    %510 = arith.mulf %499, %509 : vector<48x64xf32>
    %c1_206 = arith.constant 1 : index
    %c0_207 = arith.constant 0 : index
    %c0_208 = arith.constant 0 : index
    %511 = vector.load %arg16[%c1_206, %c0_207, %c0_208] : memref<2x64x32xf32, #tpu.memory_space<vmem>>, vector<1x64x32xf32>
    %512 = vector.shape_cast %511 : vector<1x64x32xf32> to vector<64x32xf32>
    %cst_209 = arith.constant dense<0.000000e+00> : vector<48x32xf32>
    %513 = tpu.matmul %510, %512, %cst_209 {dimension_numbers = #tpu.dot_dimension_numbers<[1], [0], [0], [1], [0, 0, 1, 1], [], []>} : vector<48x64xf32>, vector<64x32xf32>, vector<48x32xf32> -> vector<48x32xf32>
    %c1_210 = arith.constant 1 : index
    %c0_211 = arith.constant 0 : index
    %c0_212 = arith.constant 0 : index
    %514 = vector.load %arg17[%c1_210, %c0_211, %c0_212] : memref<2x1x32xf32, #tpu.memory_space<vmem>>, vector<1x1x32xf32>
    %515 = vector.shape_cast %514 : vector<1x1x32xf32> to vector<1x32xf32>
    %516 = vector.broadcast %515 : vector<1x32xf32> to vector<48x32xf32>
    %517 = arith.addf %513, %516 : vector<48x32xf32>
    %518 = arith.addf %464, %517 : vector<48x32xf32>
    %c0_213 = arith.constant 0 : index
    %c0_214 = arith.constant 0 : index
    %519 = vector.load %arg18[%c0_213, %c0_214] : memref<1x32xf32, #tpu.memory_space<vmem>>, vector<1x32xf32>
    %c0_215 = arith.constant 0 : index
    %c0_216 = arith.constant 0 : index
    %520 = vector.load %arg19[%c0_215, %c0_216] : memref<1x32xf32, #tpu.memory_space<vmem>>, vector<1x32xf32>
    %cst_217 = arith.constant dense<0.000000e+00> : vector<48xf32>
    %521 = vector.multi_reduction <add>, %518, %cst_217 [1] : vector<48x32xf32> to vector<48xf32>
    %522 = vector.shape_cast %521 : vector<48xf32> to vector<48x1xf32>
    %cst_218 = arith.constant 3.200000e+01 : f32
    %523 = vector.broadcast %cst_218 : f32 to vector<48x1xf32>
    %524 = arith.divf %522, %523 : vector<48x1xf32>
    %525 = vector.broadcast %524 : vector<48x1xf32> to vector<48x32xf32>
    %526 = arith.subf %518, %525 : vector<48x32xf32>
    %527 = arith.mulf %526, %526 : vector<48x32xf32>
    %cst_219 = arith.constant dense<0.000000e+00> : vector<48xf32>
    %528 = vector.multi_reduction <add>, %527, %cst_219 [1] : vector<48x32xf32> to vector<48xf32>
    %529 = vector.shape_cast %528 : vector<48xf32> to vector<48x1xf32>
    %cst_220 = arith.constant 3.200000e+01 : f32
    %530 = vector.broadcast %cst_220 : f32 to vector<48x1xf32>
    %531 = arith.divf %529, %530 : vector<48x1xf32>
    %532 = vector.broadcast %524 : vector<48x1xf32> to vector<48x32xf32>
    %533 = arith.subf %518, %532 : vector<48x32xf32>
    %cst_221 = arith.constant 9.99999974E-6 : f32
    %534 = vector.broadcast %cst_221 : f32 to vector<48x1xf32>
    %535 = arith.addf %531, %534 : vector<48x1xf32>
    %536 = math.rsqrt %535 : vector<48x1xf32>
    %537 = vector.broadcast %536 : vector<48x1xf32> to vector<48x32xf32>
    %538 = arith.mulf %533, %537 : vector<48x32xf32>
    %539 = vector.broadcast %519 : vector<1x32xf32> to vector<48x32xf32>
    %540 = arith.mulf %538, %539 : vector<48x32xf32>
    %541 = vector.broadcast %520 : vector<1x32xf32> to vector<48x32xf32>
    %542 = arith.addf %540, %541 : vector<48x32xf32>
    %543 = vector.extract_strided_slice %542 {offsets = [0, 0], sizes = [1, 32], strides = [1, 1]} : vector<48x32xf32> to vector<1x32xf32>
    %cst_222 = arith.constant dense<0.000000e+00> : vector<32xf32>
    %544 = vector.multi_reduction <add>, %543, %cst_222 [0] : vector<1x32xf32> to vector<32xf32>
    %545 = vector.shape_cast %544 : vector<32xf32> to vector<1x32xf32>
    %546 = vector.extract_strided_slice %542 {offsets = [24, 0], sizes = [1, 32], strides = [1, 1]} : vector<48x32xf32> to vector<1x32xf32>
    %cst_223 = arith.constant dense<0.000000e+00> : vector<32xf32>
    %547 = vector.multi_reduction <add>, %546, %cst_223 [0] : vector<1x32xf32> to vector<32xf32>
    %548 = vector.shape_cast %547 : vector<32xf32> to vector<1x32xf32>
    %549 = tpu.concatenate %545, %548 in 0 : vector<1x32xf32>, vector<1x32xf32> -> vector<2x32xf32>
    %c0_224 = arith.constant 0 : index
    %c0_225 = arith.constant 0 : index
    %550 = vector.load %arg20[%c0_224, %c0_225] : memref<32x16xf32, #tpu.memory_space<vmem>>, vector<32x16xf32>
    %cst_226 = arith.constant dense<0.000000e+00> : vector<2x16xf32>
    %551 = tpu.matmul %549, %550, %cst_226 {dimension_numbers = #tpu.dot_dimension_numbers<[1], [0], [0], [1], [0, 0, 1, 1], [], []>} : vector<2x32xf32>, vector<32x16xf32>, vector<2x16xf32> -> vector<2x16xf32>
    %c0_227 = arith.constant 0 : index
    %c0_228 = arith.constant 0 : index
    %552 = vector.load %arg21[%c0_227, %c0_228] : memref<1x16xf32, #tpu.memory_space<vmem>>, vector<1x16xf32>
    %553 = vector.broadcast %552 : vector<1x16xf32> to vector<2x16xf32>
    %554 = arith.addf %551, %553 : vector<2x16xf32>
    %c0_229 = arith.constant 0 : index
    %c0_230 = arith.constant 0 : index
    %555 = vector.load %arg22[%c0_229, %c0_230] : memref<2x16xf32, #tpu.memory_space<vmem>>, vector<2x16xf32>
    tpu.vector_store %arg22[%c0_229, %c0_230], %554 {strides = array<i32>} : memref<2x16xf32, #tpu.memory_space<vmem>>, vector<2x16xf32>,
    return
  }
  func.func @transform_0(%arg0: i32) -> (i32, i32) {
    %c0_i32 = arith.constant 0 : i32
    %c0_i32_0 = arith.constant 0 : i32
    %c0_i32_1 = arith.constant 0 : i32
    return %c0_i32, %c0_i32_0 : i32, i32
  }
  func.func @transform_1(%arg0: i32) -> (i32, i32) {
    %c0_i32 = arith.constant 0 : i32
    %c0_i32_0 = arith.constant 0 : i32
    %c0_i32_1 = arith.constant 0 : i32
    return %c0_i32, %c0_i32_0 : i32, i32
  }
  func.func @transform_2(%arg0: i32) -> (i32, i32) {
    %c0_i32 = arith.constant 0 : i32
    %c0_i32_0 = arith.constant 0 : i32
    %c0_i32_1 = arith.constant 0 : i32
    return %c0_i32, %c0_i32_0 : i32, i32
  }
  func.func @transform_3(%arg0: i32) -> (i32, i32) {
    %c0_i32 = arith.constant 0 : i32
    %c0_i32_0 = arith.constant 0 : i32
    %c0_i32_1 = arith.constant 0 : i32
    return %c0_i32, %c0_i32_0 : i32, i32
  }
  func.func @transform_4(%arg0: i32) -> (i32, i32) {
    %c0_i32 = arith.constant 0 : i32
    %c0_i32_0 = arith.constant 0 : i32
    %c0_i32_1 = arith.constant 0 : i32
    return %c0_i32, %c0_i32_0 : i32, i32
  }
  func.func @transform_5(%arg0: i32) -> (i32, i32, i32) {
    %c0_i32 = arith.constant 0 : i32
    %c0_i32_0 = arith.constant 0 : i32
    %c0_i32_1 = arith.constant 0 : i32
    %c0_i32_2 = arith.constant 0 : i32
    return %c0_i32, %c0_i32_0, %c0_i32_1 : i32, i32, i32
  }
  func.func @transform_6(%arg0: i32) -> (i32, i32, i32) {
    %c0_i32 = arith.constant 0 : i32
    %c0_i32_0 = arith.constant 0 : i32
    %c0_i32_1 = arith.constant 0 : i32
    %c0_i32_2 = arith.constant 0 : i32
    return %c0_i32, %c0_i32_0, %c0_i32_1 : i32, i32, i32
  }
  func.func @transform_7(%arg0: i32) -> (i32, i32, i32) {
    %c0_i32 = arith.constant 0 : i32
    %c0_i32_0 = arith.constant 0 : i32
    %c0_i32_1 = arith.constant 0 : i32
    %c0_i32_2 = arith.constant 0 : i32
    return %c0_i32, %c0_i32_0, %c0_i32_1 : i32, i32, i32
  }
  func.func @transform_8(%arg0: i32) -> (i32, i32, i32) {
    %c0_i32 = arith.constant 0 : i32
    %c0_i32_0 = arith.constant 0 : i32
    %c0_i32_1 = arith.constant 0 : i32
    %c0_i32_2 = arith.constant 0 : i32
    return %c0_i32, %c0_i32_0, %c0_i32_1 : i32, i32, i32
  }
  func.func @transform_9(%arg0: i32) -> (i32, i32, i32) {
    %c0_i32 = arith.constant 0 : i32
    %c0_i32_0 = arith.constant 0 : i32
    %c0_i32_1 = arith.constant 0 : i32
    %c0_i32_2 = arith.constant 0 : i32
    return %c0_i32, %c0_i32_0, %c0_i32_1 : i32, i32, i32
  }
  func.func @transform_10(%arg0: i32) -> (i32, i32, i32) {
    %c0_i32 = arith.constant 0 : i32
    %c0_i32_0 = arith.constant 0 : i32
    %c0_i32_1 = arith.constant 0 : i32
    %c0_i32_2 = arith.constant 0 : i32
    return %c0_i32, %c0_i32_0, %c0_i32_1 : i32, i32, i32
  }
  func.func @transform_11(%arg0: i32) -> (i32, i32, i32) {
    %c0_i32 = arith.constant 0 : i32
    %c0_i32_0 = arith.constant 0 : i32
    %c0_i32_1 = arith.constant 0 : i32
    %c0_i32_2 = arith.constant 0 : i32
    return %c0_i32, %c0_i32_0, %c0_i32_1 : i32, i32, i32
  }
  func.func @transform_12(%arg0: i32) -> (i32, i32, i32) {
    %c0_i32 = arith.constant 0 : i32
    %c0_i32_0 = arith.constant 0 : i32
    %c0_i32_1 = arith.constant 0 : i32
    %c0_i32_2 = arith.constant 0 : i32
    return %c0_i32, %c0_i32_0, %c0_i32_1 : i32, i32, i32
  }
  func.func @transform_13(%arg0: i32) -> (i32, i32, i32) {
    %c0_i32 = arith.constant 0 : i32
    %c0_i32_0 = arith.constant 0 : i32
    %c0_i32_1 = arith.constant 0 : i32
    %c0_i32_2 = arith.constant 0 : i32
    return %c0_i32, %c0_i32_0, %c0_i32_1 : i32, i32, i32
  }
  func.func @transform_14(%arg0: i32) -> (i32, i32, i32) {
    %c0_i32 = arith.constant 0 : i32
    %c0_i32_0 = arith.constant 0 : i32
    %c0_i32_1 = arith.constant 0 : i32
    %c0_i32_2 = arith.constant 0 : i32
    return %c0_i32, %c0_i32_0, %c0_i32_1 : i32, i32, i32
  }
  func.func @transform_15(%arg0: i32) -> (i32, i32, i32) {
    %c0_i32 = arith.constant 0 : i32
    %c0_i32_0 = arith.constant 0 : i32
    %c0_i32_1 = arith.constant 0 : i32
    %c0_i32_2 = arith.constant 0 : i32
    return %c0_i32, %c0_i32_0, %c0_i32_1 : i32, i32, i32
  }
  func.func @transform_16(%arg0: i32) -> (i32, i32, i32) {
    %c0_i32 = arith.constant 0 : i32
    %c0_i32_0 = arith.constant 0 : i32
    %c0_i32_1 = arith.constant 0 : i32
    %c0_i32_2 = arith.constant 0 : i32
    return %c0_i32, %c0_i32_0, %c0_i32_1 : i32, i32, i32
  }
  func.func @transform_17(%arg0: i32) -> (i32, i32) {
    %c0_i32 = arith.constant 0 : i32
    %c0_i32_0 = arith.constant 0 : i32
    %c0_i32_1 = arith.constant 0 : i32
    return %c0_i32, %c0_i32_0 : i32, i32
  }
  func.func @transform_18(%arg0: i32) -> (i32, i32) {
    %c0_i32 = arith.constant 0 : i32
    %c0_i32_0 = arith.constant 0 : i32
    %c0_i32_1 = arith.constant 0 : i32
    return %c0_i32, %c0_i32_0 : i32, i32
  }
  func.func @transform_19(%arg0: i32) -> (i32, i32) {
    %c0_i32 = arith.constant 0 : i32
    %c0_i32_0 = arith.constant 0 : i32
    %c0_i32_1 = arith.constant 0 : i32
    return %c0_i32, %c0_i32_0 : i32, i32
  }
  func.func @transform_20(%arg0: i32) -> (i32, i32) {
    %c0_i32 = arith.constant 0 : i32
    %c0_i32_0 = arith.constant 0 : i32
    %c0_i32_1 = arith.constant 0 : i32
    return %c0_i32, %c0_i32_0 : i32, i32
  }
  func.func @transform_21(%arg0: i32) -> (i32, i32) {
    %c0_i32 = arith.constant 0 : i32
    %c0_i32_0 = arith.constant 0 : i32
    %c0_i32_1 = arith.constant 0 : i32
    return %c0_i32, %c0_i32_0 : i32, i32
  }
}

</mosaic_0001>

<llo_original>
// kernel: vit_forward.1
$region0: #{vit_forward.1}
  #allocation0 [shape = 'u32[]', space=smem, size = 0x4, offset = 0x4, fixed_abs, tag = 'smem constant byte address 0x4 - core index']
  #allocation1 [shape = 'u32[72,128]{1,0:T(1,128)}', space=vmem, size = 0x9000, scoped, tag = 'internal scratch']
  %s0 = inlined_call_operand.vmem [shape: f32[32,48], index: 0, kind: input, shape index: {}]
  %s1 = inlined_call_operand.vmem [shape: f32[48,32], index: 1, kind: input, shape index: {}]
  %s2 = inlined_call_operand.vmem [shape: f32[1,32], index: 2, kind: input, shape index: {}]
  %s3 = inlined_call_operand.vmem [shape: f32[1,32], index: 3, kind: input, shape index: {}]
  %s4 = inlined_call_operand.vmem [shape: f32[24,32], index: 4, kind: input, shape index: {}]
  %s5 = inlined_call_operand.vmem [shape: f32[2,1,32], index: 5, kind: input, shape index: {}]
  %s6 = inlined_call_operand.vmem [shape: f32[2,1,32], index: 6, kind: input, shape index: {}]
  %s7 = inlined_call_operand.vmem [shape: f32[2,32,96], index: 7, kind: input, shape index: {}]
  %s8 = inlined_call_operand.vmem [shape: f32[2,1,96], index: 8, kind: input, shape index: {}]
  %s9 = inlined_call_operand.vmem [shape: f32[2,32,32], index: 9, kind: input, shape index: {}]
  %s10 = inlined_call_operand.vmem [shape: f32[2,1,32], index: 10, kind: input, shape index: {}]
  %s11 = inlined_call_operand.vmem [shape: f32[2,1,32], index: 11, kind: input, shape index: {}]
  %s12 = inlined_call_operand.vmem [shape: f32[2,1,32], index: 12, kind: input, shape index: {}]
  %s13 = inlined_call_operand.vmem [shape: f32[2,32,64], index: 13, kind: input, shape index: {}]
  %s14 = inlined_call_operand.vmem [shape: f32[2,1,64], index: 14, kind: input, shape index: {}]
  %s15 = inlined_call_operand.vmem [shape: f32[2,64,32], index: 15, kind: input, shape index: {}]
  %s16 = inlined_call_operand.vmem [shape: f32[2,1,32], index: 16, kind: input, shape index: {}]
  %s17 = inlined_call_operand.vmem [shape: f32[1,32], index: 17, kind: input, shape index: {}]
  %s18 = inlined_call_operand.vmem [shape: f32[1,32], index: 18, kind: input, shape index: {}]
  %s19 = inlined_call_operand.vmem [shape: f32[32,16], index: 19, kind: input, shape index: {}]
  %s20 = inlined_call_operand.vmem [shape: f32[1,16], index: 20, kind: input, shape index: {}]
  %s21 = inlined_call_operand.hbm [shape: f32[2,16], index: 21, kind: output, shape index: {}]
  %s22 = sld [smem:[#allocation0]]
  $region94: #{vit_forward.1} parent=0
    _
  %s24 = ssub.s32 1, %s22
  %s25 = scalar_select 0, %s24, %s22
  $region1: #{vit_forward.1} parent=0
    #allocation2 [shape = 'u8[1024]{0}', space=vmem, size = 0x400, scoped, tag = 'output window, operand 0, single buffered']
    #allocation3 [shape = 's32[1]{0}', space=sflag, size = 0x4, scoped, tag = 'scoped memory for vit_forward.1']
    %26 = vsyncpa [#allocation3], 0
    // Predicated region
    $region2: #{vit_forward.1} parent=1 // pred_check
      _
    $region3: #{vit_forward.1} parent=1 // pred_check_branch
      %28 = sbr.rel (0) target = $region5
    $region4: #{vit_forward.1} parent=1 // pred_region
      _
    $region5: #{vit_forward.1} parent=1 // pred_fallthru
      _
    // Predicated region
    $region6: #{vit_forward.1} parent=1 // pred_check
      _
    $region7: #{vit_forward.1} parent=1 // pred_check_branch
      %30 = sbr.rel (0) target = $region9
    $region8: #{vit_forward.1} parent=1 // pred_region
      _
    $region9: #{vit_forward.1} parent=1 // pred_fallthru
      _
    // Predicated region
    $region10: #{vit_forward.1} parent=1 // pred_check
      _
    $region11: #{vit_forward.1} parent=1 // pred_check_branch
      %32 = sbr.rel (0) target = $region13
    $region12: #{vit_forward.1} parent=1 // pred_region
      _
    $region13: #{vit_forward.1} parent=1 // pred_fallthru
      _
    // Predicated region
    $region14: #{vit_forward.1} parent=1 // pred_check
      _
    $region15: #{vit_forward.1} parent=1 // pred_check_branch
      %34 = sbr.rel (0) target = $region17
    $region16: #{vit_forward.1} parent=1 // pred_region
      _
    $region17: #{vit_forward.1} parent=1 // pred_fallthru
      _
    // Predicated region
    $region18: #{vit_forward.1} parent=1 // pred_check
      _
    $region19: #{vit_forward.1} parent=1 // pred_check_branch
      %36 = sbr.rel (0) target = $region21
    $region20: #{vit_forward.1} parent=1 // pred_region
      _
    $region21: #{vit_forward.1} parent=1 // pred_fallthru
      _
    // Predicated region
    $region22: #{vit_forward.1} parent=1 // pred_check
      _
    $region23: #{vit_forward.1} parent=1 // pred_check_branch
      %38 = sbr.rel (0) target = $region25
    $region24: #{vit_forward.1} parent=1 // pred_region
      _
    $region25: #{vit_forward.1} parent=1 // pred_fallthru
      _
    // Predicated region
    $region26: #{vit_forward.1} parent=1 // pred_check
      _
    $region27: #{vit_forward.1} parent=1 // pred_check_branch
      %40 = sbr.rel (0) target = $region29
    $region28: #{vit_forward.1} parent=1 // pred_region
      _
    $region29: #{vit_forward.1} parent=1 // pred_fallthru
      _
    // Predicated region
    $region30: #{vit_forward.1} parent=1 // pred_check
      _
    $region31: #{vit_forward.1} parent=1 // pred_check_branch
      %42 = sbr.rel (0) target = $region33
    $region32: #{vit_forward.1} parent=1 // pred_region
      _
    $region33: #{vit_forward.1} parent=1 // pred_fallthru
      _
    // Predicated region
    $region34: #{vit_forward.1} parent=1 // pred_check
      _
    $region35: #{vit_forward.1} parent=1 // pred_check_branch
      %44 = sbr.rel (0) target = $region37
    $region36: #{vit_forward.1} parent=1 // pred_region
      _
    $region37: #{vit_forward.1} parent=1 // pred_fallthru
      _
    // Predicated region
    $region38: #{vit_forward.1} parent=1 // pred_check
      _
    $region39: #{vit_forward.1} parent=1 // pred_check_branch
      %46 = sbr.rel (0) target = $region41
    $region40: #{vit_forward.1} parent=1 // pred_region
      _
    $region41: #{vit_forward.1} parent=1 // pred_fallthru
      _
    // Predicated region
    $region42: #{vit_forward.1} parent=1 // pred_check
      _
    $region43: #{vit_forward.1} parent=1 // pred_check_branch
      %48 = sbr.rel (0) target = $region45
    $region44: #{vit_forward.1} parent=1 // pred_region
      _
    $region45: #{vit_forward.1} parent=1 // pred_fallthru
      _
    // Predicated region
    $region46: #{vit_forward.1} parent=1 // pred_check
      _
    $region47: #{vit_forward.1} parent=1 // pred_check_branch
      %50 = sbr.rel (0) target = $region49
    $region48: #{vit_forward.1} parent=1 // pred_region
      _
    $region49: #{vit_forward.1} parent=1 // pred_fallthru
      _
    // Predicated region
    $region50: #{vit_forward.1} parent=1 // pred_check
      _
    $region51: #{vit_forward.1} parent=1 // pred_check_branch
      %52 = sbr.rel (0) target = $region53
    $region52: #{vit_forward.1} parent=1 // pred_region
      _
    $region53: #{vit_forward.1} parent=1 // pred_fallthru
      _
    // Predicated region
    $region54: #{vit_forward.1} parent=1 // pred_check
      _
    $region55: #{vit_forward.1} parent=1 // pred_check_branch
      %54 = sbr.rel (0) target = $region57
    $region56: #{vit_forward.1} parent=1 // pred_region
      _
    $region57: #{vit_forward.1} parent=1 // pred_fallthru
      _
    // Predicated region
    $region58: #{vit_forward.1} parent=1 // pred_check
      _
    $region59: #{vit_forward.1} parent=1 // pred_check_branch
      %56 = sbr.rel (0) target = $region61
    $region60: #{vit_forward.1} parent=1 // pred_region
      _
    $region61: #{vit_forward.1} parent=1 // pred_fallthru
      _
    // Predicated region
    $region62: #{vit_forward.1} parent=1 // pred_check
      _
    $region63: #{vit_forward.1} parent=1 // pred_check_branch
      %58 = sbr.rel (0) target = $region65
    $region64: #{vit_forward.1} parent=1 // pred_region
      _
    $region65: #{vit_forward.1} parent=1 // pred_fallthru
      _
    // Predicated region
    $region66: #{vit_forward.1} parent=1 // pred_check
      _
    $region67: #{vit_forward.1} parent=1 // pred_check_branch
      %60 = sbr.rel (0) target = $region69
    $region68: #{vit_forward.1} parent=1 // pred_region
      _
    $region69: #{vit_forward.1} parent=1 // pred_fallthru
      _
    // Predicated region
    $region70: #{vit_forward.1} parent=1 // pred_check
      _
    $region71: #{vit_forward.1} parent=1 // pred_check_branch
      %62 = sbr.rel (0) target = $region73
    $region72: #{vit_forward.1} parent=1 // pred_region
      _
    $region73: #{vit_forward.1} parent=1 // pred_fallthru
      _
    // Predicated region
    $region74: #{vit_forward.1} parent=1 // pred_check
      _
    $region75: #{vit_forward.1} parent=1 // pred_check_branch
      %64 = sbr.rel (0) target = $region77
    $region76: #{vit_forward.1} parent=1 // pred_region
      _
    $region77: #{vit_forward.1} parent=1 // pred_fallthru
      _
    // Predicated region
    $region78: #{vit_forward.1} parent=1 // pred_check
      _
    $region79: #{vit_forward.1} parent=1 // pred_check_branch
      %66 = sbr.rel (0) target = $region81
    $region80: #{vit_forward.1} parent=1 // pred_region
      _
    $region81: #{vit_forward.1} parent=1 // pred_fallthru
      _
    // Predicated region
    $region82: #{vit_forward.1} parent=1 // pred_check
      _
    $region83: #{vit_forward.1} parent=1 // pred_check_branch
      %68 = sbr.rel (0) target = $region85
    $region84: #{vit_forward.1} parent=1 // pred_region
      _
    $region85: #{vit_forward.1} parent=1 // pred_fallthru
      _
    %v69 = vld [vmem:[%s0] sm:$0xff]
    %v70 = vld [vmem:[%s0 + $0x8] sm:$0xff]
    %v71 = vld [vmem:[%s0 + $0x10] sm:$0xff]
    %v72 = vld [vmem:[%s0 + $0x18] sm:$0xff]
    %v73 = vld [vmem:[%s1] sm:$0xff]
    %v74 = vld [vmem:[%s1 + $0x8] sm:$0xff]
    %v75 = vld [vmem:[%s1 + $0x10] sm:$0xff]
    %v76 = vld [vmem:[%s1 + $0x18] sm:$0xff]
    %v77 = vld [vmem:[%s1 + $0x20] sm:$0xff]
    %v78 = vld [vmem:[%s1 + $0x28] sm:$0xff]
    %v79 = vld [vmem:[%s2] sm:$0x1]
    %v81 = vperm.slane %v79, 0
    %vm83 = vcmask 392192
    %v85 = vsel %vm83, %v69, 0
    %v88 = vsel %vm83, %v70, 0
    %v91 = vsel %vm83, %v71, 0
    %v94 = vsel %vm83, %v72, 0
    %96 = vmatpush.msra.mxu0 0.0
    %97 = vmatpush.msra.mxu0 0.0
    %98 = vmatpush.msra.mxu0 0.0
    %99 = vmatpush.msra.mxu0 0.0
    %100 = vmatpush.msra.mxu0 0.0
    %101 = vmatpush.msra.mxu0 0.0
    %102 = vmatpush.msra.mxu0 0.0
    %103 = vmatpush.msra.mxu0 0.0
    %104 = vmatpush.msra.mxu0 0.0
    %105 = vmatpush.msra.mxu0 0.0
    %106 = vmatpush.msra.mxu0 %v78
    %107 = vmatpush.msra.mxu0 %v77
    %108 = vmatpush.msra.mxu0 %v76
    %109 = vmatpush.msra.mxu0 %v75
    %110 = vmatpush.msra.mxu0 %v74
    %111 = vmatpush.msra.mxu0 %v73
    %112 = vmatmul.f32.gmra.mxu0 %v85
    %v113 = vpop.f32.mrf.mxu0
    %v114 = vadd.f32 %v81, %v113
    %115 = vmatmul.f32.gmra.mxu0 %v88
    %v116 = vpop.f32.mrf.mxu0
    %v117 = vadd.f32 %v81, %v116
    %118 = vmatmul.f32.gmra.mxu0 %v91
    %v119 = vpop.f32.mrf.mxu0
    %v120 = vadd.f32 %v81, %v119
    %121 = vmatmul.f32.gmra.mxu0 %v94
    %v122 = vpop.f32.mrf.mxu0
    %v123 = vadd.f32 %v81, %v122
    %124 = vdwg.mxu0
    %v125 = vld [vmem:[%s4] sm:$0xff]
    %v126 = vld [vmem:[%s4 + $0x8] sm:$0xff]
    %v127 = vld [vmem:[%s4 + $0x10] sm:$0xff]
    %v128 = vld [vmem:[%s3] sm:$0x1]
    %vm131 = vcmask 1040384
    %v132 = vrot.slane %v114, 7
    %v133 = vrot.slane %v117, 7
    %v134 = vsel %vm131, %v132, %v133
    %v138 = vsel %vm131, %v128, %v132
    %v139 = vsel %vm131, %v133, 0.0
    %v140 = vadd.f32 %v138, %v125
    %v141 = vadd.f32 %v134, %v126
    %v142 = vadd.f32 %v139, %v127
    %v145 = vrot.slane %v120, 7
    %v146 = vrot.slane %v123, 7
    %v147 = vsel %vm131, %v145, %v146
    %v151 = vsel %vm131, %v128, %v145
    %v152 = vsel %vm131, %v146, 0.0
    %v153 = vadd.f32 %v151, %v125
    %v154 = vadd.f32 %v147, %v126
    %v155 = vadd.f32 %v152, %v127
    %v156 = vlaneseq
    %v157 = vand.u32 %v156, 127
    %vm158 = vcmp.lt.s32.totalorder %v157, 17
    %v159 = vld [vmem:[%s5] sm:$0x1]
    %v160 = vld [vmem:[%s6] sm:$0x1]
    %vm161 = vcmask 261120
    %v162 = vsel %vm161, %v140, 0.0
    %163 = vadd.xlane.f32.xlu0 %v162
    %v164 = vpop.xlane.xlu0 %163
    %v165 = vsel %vm161, %v141, 0.0
    %166 = vadd.xlane.f32.xlu0 %v165
    %v167 = vpop.xlane.xlu0 %166
    %v168 = vsel %vm161, %v142, 0.0
    %169 = vadd.xlane.f32.xlu0 %v168
    %v170 = vpop.xlane.xlu0 %169
    %v171 = vsel %vm161, %v153, 0.0
    %172 = vadd.xlane.f32.xlu0 %v171
    %v173 = vpop.xlane.xlu0 %172
    %v174 = vsel %vm161, %v154, 0.0
    %175 = vadd.xlane.f32.xlu0 %v174
    %v176 = vpop.xlane.xlu0 %175
    %v177 = vsel %vm161, %v155, 0.0
    %178 = vadd.xlane.f32.xlu0 %v177
    %v179 = vpop.xlane.xlu0 %178
    %v180 = vrcp.pop 32.0
    %v181 = vmul.f32 32.0, %v180
    %v182 = vsub.f32 1.0, %v181
    %v183 = vmul.f32 %v180, %v182
    %v184 = vadd.f32 %v180, %v183
    %vm185 = vweird.f32 %v180
    %v186 = vsel %vm185, %v180, %v184
    %v187 = vmul.f32 %v164, %v186
    %v188 = vmul.f32 %v167, %v186
    %v189 = vmul.f32 %v170, %v186
    %v190 = vmul.f32 %v173, %v186
    %v191 = vmul.f32 %v176, %v186
    %v192 = vmul.f32 %v179, %v186
    %v193 = vsub.f32 %v140, %v187
    %v194 = vsub.f32 %v141, %v188
    %v195 = vsub.f32 %v142, %v189
    %v196 = vsub.f32 %v153, %v190
    %v197 = vsub.f32 %v154, %v191
    %v198 = vsub.f32 %v155, %v192
    %v199 = vmul.f32 %v193, %v193
    %v200 = vmul.f32 %v194, %v194
    %v201 = vmul.f32 %v195, %v195
    %v202 = vmul.f32 %v196, %v196
    %v203 = vmul.f32 %v197, %v197
    %v204 = vmul.f32 %v198, %v198
    %v205 = vsel %vm161, %v199, 0.0
    %206 = vadd.xlane.f32.xlu0 %v205
    %v207 = vpop.xlane.xlu0 %206
    %v208 = vsel %vm161, %v200, 0.0
    %209 = vadd.xlane.f32.xlu0 %v208
    %v210 = vpop.xlane.xlu0 %209
    %v211 = vsel %vm161, %v201, 0.0
    %212 = vadd.xlane.f32.xlu0 %v211
    %v213 = vpop.xlane.xlu0 %212
    %v214 = vsel %vm161, %v202, 0.0
    %215 = vadd.xlane.f32.xlu0 %v214
    %v216 = vpop.xlane.xlu0 %215
    %v217 = vsel %vm161, %v203, 0.0
    %218 = vadd.xlane.f32.xlu0 %v217
    %v219 = vpop.xlane.xlu0 %218
    %v220 = vsel %vm161, %v204, 0.0
    %221 = vadd.xlane.f32.xlu0 %v220
    %v222 = vpop.xlane.xlu0 %221
    %v223 = vmul.f32 %v207, %v186
    %v224 = vmul.f32 %v210, %v186
    %v225 = vmul.f32 %v213, %v186
    %v226 = vmul.f32 %v216, %v186
    %v227 = vmul.f32 %v219, %v186
    %v228 = vmul.f32 %v222, %v186
    %v229 = vadd.f32 %v223, 1e-05
    %v230 = vadd.f32 %v224, 1e-05
    %v231 = vadd.f32 %v225, 1e-05
    %v232 = vadd.f32 %v226, 1e-05
    %v233 = vadd.f32 %v227, 1e-05
    %v234 = vadd.f32 %v228, 1e-05
    %v235 = vrsqrt.pop %v229
    %v236 = vmul.f32 %v235, %v229
    %v237 = vmul.f32 %v236, %v235
    %v238 = vmul.f32 0.5, %v237
    %v239 = vsub.f32 1.5, %v238
    %v240 = vmul.f32 %v235, %v239
    %vm241 = vweird.f32 %v229
    %vm242 = vweird.f32 %v235
    %vm243 = vmor %vm241, %vm242
    %v244 = vsel %vm243, %v235, %v240
    %v245 = vrsqrt.pop %v230
    %v246 = vmul.f32 %v245, %v230
    %v247 = vmul.f32 %v246, %v245
    %v248 = vmul.f32 0.5, %v247
    %v249 = vsub.f32 1.5, %v248
    %v250 = vmul.f32 %v245, %v249
    %vm251 = vweird.f32 %v230
    %vm252 = vweird.f32 %v245
    %vm253 = vmor %vm251, %vm252
    %v254 = vsel %vm253, %v245, %v250
    %v255 = vrsqrt.pop %v231
    %v256 = vmul.f32 %v255, %v231
    %v257 = vmul.f32 %v256, %v255
    %v258 = vmul.f32 0.5, %v257
    %v259 = vsub.f32 1.5, %v258
    %v260 = vmul.f32 %v255, %v259
    %vm261 = vweird.f32 %v231
    %vm262 = vweird.f32 %v255
    %vm263 = vmor %vm261, %vm262
    %v264 = vsel %vm263, %v255, %v260
    %v265 = vrsqrt.pop %v232
    %v266 = vmul.f32 %v265, %v232
    %v267 = vmul.f32 %v266, %v265
    %v268 = vmul.f32 0.5, %v267
    %v269 = vsub.f32 1.5, %v268
    %v270 = vmul.f32 %v265, %v269
    %vm271 = vweird.f32 %v232
    %vm272 = vweird.f32 %v265
    %vm273 = vmor %vm271, %vm272
    %v274 = vsel %vm273, %v265, %v270
    %v275 = vrsqrt.pop %v233
    %v276 = vmul.f32 %v275, %v233
    %v277 = vmul.f32 %v276, %v275
    %v278 = vmul.f32 0.5, %v277
    %v279 = vsub.f32 1.5, %v278
    %v280 = vmul.f32 %v275, %v279
    %vm281 = vweird.f32 %v233
    %vm282 = vweird.f32 %v275
    %vm283 = vmor %vm281, %vm282
    %v284 = vsel %vm283, %v275, %v280
    %v285 = vrsqrt.pop %v234
    %v286 = vmul.f32 %v285, %v234
    %v287 = vmul.f32 %v286, %v285
    %v288 = vmul.f32 0.5, %v287
    %v289 = vsub.f32 1.5, %v288
    %v290 = vmul.f32 %v285, %v289
    %vm291 = vweird.f32 %v234
    %vm292 = vweird.f32 %v285
    %vm293 = vmor %vm291, %vm292
    %v294 = vsel %vm293, %v285, %v290
    %v295 = vmul.f32 %v193, %v244
    %v296 = vmul.f32 %v194, %v254
    %v297 = vmul.f32 %v195, %v264
    %v298 = vmul.f32 %v196, %v274
    %v299 = vmul.f32 %v197, %v284
    %v300 = vmul.f32 %v198, %v294
    %v302 = vperm.slane %v159, 0
    %v304 = vmul.f32 %v295, %v302
    %v305 = vmul.f32 %v296, %v302
    %v306 = vmul.f32 %v297, %v302
    %v307 = vmul.f32 %v298, %v302
    %v308 = vmul.f32 %v299, %v302
    %v309 = vmul.f32 %v300, %v302
    %v311 = vperm.slane %v160, 0
    %v313 = vadd.f32 %v304, %v311
    %v314 = vadd.f32 %v305, %v311
    %v315 = vadd.f32 %v306, %v311
    %v316 = vadd.f32 %v307, %v311
    %v317 = vadd.f32 %v308, %v311
    %v318 = vadd.f32 %v309, %v311
    %v319 = vld [vmem:[%s7] sm:$0xff]
    %v320 = vld [vmem:[%s7 + $0x8] sm:$0xff]
    %v321 = vld [vmem:[%s7 + $0x10] sm:$0xff]
    %v322 = vld [vmem:[%s7 + $0x18] sm:$0xff]
    %v323 = vld [vmem:[%s8] sm:$0x1]
    %v325 = vperm.slane %v323, 0
    %v328 = vsel %vm161, %v313, 0
    %v331 = vsel %vm161, %v314, 0
    %v334 = vsel %vm161, %v315, 0
    %v337 = vsel %vm161, %v316, 0
    %v340 = vsel %vm161, %v317, 0
    %v343 = vsel %vm161, %v318, 0
    %345 = vmatpush.msra.mxu0 0.0
    %346 = vmatpush.msra.mxu0 0.0
    %347 = vmatpush.msra.mxu0 0.0
    %348 = vmatpush.msra.mxu0 0.0
    %349 = vmatpush.msra.mxu0 0.0
    %350 = vmatpush.msra.mxu0 0.0
    %351 = vmatpush.msra.mxu0 0.0
    %352 = vmatpush.msra.mxu0 0.0
    %353 = vmatpush.msra.mxu0 0.0
    %354 = vmatpush.msra.mxu0 0.0
    %355 = vmatpush.msra.mxu0 0.0
    %356 = vmatpush.msra.mxu0 0.0
    %357 = vmatpush.msra.mxu0 %v322
    %358 = vmatpush.msra.mxu0 %v321
    %359 = vmatpush.msra.mxu0 %v320
    %360 = vmatpush.msra.mxu0 %v319
    %361 = vmatmul.f32.gmra.mxu0 %v328
    %v362 = vpop.f32.mrf.mxu0
    %v363 = vadd.f32 %v325, %v362
    %364 = vmatmul.f32.gmra.mxu0 %v331
    %v365 = vpop.f32.mrf.mxu0
    %v366 = vadd.f32 %v325, %v365
    %367 = vmatmul.f32.gmra.mxu0 %v334
    %v368 = vpop.f32.mrf.mxu0
    %v369 = vadd.f32 %v325, %v368
    %370 = vmatmul.f32.gmra.mxu0 %v337
    %v371 = vpop.f32.mrf.mxu0
    %v372 = vadd.f32 %v325, %v371
    %373 = vmatmul.f32.gmra.mxu0 %v340
    %v374 = vpop.f32.mrf.mxu0
    %v375 = vadd.f32 %v325, %v374
    %376 = vmatmul.f32.gmra.mxu0 %v343
    %v377 = vpop.f32.mrf.mxu0
    %v378 = vadd.f32 %v325, %v377
    %379 = vdwg.mxu0
    %383 = vrot.lane.b32.xlu0 %v363, 96
    %v384 = vpop.permute.xlu0 %383
    %385 = vrot.lane.b32.xlu0 %v366, 96
    %v386 = vpop.permute.xlu0 %385
    %387 = vrot.lane.b32.xlu0 %v369, 96
    %v388 = vpop.permute.xlu0 %387
    %vm389 = vcmask 64512
    %v390 = vsel %vm389, %v363, 0
    %v392 = vsel %vm389, %v366, 0
    %v394 = vsel %vm389, %v369, 0
    %v396 = vsel %vm389, %v384, 0
    %v398 = vsel %vm389, %v386, 0
    %v400 = vsel %vm389, %v388, 0
    %402 = vmatpush.xpose.msra.mxu0 0.0
    %403 = vmatpush.xpose.msra.mxu0 0.0
    %404 = vmatpush.xpose.msra.mxu0 0.0
    %405 = vmatpush.xpose.msra.mxu0 0.0
    %406 = vmatpush.xpose.msra.mxu0 0.0
    %407 = vmatpush.xpose.msra.mxu0 0.0
    %408 = vmatpush.xpose.msra.mxu0 0.0
    %409 = vmatpush.xpose.msra.mxu0 0.0
    %410 = vmatpush.xpose.msra.mxu0 0.0
    %411 = vmatpush.xpose.msra.mxu0 0.0
    %412 = vmatpush.xpose.msra.mxu0 0.0
    %413 = vmatpush.xpose.msra.mxu0 0.0
    %414 = vmatpush.xpose.msra.mxu0 0.0
    %415 = vmatpush.xpose.msra.mxu0 %v400
    %416 = vmatpush.xpose.msra.mxu0 %v398
    %417 = vmatpush.xpose.msra.mxu0 %v396
    %418 = vmatmul.f32.gmra.mxu0 %v390
    %v419 = vpop.f32.mrf.mxu0
    %v420 = vadd.f32 0.0, %v419
    %421 = vmatmul.f32.gmra.mxu0 %v392
    %v422 = vpop.f32.mrf.mxu0
    %v423 = vadd.f32 0.0, %v422
    %424 = vmatmul.f32.gmra.mxu0 %v394
    %v425 = vpop.f32.mrf.mxu0
    %v426 = vadd.f32 0.0, %v425
    %427 = vdwg.mxu0
    %v428 = vmul.f32 %v420, 0.35355338
    %v429 = vmul.f32 %v423, 0.35355338
    %v430 = vmul.f32 %v426, 0.35355338
    %v431 = vsel %vm158, %v428, -1e+30
    %v432 = vsel %vm158, %v429, -1e+30
    %v433 = vsel %vm158, %v430, -1e+30
    %vm434 = vcmask 195584
    %v435 = vsel %vm434, %v431, -inf
    %436 = vmax.xlane.f32.xlu0 %v435
    %v437 = vpop.xlane.xlu0 %436
    %v438 = vsel %vm434, %v432, -inf
    %439 = vmax.xlane.f32.xlu0 %v438
    %v440 = vpop.xlane.xlu0 %439
    %v441 = vsel %vm434, %v433, -inf
    %442 = vmax.xlane.f32.xlu0 %v441
    %v443 = vpop.xlane.xlu0 %442
    %v444 = vsub.f32 %v431, %v437
    %v445 = vsub.f32 %v432, %v440
    %v446 = vsub.f32 %v433, %v443
    %v447 = vmul.f32 %v444, 1.442695
    %v448 = vpow.pop %v447
    %v449 = vmul.f32 %v445, 1.442695
    %v450 = vpow.pop %v449
    %v451 = vmul.f32 %v446, 1.442695
    %v452 = vpow.pop %v451
    %v453 = vsel %vm434, %v448, 0.0
    %454 = vadd.xlane.f32.xlu0 %v453
    %v455 = vpop.xlane.xlu0 %454
    %v456 = vsel %vm434, %v450, 0.0
    %457 = vadd.xlane.f32.xlu0 %v456
    %v458 = vpop.xlane.xlu0 %457
    %v459 = vsel %vm434, %v452, 0.0
    %460 = vadd.xlane.f32.xlu0 %v459
    %v461 = vpop.xlane.xlu0 %460
    %v462 = vrcp.pop %v455
    %v463 = vrcp.pop %v458
    %v464 = vrcp.pop %v461
    %v465 = vmul.f32 %v448, %v462
    %v466 = vmul.f32 %v450, %v463
    %v467 = vmul.f32 %v452, %v464
    %468 = vrot.lane.b32.xlu0 %v363, 64
    %v469 = vpop.permute.xlu0 %468
    %470 = vrot.lane.b32.xlu0 %v366, 64
    %v471 = vpop.permute.xlu0 %470
    %472 = vrot.lane.b32.xlu0 %v369, 64
    %v473 = vpop.permute.xlu0 %472
    %v478 = vsel %vm434, %v465, 0
    %v481 = vsel %vm434, %v466, 0
    %v484 = vsel %vm434, %v467, 0
    %486 = vmatpush.msra.mxu0 0.0
    %487 = vmatpush.msra.mxu0 0.0
    %488 = vmatpush.msra.mxu0 0.0
    %489 = vmatpush.msra.mxu0 0.0
    %490 = vmatpush.msra.mxu0 0.0
    %491 = vmatpush.msra.mxu0 0.0
    %492 = vmatpush.msra.mxu0 0.0
    %493 = vmatpush.msra.mxu0 0.0
    %494 = vmatpush.msra.mxu0 0.0
    %495 = vmatpush.msra.mxu0 0.0
    %496 = vmatpush.msra.mxu0 0.0
    %497 = vmatpush.msra.mxu0 0.0
    %498 = vmatpush.msra.mxu0 0.0
    %499 = vmatpush.msra.mxu0 %v473
    %500 = vmatpush.msra.mxu0 %v471
    %501 = vmatpush.msra.mxu0 %v469
    %502 = vmatmul.f32.gmra.mxu0 %v478
    %v503 = vpop.f32.mrf.mxu0
    %v504 = vadd.f32 0.0, %v503
    %505 = vmatmul.f32.gmra.mxu0 %v481
    %v506 = vpop.f32.mrf.mxu0
    %v507 = vadd.f32 0.0, %v506
    %508 = vmatmul.f32.gmra.mxu0 %v484
    %v509 = vpop.f32.mrf.mxu0
    %v510 = vadd.f32 0.0, %v509
    %511 = vdwg.mxu0
    %512 = vrot.lane.b32.xlu0 %v363, 120
    %v513 = vpop.permute.xlu0 %512
    %514 = vrot.lane.b32.xlu0 %v366, 120
    %v515 = vpop.permute.xlu0 %514
    %516 = vrot.lane.b32.xlu0 %v369, 120
    %v517 = vpop.permute.xlu0 %516
    %518 = vrot.lane.b32.xlu0 %v363, 88
    %v519 = vpop.permute.xlu0 %518
    %520 = vrot.lane.b32.xlu0 %v366, 88
    %v521 = vpop.permute.xlu0 %520
    %522 = vrot.lane.b32.xlu0 %v369, 88
    %v523 = vpop.permute.xlu0 %522
    %v524 = vsel %vm389, %v513, 0
    %v526 = vsel %vm389, %v515, 0
    %v528 = vsel %vm389, %v517, 0
    %v530 = vsel %vm389, %v519, 0
    %v532 = vsel %vm389, %v521, 0
    %v534 = vsel %vm389, %v523, 0
    %536 = vmatpush.xpose.msra.mxu0 0.0
    %537 = vmatpush.xpose.msra.mxu0 0.0
    %538 = vmatpush.xpose.msra.mxu0 0.0
    %539 = vmatpush.xpose.msra.mxu0 0.0
    %540 = vmatpush.xpose.msra.mxu0 0.0
    %541 = vmatpush.xpose.msra.mxu0 0.0
    %542 = vmatpush.xpose.msra.mxu0 0.0
    %543 = vmatpush.xpose.msra.mxu0 0.0
    %544 = vmatpush.xpose.msra.mxu0 0.0
    %545 = vmatpush.xpose.msra.mxu0 0.0
    %546 = vmatpush.xpose.msra.mxu0 0.0
    %547 = vmatpush.xpose.msra.mxu0 0.0
    %548 = vmatpush.xpose.msra.mxu0 0.0
    %549 = vmatpush.xpose.msra.mxu0 %v534
    %550 = vmatpush.xpose.msra.mxu0 %v532
    %551 = vmatpush.xpose.msra.mxu0 %v530
    %552 = vmatmul.f32.gmra.mxu0 %v524
    %v553 = vpop.f32.mrf.mxu0
    %v554 = vadd.f32 0.0, %v553
    %555 = vmatmul.f32.gmra.mxu0 %v526
    %v556 = vpop.f32.mrf.mxu0
    %v557 = vadd.f32 0.0, %v556
    %558 = vmatmul.f32.gmra.mxu0 %v528
    %v559 = vpop.f32.mrf.mxu0
    %v560 = vadd.f32 0.0, %v559
    %561 = vdwg.mxu0
    %v562 = vmul.f32 %v554, 0.35355338
    %v563 = vmul.f32 %v557, 0.35355338
    %v564 = vmul.f32 %v560, 0.35355338
    %v565 = vsel %vm158, %v562, -1e+30
    %v566 = vsel %vm158, %v563, -1e+30
    %v567 = vsel %vm158, %v564, -1e+30
    %v568 = vsel %vm434, %v565, -inf
    %569 = vmax.xlane.f32.xlu0 %v568
    %v570 = vpop.xlane.xlu0 %569
    %v571 = vsel %vm434, %v566, -inf
    %572 = vmax.xlane.f32.xlu0 %v571
    %v573 = vpop.xlane.xlu0 %572
    %v574 = vsel %vm434, %v567, -inf
    %575 = vmax.xlane.f32.xlu0 %v574
    %v576 = vpop.xlane.xlu0 %575
    %v577 = vsub.f32 %v565, %v570
    %v578 = vsub.f32 %v566, %v573
    %v579 = vsub.f32 %v567, %v576
    %v580 = vmul.f32 %v577, 1.442695
    %v581 = vpow.pop %v580
    %v582 = vmul.f32 %v578, 1.442695
    %v583 = vpow.pop %v582
    %v584 = vmul.f32 %v579, 1.442695
    %v585 = vpow.pop %v584
    %v586 = vsel %vm434, %v581, 0.0
    %587 = vadd.xlane.f32.xlu0 %v586
    %v588 = vpop.xlane.xlu0 %587
    %v589 = vsel %vm434, %v583, 0.0
    %590 = vadd.xlane.f32.xlu0 %v589
    %v591 = vpop.xlane.xlu0 %590
    %v592 = vsel %vm434, %v585, 0.0
    %593 = vadd.xlane.f32.xlu0 %v592
    %v594 = vpop.xlane.xlu0 %593
    %v595 = vrcp.pop %v588
    %v596 = vrcp.pop %v591
    %v597 = vrcp.pop %v594
    %v598 = vmul.f32 %v581, %v595
    %v599 = vmul.f32 %v583, %v596
    %v600 = vmul.f32 %v585, %v597
    %601 = vrot.lane.b32.xlu0 %v363, 56
    %v602 = vpop.permute.xlu0 %601
    %603 = vrot.lane.b32.xlu0 %v366, 56
    %v604 = vpop.permute.xlu0 %603
    %605 = vrot.lane.b32.xlu0 %v369, 56
    %v606 = vpop.permute.xlu0 %605
    %v611 = vsel %vm434, %v598, 0
    %v614 = vsel %vm434, %v599, 0
    %v617 = vsel %vm434, %v600, 0
    %619 = vmatpush.msra.mxu0 0.0
    %620 = vmatpush.msra.mxu0 0.0
    %621 = vmatpush.msra.mxu0 0.0
    %622 = vmatpush.msra.mxu0 0.0
    %623 = vmatpush.msra.mxu0 0.0
    %624 = vmatpush.msra.mxu0 0.0
    %625 = vmatpush.msra.mxu0 0.0
    %626 = vmatpush.msra.mxu0 0.0
    %627 = vmatpush.msra.mxu0 0.0
    %628 = vmatpush.msra.mxu0 0.0
    %629 = vmatpush.msra.mxu0 0.0
    %630 = vmatpush.msra.mxu0 0.0
    %631 = vmatpush.msra.mxu0 0.0
    %632 = vmatpush.msra.mxu0 %v606
    %633 = vmatpush.msra.mxu0 %v604
    %634 = vmatpush.msra.mxu0 %v602
    %635 = vmatmul.f32.gmra.mxu0 %v611
    %v636 = vpop.f32.mrf.mxu0
    %v637 = vadd.f32 0.0, %v636
    %638 = vmatmul.f32.gmra.mxu0 %v614
    %v639 = vpop.f32.mrf.mxu0
    %v640 = vadd.f32 0.0, %v639
    %641 = vmatmul.f32.gmra.mxu0 %v617
    %v642 = vpop.f32.mrf.mxu0
    %v643 = vadd.f32 0.0, %v642
    %644 = vdwg.mxu0
    %645 = vrot.lane.b32.xlu0 %v363, 112
    %v646 = vpop.permute.xlu0 %645
    %647 = vrot.lane.b32.xlu0 %v366, 112
    %v648 = vpop.permute.xlu0 %647
    %649 = vrot.lane.b32.xlu0 %v369, 112
    %v650 = vpop.permute.xlu0 %649
    %651 = vrot.lane.b32.xlu0 %v363, 80
    %v652 = vpop.permute.xlu0 %651
    %653 = vrot.lane.b32.xlu0 %v366, 80
    %v654 = vpop.permute.xlu0 %653
    %655 = vrot.lane.b32.xlu0 %v369, 80
    %v656 = vpop.permute.xlu0 %655
    %v657 = vsel %vm389, %v646, 0
    %v659 = vsel %vm389, %v648, 0
    %v661 = vsel %vm389, %v650, 0
    %v663 = vsel %vm389, %v652, 0
    %v665 = vsel %vm389, %v654, 0
    %v667 = vsel %vm389, %v656, 0
    %669 = vmatpush.xpose.msra.mxu0 0.0
    %670 = vmatpush.xpose.msra.mxu0 0.0
    %671 = vmatpush.xpose.msra.mxu0 0.0
    %672 = vmatpush.xpose.msra.mxu0 0.0
    %673 = vmatpush.xpose.msra.mxu0 0.0
    %674 = vmatpush.xpose.msra.mxu0 0.0
    %675 = vmatpush.xpose.msra.mxu0 0.0
    %676 = vmatpush.xpose.msra.mxu0 0.0
    %677 = vmatpush.xpose.msra.mxu0 0.0
    %678 = vmatpush.xpose.msra.mxu0 0.0
    %679 = vmatpush.xpose.msra.mxu0 0.0
    %680 = vmatpush.xpose.msra.mxu0 0.0
    %681 = vmatpush.xpose.msra.mxu0 0.0
    %682 = vmatpush.xpose.msra.mxu0 %v667
    %683 = vmatpush.xpose.msra.mxu0 %v665
    %684 = vmatpush.xpose.msra.mxu0 %v663
    %685 = vmatmul.f32.gmra.mxu0 %v657
    %v686 = vpop.f32.mrf.mxu0
    %v687 = vadd.f32 0.0, %v686
    %688 = vmatmul.f32.gmra.mxu0 %v659
    %v689 = vpop.f32.mrf.mxu0
    %v690 = vadd.f32 0.0, %v689
    %691 = vmatmul.f32.gmra.mxu0 %v661
    %v692 = vpop.f32.mrf.mxu0
    %v693 = vadd.f32 0.0, %v692
    %694 = vdwg.mxu0
    %v695 = vmul.f32 %v687, 0.35355338
    %v696 = vmul.f32 %v690, 0.35355338
    %v697 = vmul.f32 %v693, 0.35355338
    %v698 = vsel %vm158, %v695, -1e+30
    %v699 = vsel %vm158, %v696, -1e+30
    %v700 = vsel %vm158, %v697, -1e+30
    %v701 = vsel %vm434, %v698, -inf
    %702 = vmax.xlane.f32.xlu0 %v701
    %v703 = vpop.xlane.xlu0 %702
    %v704 = vsel %vm434, %v699, -inf
    %705 = vmax.xlane.f32.xlu0 %v704
    %v706 = vpop.xlane.xlu0 %705
    %v707 = vsel %vm434, %v700, -inf
    %708 = vmax.xlane.f32.xlu0 %v707
    %v709 = vpop.xlane.xlu0 %708
    %v710 = vsub.f32 %v698, %v703
    %v711 = vsub.f32 %v699, %v706
    %v712 = vsub.f32 %v700, %v709
    %v713 = vmul.f32 %v710, 1.442695
    %v714 = vpow.pop %v713
    %v715 = vmul.f32 %v711, 1.442695
    %v716 = vpow.pop %v715
    %v717 = vmul.f32 %v712, 1.442695
    %v718 = vpow.pop %v717
    %v719 = vsel %vm434, %v714, 0.0
    %720 = vadd.xlane.f32.xlu0 %v719
    %v721 = vpop.xlane.xlu0 %720
    %v722 = vsel %vm434, %v716, 0.0
    %723 = vadd.xlane.f32.xlu0 %v722
    %v724 = vpop.xlane.xlu0 %723
    %v725 = vsel %vm434, %v718, 0.0
    %726 = vadd.xlane.f32.xlu0 %v725
    %v727 = vpop.xlane.xlu0 %726
    %v728 = vrcp.pop %v721
    %v729 = vrcp.pop %v724
    %v730 = vrcp.pop %v727
    %v731 = vmul.f32 %v714, %v728
    %v732 = vmul.f32 %v716, %v729
    %v733 = vmul.f32 %v718, %v730
    %734 = vrot.lane.b32.xlu0 %v363, 48
    %v735 = vpop.permute.xlu0 %734
    %736 = vrot.lane.b32.xlu0 %v366, 48
    %v737 = vpop.permute.xlu0 %736
    %738 = vrot.lane.b32.xlu0 %v369, 48
    %v739 = vpop.permute.xlu0 %738
    %v744 = vsel %vm434, %v731, 0
    %v747 = vsel %vm434, %v732, 0
    %v750 = vsel %vm434, %v733, 0
    %752 = vmatpush.msra.mxu0 0.0
    %753 = vmatpush.msra.mxu0 0.0
    %754 = vmatpush.msra.mxu0 0.0
    %755 = vmatpush.msra.mxu0 0.0
    %756 = vmatpush.msra.mxu0 0.0
    %757 = vmatpush.msra.mxu0 0.0
    %758 = vmatpush.msra.mxu0 0.0
    %759 = vmatpush.msra.mxu0 0.0
    %760 = vmatpush.msra.mxu0 0.0
    %761 = vmatpush.msra.mxu0 0.0
    %762 = vmatpush.msra.mxu0 0.0
    %763 = vmatpush.msra.mxu0 0.0
    %764 = vmatpush.msra.mxu0 0.0
    %765 = vmatpush.msra.mxu0 %v739
    %766 = vmatpush.msra.mxu0 %v737
    %767 = vmatpush.msra.mxu0 %v735
    %768 = vmatmul.f32.gmra.mxu0 %v744
    %v769 = vpop.f32.mrf.mxu0
    %v770 = vadd.f32 0.0, %v769
    %771 = vmatmul.f32.gmra.mxu0 %v747
    %v772 = vpop.f32.mrf.mxu0
    %v773 = vadd.f32 0.0, %v772
    %774 = vmatmul.f32.gmra.mxu0 %v750
    %v775 = vpop.f32.mrf.mxu0
    %v776 = vadd.f32 0.0, %v775
    %777 = vdwg.mxu0
    %778 = vrot.lane.b32.xlu0 %v363, 104
    %v779 = vpop.permute.xlu0 %778
    %780 = vrot.lane.b32.xlu0 %v366, 104
    %v781 = vpop.permute.xlu0 %780
    %782 = vrot.lane.b32.xlu0 %v369, 104
    %v783 = vpop.permute.xlu0 %782
    %784 = vrot.lane.b32.xlu0 %v363, 72
    %v785 = vpop.permute.xlu0 %784
    %786 = vrot.lane.b32.xlu0 %v366, 72
    %v787 = vpop.permute.xlu0 %786
    %788 = vrot.lane.b32.xlu0 %v369, 72
    %v789 = vpop.permute.xlu0 %788
    %v790 = vsel %vm389, %v779, 0
    %v792 = vsel %vm389, %v781, 0
    %v794 = vsel %vm389, %v783, 0
    %v796 = vsel %vm389, %v785, 0
    %v798 = vsel %vm389, %v787, 0
    %v800 = vsel %vm389, %v789, 0
    %802 = vmatpush.xpose.msra.mxu0 0.0
    %803 = vmatpush.xpose.msra.mxu0 0.0
    %804 = vmatpush.xpose.msra.mxu0 0.0
    %805 = vmatpush.xpose.msra.mxu0 0.0
    %806 = vmatpush.xpose.msra.mxu0 0.0
    %807 = vmatpush.xpose.msra.mxu0 0.0
    %808 = vmatpush.xpose.msra.mxu0 0.0
    %809 = vmatpush.xpose.msra.mxu0 0.0
    %810 = vmatpush.xpose.msra.mxu0 0.0
    %811 = vmatpush.xpose.msra.mxu0 0.0
    %812 = vmatpush.xpose.msra.mxu0 0.0
    %813 = vmatpush.xpose.msra.mxu0 0.0
    %814 = vmatpush.xpose.msra.mxu0 0.0
    %815 = vmatpush.xpose.msra.mxu0 %v800
    %816 = vmatpush.xpose.msra.mxu0 %v798
    %817 = vmatpush.xpose.msra.mxu0 %v796
    %818 = vmatmul.f32.gmra.mxu0 %v790
    %v819 = vpop.f32.mrf.mxu0
    %v820 = vadd.f32 0.0, %v819
    %821 = vmatmul.f32.gmra.mxu0 %v792
    %v822 = vpop.f32.mrf.mxu0
    %v823 = vadd.f32 0.0, %v822
    %824 = vmatmul.f32.gmra.mxu0 %v794
    %v825 = vpop.f32.mrf.mxu0
    %v826 = vadd.f32 0.0, %v825
    %827 = vdwg.mxu0
    %v828 = vmul.f32 %v820, 0.35355338
    %v829 = vmul.f32 %v823, 0.35355338
    %v830 = vmul.f32 %v826, 0.35355338
    %v831 = vsel %vm158, %v828, -1e+30
    %v832 = vsel %vm158, %v829, -1e+30
    %v833 = vsel %vm158, %v830, -1e+30
    %v834 = vsel %vm434, %v831, -inf
    %835 = vmax.xlane.f32.xlu0 %v834
    %v836 = vpop.xlane.xlu0 %835
    %v837 = vsel %vm434, %v832, -inf
    %838 = vmax.xlane.f32.xlu0 %v837
    %v839 = vpop.xlane.xlu0 %838
    %v840 = vsel %vm434, %v833, -inf
    %841 = vmax.xlane.f32.xlu0 %v840
    %v842 = vpop.xlane.xlu0 %841
    %v843 = vsub.f32 %v831, %v836
    %v844 = vsub.f32 %v832, %v839
    %v845 = vsub.f32 %v833, %v842
    %v846 = vmul.f32 %v843, 1.442695
    %v847 = vpow.pop %v846
    %v848 = vmul.f32 %v844, 1.442695
    %v849 = vpow.pop %v848
    %v850 = vmul.f32 %v845, 1.442695
    %v851 = vpow.pop %v850
    %v852 = vsel %vm434, %v847, 0.0
    %853 = vadd.xlane.f32.xlu0 %v852
    %v854 = vpop.xlane.xlu0 %853
    %v855 = vsel %vm434, %v849, 0.0
    %856 = vadd.xlane.f32.xlu0 %v855
    %v857 = vpop.xlane.xlu0 %856
    %v858 = vsel %vm434, %v851, 0.0
    %859 = vadd.xlane.f32.xlu0 %v858
    %v860 = vpop.xlane.xlu0 %859
    %v861 = vrcp.pop %v854
    %v862 = vrcp.pop %v857
    %v863 = vrcp.pop %v860
    %v864 = vmul.f32 %v847, %v861
    %v865 = vmul.f32 %v849, %v862
    %v866 = vmul.f32 %v851, %v863
    %867 = vrot.lane.b32.xlu0 %v363, 40
    %v868 = vpop.permute.xlu0 %867
    %869 = vrot.lane.b32.xlu0 %v366, 40
    %v870 = vpop.permute.xlu0 %869
    %871 = vrot.lane.b32.xlu0 %v369, 40
    %v872 = vpop.permute.xlu0 %871
    %v877 = vsel %vm434, %v864, 0
    %v880 = vsel %vm434, %v865, 0
    %v883 = vsel %vm434, %v866, 0
    %885 = vmatpush.msra.mxu0 0.0
    %886 = vmatpush.msra.mxu0 0.0
    %887 = vmatpush.msra.mxu0 0.0
    %888 = vmatpush.msra.mxu0 0.0
    %889 = vmatpush.msra.mxu0 0.0
    %890 = vmatpush.msra.mxu0 0.0
    %891 = vmatpush.msra.mxu0 0.0
    %892 = vmatpush.msra.mxu0 0.0
    %893 = vmatpush.msra.mxu0 0.0
    %894 = vmatpush.msra.mxu0 0.0
    %895 = vmatpush.msra.mxu0 0.0
    %896 = vmatpush.msra.mxu0 0.0
    %897 = vmatpush.msra.mxu0 0.0
    %898 = vmatpush.msra.mxu0 %v872
    %899 = vmatpush.msra.mxu0 %v870
    %900 = vmatpush.msra.mxu0 %v868
    %901 = vmatmul.f32.gmra.mxu0 %v877
    %v902 = vpop.f32.mrf.mxu0
    %v903 = vadd.f32 0.0, %v902
    %904 = vmatmul.f32.gmra.mxu0 %v880
    %v905 = vpop.f32.mrf.mxu0
    %v906 = vadd.f32 0.0, %v905
    %907 = vmatmul.f32.gmra.mxu0 %v883
    %v908 = vpop.f32.mrf.mxu0
    %v909 = vadd.f32 0.0, %v908
    %910 = vdwg.mxu0
    %914 = vrot.lane.b32.xlu0 %v637, 8
    %v915 = vpop.permute.xlu0 %914
    %916 = vrot.lane.b32.xlu0 %v640, 8
    %v917 = vpop.permute.xlu0 %916
    %918 = vrot.lane.b32.xlu0 %v643, 8
    %v919 = vpop.permute.xlu0 %918
    %926 = vrot.lane.b32.xlu0 %v770, 16
    %v927 = vpop.permute.xlu0 %926
    %928 = vrot.lane.b32.xlu0 %v773, 16
    %v929 = vpop.permute.xlu0 %928
    %930 = vrot.lane.b32.xlu0 %v776, 16
    %v931 = vpop.permute.xlu0 %930
    %938 = vrot.lane.b32.xlu0 %v903, 24
    %v939 = vpop.permute.xlu0 %938
    %940 = vrot.lane.b32.xlu0 %v906, 24
    %v941 = vpop.permute.xlu0 %940
    %942 = vrot.lane.b32.xlu0 %v909, 24
    %v943 = vpop.permute.xlu0 %942
    %v947 = vsel %vm389, %v504, %v915
    %v948 = vsel %vm389, %v507, %v917
    %v949 = vsel %vm389, %v510, %v919
    %vm950 = vcmask 130048
    %v951 = vsel %vm950, %v947, %v927
    %v952 = vsel %vm950, %v948, %v929
    %v953 = vsel %vm950, %v949, %v931
    %v954 = vsel %vm434, %v951, %v939
    %v955 = vsel %vm434, %v952, %v941
    %v956 = vsel %vm434, %v953, %v943
    %960 = vrot.lane.b32.xlu0 %v372, 96
    %v961 = vpop.permute.xlu0 %960
    %962 = vrot.lane.b32.xlu0 %v375, 96
    %v963 = vpop.permute.xlu0 %962
    %964 = vrot.lane.b32.xlu0 %v378, 96
    %v965 = vpop.permute.xlu0 %964
    %v966 = vsel %vm389, %v372, 0
    %v968 = vsel %vm389, %v375, 0
    %v970 = vsel %vm389, %v378, 0
    %v972 = vsel %vm389, %v961, 0
    %v974 = vsel %vm389, %v963, 0
    %v976 = vsel %vm389, %v965, 0
    %978 = vmatpush.xpose.msra.mxu0 0.0
    %979 = vmatpush.xpose.msra.mxu0 0.0
    %980 = vmatpush.xpose.msra.mxu0 0.0
    %981 = vmatpush.xpose.msra.mxu0 0.0
    %982 = vmatpush.xpose.msra.mxu0 0.0
    %983 = vmatpush.xpose.msra.mxu0 0.0
    %984 = vmatpush.xpose.msra.mxu0 0.0
    %985 = vmatpush.xpose.msra.mxu0 0.0
    %986 = vmatpush.xpose.msra.mxu0 0.0
    %987 = vmatpush.xpose.msra.mxu0 0.0
    %988 = vmatpush.xpose.msra.mxu0 0.0
    %989 = vmatpush.xpose.msra.mxu0 0.0
    %990 = vmatpush.xpose.msra.mxu0 0.0
    %991 = vmatpush.xpose.msra.mxu0 %v976
    %992 = vmatpush.xpose.msra.mxu0 %v974
    %993 = vmatpush.xpose.msra.mxu0 %v972
    %994 = vmatmul.f32.gmra.mxu0 %v966
    %v995 = vpop.f32.mrf.mxu0
    %v996 = vadd.f32 0.0, %v995
    %997 = vmatmul.f32.gmra.mxu0 %v968
    %v998 = vpop.f32.mrf.mxu0
    %v999 = vadd.f32 0.0, %v998
    %1000 = vmatmul.f32.gmra.mxu0 %v970
    %v1001 = vpop.f32.mrf.mxu0
    %v1002 = vadd.f32 0.0, %v1001
    %1003 = vdwg.mxu0
    %v1004 = vmul.f32 %v996, 0.35355338
    %v1005 = vmul.f32 %v999, 0.35355338
    %v1006 = vmul.f32 %v1002, 0.35355338
    %v1007 = vsel %vm158, %v1004, -1e+30
    %v1008 = vsel %vm158, %v1005, -1e+30
    %v1009 = vsel %vm158, %v1006, -1e+30
    %v1010 = vsel %vm434, %v1007, -inf
    %1011 = vmax.xlane.f32.xlu0 %v1010
    %v1012 = vpop.xlane.xlu0 %1011
    %v1013 = vsel %vm434, %v1008, -inf
    %1014 = vmax.xlane.f32.xlu0 %v1013
    %v1015 = vpop.xlane.xlu0 %1014
    %v1016 = vsel %vm434, %v1009, -inf
    %1017 = vmax.xlane.f32.xlu0 %v1016
    %v1018 = vpop.xlane.xlu0 %1017
    %v1019 = vsub.f32 %v1007, %v1012
    %v1020 = vsub.f32 %v1008, %v1015
    %v1021 = vsub.f32 %v1009, %v1018
    %v1022 = vmul.f32 %v1019, 1.442695
    %v1023 = vpow.pop %v1022
    %v1024 = vmul.f32 %v1020, 1.442695
    %v1025 = vpow.pop %v1024
    %v1026 = vmul.f32 %v1021, 1.442695
    %v1027 = vpow.pop %v1026
    %v1028 = vsel %vm434, %v1023, 0.0
    %1029 = vadd.xlane.f32.xlu0 %v1028
    %v1030 = vpop.xlane.xlu0 %1029
    %v1031 = vsel %vm434, %v1025, 0.0
    %1032 = vadd.xlane.f32.xlu0 %v1031
    %v1033 = vpop.xlane.xlu0 %1032
    %v1034 = vsel %vm434, %v1027, 0.0
    %1035 = vadd.xlane.f32.xlu0 %v1034
    %v1036 = vpop.xlane.xlu0 %1035
    %v1037 = vrcp.pop %v1030
    %v1038 = vrcp.pop %v1033
    %v1039 = vrcp.pop %v1036
    %v1040 = vmul.f32 %v1023, %v1037
    %v1041 = vmul.f32 %v1025, %v1038
    %v1042 = vmul.f32 %v1027, %v1039
    %1043 = vrot.lane.b32.xlu0 %v372, 64
    %v1044 = vpop.permute.xlu0 %1043
    %1045 = vrot.lane.b32.xlu0 %v375, 64
    %v1046 = vpop.permute.xlu0 %1045
    %1047 = vrot.lane.b32.xlu0 %v378, 64
    %v1048 = vpop.permute.xlu0 %1047
    %v1053 = vsel %vm434, %v1040, 0
    %v1056 = vsel %vm434, %v1041, 0
    %v1059 = vsel %vm434, %v1042, 0
    %1061 = vmatpush.msra.mxu0 0.0
    %1062 = vmatpush.msra.mxu0 0.0
    %1063 = vmatpush.msra.mxu0 0.0
    %1064 = vmatpush.msra.mxu0 0.0
    %1065 = vmatpush.msra.mxu0 0.0
    %1066 = vmatpush.msra.mxu0 0.0
    %1067 = vmatpush.msra.mxu0 0.0
    %1068 = vmatpush.msra.mxu0 0.0
    %1069 = vmatpush.msra.mxu0 0.0
    %1070 = vmatpush.msra.mxu0 0.0
    %1071 = vmatpush.msra.mxu0 0.0
    %1072 = vmatpush.msra.mxu0 0.0
    %1073 = vmatpush.msra.mxu0 0.0
    %1074 = vmatpush.msra.mxu0 %v1048
    %1075 = vmatpush.msra.mxu0 %v1046
    %1076 = vmatpush.msra.mxu0 %v1044
    %1077 = vmatmul.f32.gmra.mxu0 %v1053
    %v1078 = vpop.f32.mrf.mxu0
    %v1079 = vadd.f32 0.0, %v1078
    %1080 = vmatmul.f32.gmra.mxu0 %v1056
    %v1081 = vpop.f32.mrf.mxu0
    %v1082 = vadd.f32 0.0, %v1081
    %1083 = vmatmul.f32.gmra.mxu0 %v1059
    %v1084 = vpop.f32.mrf.mxu0
    %v1085 = vadd.f32 0.0, %v1084
    %1086 = vdwg.mxu0
    %1087 = vrot.lane.b32.xlu0 %v372, 120
    %v1088 = vpop.permute.xlu0 %1087
    %1089 = vrot.lane.b32.xlu0 %v375, 120
    %v1090 = vpop.permute.xlu0 %1089
    %1091 = vrot.lane.b32.xlu0 %v378, 120
    %v1092 = vpop.permute.xlu0 %1091
    %1093 = vrot.lane.b32.xlu0 %v372, 88
    %v1094 = vpop.permute.xlu0 %1093
    %1095 = vrot.lane.b32.xlu0 %v375, 88
    %v1096 = vpop.permute.xlu0 %1095
    %1097 = vrot.lane.b32.xlu0 %v378, 88
    %v1098 = vpop.permute.xlu0 %1097
    %v1099 = vsel %vm389, %v1088, 0
    %v1101 = vsel %vm389, %v1090, 0
    %v1103 = vsel %vm389, %v1092, 0
    %v1105 = vsel %vm389, %v1094, 0
    %v1107 = vsel %vm389, %v1096, 0
    %v1109 = vsel %vm389, %v1098, 0
    %1111 = vmatpush.xpose.msra.mxu0 0.0
    %1112 = vmatpush.xpose.msra.mxu0 0.0
    %1113 = vmatpush.xpose.msra.mxu0 0.0
    %1114 = vmatpush.xpose.msra.mxu0 0.0
    %1115 = vmatpush.xpose.msra.mxu0 0.0
    %1116 = vmatpush.xpose.msra.mxu0 0.0
    %1117 = vmatpush.xpose.msra.mxu0 0.0
    %1118 = vmatpush.xpose.msra.mxu0 0.0
    %1119 = vmatpush.xpose.msra.mxu0 0.0
    %1120 = vmatpush.xpose.msra.mxu0 0.0
    %1121 = vmatpush.xpose.msra.mxu0 0.0
    %1122 = vmatpush.xpose.msra.mxu0 0.0
    %1123 = vmatpush.xpose.msra.mxu0 0.0
    %1124 = vmatpush.xpose.msra.mxu0 %v1109
    %1125 = vmatpush.xpose.msra.mxu0 %v1107
    %1126 = vmatpush.xpose.msra.mxu0 %v1105
    %1127 = vmatmul.f32.gmra.mxu0 %v1099
    %v1128 = vpop.f32.mrf.mxu0
    %v1129 = vadd.f32 0.0, %v1128
    %1130 = vmatmul.f32.gmra.mxu0 %v1101
    %v1131 = vpop.f32.mrf.mxu0
    %v1132 = vadd.f32 0.0, %v1131
    %1133 = vmatmul.f32.gmra.mxu0 %v1103
    %v1134 = vpop.f32.mrf.mxu0
    %v1135 = vadd.f32 0.0, %v1134
    %1136 = vdwg.mxu0
    %v1137 = vmul.f32 %v1129, 0.35355338
    %v1138 = vmul.f32 %v1132, 0.35355338
    %v1139 = vmul.f32 %v1135, 0.35355338
    %v1140 = vsel %vm158, %v1137, -1e+30
    %v1141 = vsel %vm158, %v1138, -1e+30
    %v1142 = vsel %vm158, %v1139, -1e+30
    %v1143 = vsel %vm434, %v1140, -inf
    %1144 = vmax.xlane.f32.xlu0 %v1143
    %v1145 = vpop.xlane.xlu0 %1144
    %v1146 = vsel %vm434, %v1141, -inf
    %1147 = vmax.xlane.f32.xlu0 %v1146
    %v1148 = vpop.xlane.xlu0 %1147
    %v1149 = vsel %vm434, %v1142, -inf
    %1150 = vmax.xlane.f32.xlu0 %v1149
    %v1151 = vpop.xlane.xlu0 %1150
    %v1152 = vsub.f32 %v1140, %v1145
    %v1153 = vsub.f32 %v1141, %v1148
    %v1154 = vsub.f32 %v1142, %v1151
    %v1155 = vmul.f32 %v1152, 1.442695
    %v1156 = vpow.pop %v1155
    %v1157 = vmul.f32 %v1153, 1.442695
    %v1158 = vpow.pop %v1157
    %v1159 = vmul.f32 %v1154, 1.442695
    %v1160 = vpow.pop %v1159
    %v1161 = vsel %vm434, %v1156, 0.0
    %1162 = vadd.xlane.f32.xlu0 %v1161
    %v1163 = vpop.xlane.xlu0 %1162
    %v1164 = vsel %vm434, %v1158, 0.0
    %1165 = vadd.xlane.f32.xlu0 %v1164
    %v1166 = vpop.xlane.xlu0 %1165
    %v1167 = vsel %vm434, %v1160, 0.0
    %1168 = vadd.xlane.f32.xlu0 %v1167
    %v1169 = vpop.xlane.xlu0 %1168
    %v1170 = vrcp.pop %v1163
    %v1171 = vrcp.pop %v1166
    %v1172 = vrcp.pop %v1169
    %v1173 = vmul.f32 %v1156, %v1170
    %v1174 = vmul.f32 %v1158, %v1171
    %v1175 = vmul.f32 %v1160, %v1172
    %1176 = vrot.lane.b32.xlu0 %v372, 56
    %v1177 = vpop.permute.xlu0 %1176
    %1178 = vrot.lane.b32.xlu0 %v375, 56
    %v1179 = vpop.permute.xlu0 %1178
    %1180 = vrot.lane.b32.xlu0 %v378, 56
    %v1181 = vpop.permute.xlu0 %1180
    %v1186 = vsel %vm434, %v1173, 0
    %v1189 = vsel %vm434, %v1174, 0
    %v1192 = vsel %vm434, %v1175, 0
    %1194 = vmatpush.msra.mxu0 0.0
    %1195 = vmatpush.msra.mxu0 0.0
    %1196 = vmatpush.msra.mxu0 0.0
    %1197 = vmatpush.msra.mxu0 0.0
    %1198 = vmatpush.msra.mxu0 0.0
    %1199 = vmatpush.msra.mxu0 0.0
    %1200 = vmatpush.msra.mxu0 0.0
    %1201 = vmatpush.msra.mxu0 0.0
    %1202 = vmatpush.msra.mxu0 0.0
    %1203 = vmatpush.msra.mxu0 0.0
    %1204 = vmatpush.msra.mxu0 0.0
    %1205 = vmatpush.msra.mxu0 0.0
    %1206 = vmatpush.msra.mxu0 0.0
    %1207 = vmatpush.msra.mxu0 %v1181
    %1208 = vmatpush.msra.mxu0 %v1179
    %1209 = vmatpush.msra.mxu0 %v1177
    %1210 = vmatmul.f32.gmra.mxu0 %v1186
    %v1211 = vpop.f32.mrf.mxu0
    %v1212 = vadd.f32 0.0, %v1211
    %1213 = vmatmul.f32.gmra.mxu0 %v1189
    %v1214 = vpop.f32.mrf.mxu0
    %v1215 = vadd.f32 0.0, %v1214
    %1216 = vmatmul.f32.gmra.mxu0 %v1192
    %v1217 = vpop.f32.mrf.mxu0
    %v1218 = vadd.f32 0.0, %v1217
    %1219 = vdwg.mxu0
    %1220 = vrot.lane.b32.xlu0 %v372, 112
    %v1221 = vpop.permute.xlu0 %1220
    %1222 = vrot.lane.b32.xlu0 %v375, 112
    %v1223 = vpop.permute.xlu0 %1222
    %1224 = vrot.lane.b32.xlu0 %v378, 112
    %v1225 = vpop.permute.xlu0 %1224
    %1226 = vrot.lane.b32.xlu0 %v372, 80
    %v1227 = vpop.permute.xlu0 %1226
    %1228 = vrot.lane.b32.xlu0 %v375, 80
    %v1229 = vpop.permute.xlu0 %1228
    %1230 = vrot.lane.b32.xlu0 %v378, 80
    %v1231 = vpop.permute.xlu0 %1230
    %v1232 = vsel %vm389, %v1221, 0
    %v1234 = vsel %vm389, %v1223, 0
    %v1236 = vsel %vm389, %v1225, 0
    %v1238 = vsel %vm389, %v1227, 0
    %v1240 = vsel %vm389, %v1229, 0
    %v1242 = vsel %vm389, %v1231, 0
    %1244 = vmatpush.xpose.msra.mxu0 0.0
    %1245 = vmatpush.xpose.msra.mxu0 0.0
    %1246 = vmatpush.xpose.msra.mxu0 0.0
    %1247 = vmatpush.xpose.msra.mxu0 0.0
    %1248 = vmatpush.xpose.msra.mxu0 0.0
    %1249 = vmatpush.xpose.msra.mxu0 0.0
    %1250 = vmatpush.xpose.msra.mxu0 0.0
    %1251 = vmatpush.xpose.msra.mxu0 0.0
    %1252 = vmatpush.xpose.msra.mxu0 0.0
    %1253 = vmatpush.xpose.msra.mxu0 0.0
    %1254 = vmatpush.xpose.msra.mxu0 0.0
    %1255 = vmatpush.xpose.msra.mxu0 0.0
    %1256 = vmatpush.xpose.msra.mxu0 0.0
    %1257 = vmatpush.xpose.msra.mxu0 %v1242
    %1258 = vmatpush.xpose.msra.mxu0 %v1240
    %1259 = vmatpush.xpose.msra.mxu0 %v1238
    %1260 = vmatmul.f32.gmra.mxu0 %v1232
    %v1261 = vpop.f32.mrf.mxu0
    %v1262 = vadd.f32 0.0, %v1261
    %1263 = vmatmul.f32.gmra.mxu0 %v1234
    %v1264 = vpop.f32.mrf.mxu0
    %v1265 = vadd.f32 0.0, %v1264
    %1266 = vmatmul.f32.gmra.mxu0 %v1236
    %v1267 = vpop.f32.mrf.mxu0
    %v1268 = vadd.f32 0.0, %v1267
    %1269 = vdwg.mxu0
    %v1270 = vmul.f32 %v1262, 0.35355338
    %v1271 = vmul.f32 %v1265, 0.35355338
    %v1272 = vmul.f32 %v1268, 0.35355338
    %v1273 = vsel %vm158, %v1270, -1e+30
    %v1274 = vsel %vm158, %v1271, -1e+30
    %v1275 = vsel %vm158, %v1272, -1e+30
    %v1276 = vsel %vm434, %v1273, -inf
    %1277 = vmax.xlane.f32.xlu0 %v1276
    %v1278 = vpop.xlane.xlu0 %1277
    %v1279 = vsel %vm434, %v1274, -inf
    %1280 = vmax.xlane.f32.xlu0 %v1279
    %v1281 = vpop.xlane.xlu0 %1280
    %v1282 = vsel %vm434, %v1275, -inf
    %1283 = vmax.xlane.f32.xlu0 %v1282
    %v1284 = vpop.xlane.xlu0 %1283
    %v1285 = vsub.f32 %v1273, %v1278
    %v1286 = vsub.f32 %v1274, %v1281
    %v1287 = vsub.f32 %v1275, %v1284
    %v1288 = vmul.f32 %v1285, 1.442695
    %v1289 = vpow.pop %v1288
    %v1290 = vmul.f32 %v1286, 1.442695
    %v1291 = vpow.pop %v1290
    %v1292 = vmul.f32 %v1287, 1.442695
    %v1293 = vpow.pop %v1292
    %v1294 = vsel %vm434, %v1289, 0.0
    %1295 = vadd.xlane.f32.xlu0 %v1294
    %v1296 = vpop.xlane.xlu0 %1295
    %v1297 = vsel %vm434, %v1291, 0.0
    %1298 = vadd.xlane.f32.xlu0 %v1297
    %v1299 = vpop.xlane.xlu0 %1298
    %v1300 = vsel %vm434, %v1293, 0.0
    %1301 = vadd.xlane.f32.xlu0 %v1300
    %v1302 = vpop.xlane.xlu0 %1301
    %v1303 = vrcp.pop %v1296
    %v1304 = vrcp.pop %v1299
    %v1305 = vrcp.pop %v1302
    %v1306 = vmul.f32 %v1289, %v1303
    %v1307 = vmul.f32 %v1291, %v1304
    %v1308 = vmul.f32 %v1293, %v1305
    %1309 = vrot.lane.b32.xlu0 %v372, 48
    %v1310 = vpop.permute.xlu0 %1309
    %1311 = vrot.lane.b32.xlu0 %v375, 48
    %v1312 = vpop.permute.xlu0 %1311
    %1313 = vrot.lane.b32.xlu0 %v378, 48
    %v1314 = vpop.permute.xlu0 %1313
    %v1319 = vsel %vm434, %v1306, 0
    %v1322 = vsel %vm434, %v1307, 0
    %v1325 = vsel %vm434, %v1308, 0
    %1327 = vmatpush.msra.mxu0 0.0
    %1328 = vmatpush.msra.mxu0 0.0
    %1329 = vmatpush.msra.mxu0 0.0
    %1330 = vmatpush.msra.mxu0 0.0
    %1331 = vmatpush.msra.mxu0 0.0
    %1332 = vmatpush.msra.mxu0 0.0
    %1333 = vmatpush.msra.mxu0 0.0
    %1334 = vmatpush.msra.mxu0 0.0
    %1335 = vmatpush.msra.mxu0 0.0
    %1336 = vmatpush.msra.mxu0 0.0
    %1337 = vmatpush.msra.mxu0 0.0
    %1338 = vmatpush.msra.mxu0 0.0
    %1339 = vmatpush.msra.mxu0 0.0
    %1340 = vmatpush.msra.mxu0 %v1314
    %1341 = vmatpush.msra.mxu0 %v1312
    %1342 = vmatpush.msra.mxu0 %v1310
    %1343 = vmatmul.f32.gmra.mxu0 %v1319
    %v1344 = vpop.f32.mrf.mxu0
    %v1345 = vadd.f32 0.0, %v1344
    %1346 = vmatmul.f32.gmra.mxu0 %v1322
    %v1347 = vpop.f32.mrf.mxu0
    %v1348 = vadd.f32 0.0, %v1347
    %1349 = vmatmul.f32.gmra.mxu0 %v1325
    %v1350 = vpop.f32.mrf.mxu0
    %v1351 = vadd.f32 0.0, %v1350
    %1352 = vdwg.mxu0
    %1353 = vrot.lane.b32.xlu0 %v372, 104
    %v1354 = vpop.permute.xlu0 %1353
    %1355 = vrot.lane.b32.xlu0 %v375, 104
    %v1356 = vpop.permute.xlu0 %1355
    %1357 = vrot.lane.b32.xlu0 %v378, 104
    %v1358 = vpop.permute.xlu0 %1357
    %1359 = vrot.lane.b32.xlu0 %v372, 72
    %v1360 = vpop.permute.xlu0 %1359
    %1361 = vrot.lane.b32.xlu0 %v375, 72
    %v1362 = vpop.permute.xlu0 %1361
    %1363 = vrot.lane.b32.xlu0 %v378, 72
    %v1364 = vpop.permute.xlu0 %1363
    %v1365 = vsel %vm389, %v1354, 0
    %v1367 = vsel %vm389, %v1356, 0
    %v1369 = vsel %vm389, %v1358, 0
    %v1371 = vsel %vm389, %v1360, 0
    %v1373 = vsel %vm389, %v1362, 0
    %v1375 = vsel %vm389, %v1364, 0
    %1377 = vmatpush.xpose.msra.mxu0 0.0
    %1378 = vmatpush.xpose.msra.mxu0 0.0
    %1379 = vmatpush.xpose.msra.mxu0 0.0
    %1380 = vmatpush.xpose.msra.mxu0 0.0
    %1381 = vmatpush.xpose.msra.mxu0 0.0
    %1382 = vmatpush.xpose.msra.mxu0 0.0
    %1383 = vmatpush.xpose.msra.mxu0 0.0
    %1384 = vmatpush.xpose.msra.mxu0 0.0
    %1385 = vmatpush.xpose.msra.mxu0 0.0
    %1386 = vmatpush.xpose.msra.mxu0 0.0
    %1387 = vmatpush.xpose.msra.mxu0 0.0
    %1388 = vmatpush.xpose.msra.mxu0 0.0
    %1389 = vmatpush.xpose.msra.mxu0 0.0
    %1390 = vmatpush.xpose.msra.mxu0 %v1375
    %1391 = vmatpush.xpose.msra.mxu0 %v1373
    %1392 = vmatpush.xpose.msra.mxu0 %v1371
    %1393 = vmatmul.f32.gmra.mxu0 %v1365
    %v1394 = vpop.f32.mrf.mxu0
    %v1395 = vadd.f32 0.0, %v1394
    %1396 = vmatmul.f32.gmra.mxu0 %v1367
    %v1397 = vpop.f32.mrf.mxu0
    %v1398 = vadd.f32 0.0, %v1397
    %1399 = vmatmul.f32.gmra.mxu0 %v1369
    %v1400 = vpop.f32.mrf.mxu0
    %v1401 = vadd.f32 0.0, %v1400
    %1402 = vdwg.mxu0
    %v1403 = vmul.f32 %v1395, 0.35355338
    %v1404 = vmul.f32 %v1398, 0.35355338
    %v1405 = vmul.f32 %v1401, 0.35355338
    %v1406 = vsel %vm158, %v1403, -1e+30
    %v1407 = vsel %vm158, %v1404, -1e+30
    %v1408 = vsel %vm158, %v1405, -1e+30
    %v1409 = vsel %vm434, %v1406, -inf
    %1410 = vmax.xlane.f32.xlu0 %v1409
    %v1411 = vpop.xlane.xlu0 %1410
    %v1412 = vsel %vm434, %v1407, -inf
    %1413 = vmax.xlane.f32.xlu0 %v1412
    %v1414 = vpop.xlane.xlu0 %1413
    %v1415 = vsel %vm434, %v1408, -inf
    %1416 = vmax.xlane.f32.xlu0 %v1415
    %v1417 = vpop.xlane.xlu0 %1416
    %v1418 = vsub.f32 %v1406, %v1411
    %v1419 = vsub.f32 %v1407, %v1414
    %v1420 = vsub.f32 %v1408, %v1417
    %v1421 = vmul.f32 %v1418, 1.442695
    %v1422 = vpow.pop %v1421
    %v1423 = vmul.f32 %v1419, 1.442695
    %v1424 = vpow.pop %v1423
    %v1425 = vmul.f32 %v1420, 1.442695
    %v1426 = vpow.pop %v1425
    %v1427 = vsel %vm434, %v1422, 0.0
    %1428 = vadd.xlane.f32.xlu0 %v1427
    %v1429 = vpop.xlane.xlu0 %1428
    %v1430 = vsel %vm434, %v1424, 0.0
    %1431 = vadd.xlane.f32.xlu0 %v1430
    %v1432 = vpop.xlane.xlu0 %1431
    %v1433 = vsel %vm434, %v1426, 0.0
    %1434 = vadd.xlane.f32.xlu0 %v1433
    %v1435 = vpop.xlane.xlu0 %1434
    %v1436 = vrcp.pop %v1429
    %v1437 = vrcp.pop %v1432
    %v1438 = vrcp.pop %v1435
    %v1439 = vmul.f32 %v1422, %v1436
    %v1440 = vmul.f32 %v1424, %v1437
    %v1441 = vmul.f32 %v1426, %v1438
    %1442 = vrot.lane.b32.xlu0 %v372, 40
    %v1443 = vpop.permute.xlu0 %1442
    %1444 = vrot.lane.b32.xlu0 %v375, 40
    %v1445 = vpop.permute.xlu0 %1444
    %1446 = vrot.lane.b32.xlu0 %v378, 40
    %v1447 = vpop.permute.xlu0 %1446
    %v1452 = vsel %vm434, %v1439, 0
    %v1455 = vsel %vm434, %v1440, 0
    %v1458 = vsel %vm434, %v1441, 0
    %1460 = vmatpush.msra.mxu0 0.0
    %1461 = vmatpush.msra.mxu0 0.0
    %1462 = vmatpush.msra.mxu0 0.0
    %1463 = vmatpush.msra.mxu0 0.0
    %1464 = vmatpush.msra.mxu0 0.0
    %1465 = vmatpush.msra.mxu0 0.0
    %1466 = vmatpush.msra.mxu0 0.0
    %1467 = vmatpush.msra.mxu0 0.0
    %1468 = vmatpush.msra.mxu0 0.0
    %1469 = vmatpush.msra.mxu0 0.0
    %1470 = vmatpush.msra.mxu0 0.0
    %1471 = vmatpush.msra.mxu0 0.0
    %1472 = vmatpush.msra.mxu0 0.0
    %1473 = vmatpush.msra.mxu0 %v1447
    %1474 = vmatpush.msra.mxu0 %v1445
    %1475 = vmatpush.msra.mxu0 %v1443
    %1476 = vmatmul.f32.gmra.mxu0 %v1452
    %v1477 = vpop.f32.mrf.mxu0
    %v1478 = vadd.f32 0.0, %v1477
    %1479 = vmatmul.f32.gmra.mxu0 %v1455
    %v1480 = vpop.f32.mrf.mxu0
    %v1481 = vadd.f32 0.0, %v1480
    %1482 = vmatmul.f32.gmra.mxu0 %v1458
    %v1483 = vpop.f32.mrf.mxu0
    %v1484 = vadd.f32 0.0, %v1483
    %1485 = vdwg.mxu0
    %1489 = vrot.lane.b32.xlu0 %v1212, 8
    %v1490 = vpop.permute.xlu0 %1489
    %1491 = vrot.lane.b32.xlu0 %v1215, 8
    %v1492 = vpop.permute.xlu0 %1491
    %1493 = vrot.lane.b32.xlu0 %v1218, 8
    %v1494 = vpop.permute.xlu0 %1493
    %1501 = vrot.lane.b32.xlu0 %v1345, 16
    %v1502 = vpop.permute.xlu0 %1501
    %1503 = vrot.lane.b32.xlu0 %v1348, 16
    %v1504 = vpop.permute.xlu0 %1503
    %1505 = vrot.lane.b32.xlu0 %v1351, 16
    %v1506 = vpop.permute.xlu0 %1505
    %1513 = vrot.lane.b32.xlu0 %v1478, 24
    %v1514 = vpop.permute.xlu0 %1513
    %1515 = vrot.lane.b32.xlu0 %v1481, 24
    %v1516 = vpop.permute.xlu0 %1515
    %1517 = vrot.lane.b32.xlu0 %v1484, 24
    %v1518 = vpop.permute.xlu0 %1517
    %v1522 = vsel %vm389, %v1079, %v1490
    %v1523 = vsel %vm389, %v1082, %v1492
    %v1524 = vsel %vm389, %v1085, %v1494
    %v1525 = vsel %vm950, %v1522, %v1502
    %v1526 = vsel %vm950, %v1523, %v1504
    %v1527 = vsel %vm950, %v1524, %v1506
    %v1528 = vsel %vm434, %v1525, %v1514
    %v1529 = vsel %vm434, %v1526, %v1516
    %v1530 = vsel %vm434, %v1527, %v1518
    %v1531 = vld [vmem:[%s9] sm:$0xff]
    %v1532 = vld [vmem:[%s9 + $0x8] sm:$0xff]
    %v1533 = vld [vmem:[%s9 + $0x10] sm:$0xff]
    %v1534 = vld [vmem:[%s9 + $0x18] sm:$0xff]
    %v1535 = vld [vmem:[%s10] sm:$0x1]
    %v1537 = vperm.slane %v1535, 0
    %v1540 = vsel %vm161, %v954, 0
    %v1543 = vsel %vm161, %v955, 0
    %v1546 = vsel %vm161, %v956, 0
    %v1549 = vsel %vm161, %v1528, 0
    %v1552 = vsel %vm161, %v1529, 0
    %v1555 = vsel %vm161, %v1530, 0
    %1557 = vmatpush.msra.mxu0 0.0
    %1558 = vmatpush.msra.mxu0 0.0
    %1559 = vmatpush.msra.mxu0 0.0
    %1560 = vmatpush.msra.mxu0 0.0
    %1561 = vmatpush.msra.mxu0 0.0
    %1562 = vmatpush.msra.mxu0 0.0
    %1563 = vmatpush.msra.mxu0 0.0
    %1564 = vmatpush.msra.mxu0 0.0
    %1565 = vmatpush.msra.mxu0 0.0
    %1566 = vmatpush.msra.mxu0 0.0
    %1567 = vmatpush.msra.mxu0 0.0
    %1568 = vmatpush.msra.mxu0 0.0
    %1569 = vmatpush.msra.mxu0 %v1534
    %1570 = vmatpush.msra.mxu0 %v1533
    %1571 = vmatpush.msra.mxu0 %v1532
    %1572 = vmatpush.msra.mxu0 %v1531
    %1573 = vmatmul.f32.gmra.mxu0 %v1540
    %v1574 = vpop.f32.mrf.mxu0
    %v1575 = vadd.f32 %v1537, %v1574
    %1576 = vmatmul.f32.gmra.mxu0 %v1543
    %v1577 = vpop.f32.mrf.mxu0
    %v1578 = vadd.f32 %v1537, %v1577
    %1579 = vmatmul.f32.gmra.mxu0 %v1546
    %v1580 = vpop.f32.mrf.mxu0
    %v1581 = vadd.f32 %v1537, %v1580
    %1582 = vmatmul.f32.gmra.mxu0 %v1549
    %v1583 = vpop.f32.mrf.mxu0
    %v1584 = vadd.f32 %v1537, %v1583
    %1585 = vmatmul.f32.gmra.mxu0 %v1552
    %v1586 = vpop.f32.mrf.mxu0
    %v1587 = vadd.f32 %v1537, %v1586
    %1588 = vmatmul.f32.gmra.mxu0 %v1555
    %v1589 = vpop.f32.mrf.mxu0
    %v1590 = vadd.f32 %v1537, %v1589
    %1591 = vdwg.mxu0
    %v1592 = vadd.f32 %v140, %v1575
    %v1593 = vadd.f32 %v141, %v1578
    %v1594 = vadd.f32 %v142, %v1581
    %v1595 = vadd.f32 %v153, %v1584
    %v1596 = vadd.f32 %v154, %v1587
    %v1597 = vadd.f32 %v155, %v1590
    %v1598 = vld [vmem:[%s11] sm:$0x1]
    %v1599 = vld [vmem:[%s12] sm:$0x1]
    %v1600 = vsel %vm161, %v1592, 0.0
    %1601 = vadd.xlane.f32.xlu0 %v1600
    %v1602 = vpop.xlane.xlu0 %1601
    %v1603 = vsel %vm161, %v1593, 0.0
    %1604 = vadd.xlane.f32.xlu0 %v1603
    %v1605 = vpop.xlane.xlu0 %1604
    %v1606 = vsel %vm161, %v1594, 0.0
    %1607 = vadd.xlane.f32.xlu0 %v1606
    %v1608 = vpop.xlane.xlu0 %1607
    %v1609 = vsel %vm161, %v1595, 0.0
    %1610 = vadd.xlane.f32.xlu0 %v1609
    %v1611 = vpop.xlane.xlu0 %1610
    %v1612 = vsel %vm161, %v1596, 0.0
    %1613 = vadd.xlane.f32.xlu0 %v1612
    %v1614 = vpop.xlane.xlu0 %1613
    %v1615 = vsel %vm161, %v1597, 0.0
    %1616 = vadd.xlane.f32.xlu0 %v1615
    %v1617 = vpop.xlane.xlu0 %1616
    %v1618 = vmul.f32 %v1602, %v186
    %v1619 = vmul.f32 %v1605, %v186
    %v1620 = vmul.f32 %v1608, %v186
    %v1621 = vmul.f32 %v1611, %v186
    %v1622 = vmul.f32 %v1614, %v186
    %v1623 = vmul.f32 %v1617, %v186
    %v1624 = vsub.f32 %v1592, %v1618
    %v1625 = vsub.f32 %v1593, %v1619
    %v1626 = vsub.f32 %v1594, %v1620
    %v1627 = vsub.f32 %v1595, %v1621
    %v1628 = vsub.f32 %v1596, %v1622
    %v1629 = vsub.f32 %v1597, %v1623
    %v1630 = vmul.f32 %v1624, %v1624
    %v1631 = vmul.f32 %v1625, %v1625
    %v1632 = vmul.f32 %v1626, %v1626
    %v1633 = vmul.f32 %v1627, %v1627
    %v1634 = vmul.f32 %v1628, %v1628
    %v1635 = vmul.f32 %v1629, %v1629
    %v1636 = vsel %vm161, %v1630, 0.0
    %1637 = vadd.xlane.f32.xlu0 %v1636
    %v1638 = vpop.xlane.xlu0 %1637
    %v1639 = vsel %vm161, %v1631, 0.0
    %1640 = vadd.xlane.f32.xlu0 %v1639
    %v1641 = vpop.xlane.xlu0 %1640
    %v1642 = vsel %vm161, %v1632, 0.0
    %1643 = vadd.xlane.f32.xlu0 %v1642
    %v1644 = vpop.xlane.xlu0 %1643
    %v1645 = vsel %vm161, %v1633, 0.0
    %1646 = vadd.xlane.f32.xlu0 %v1645
    %v1647 = vpop.xlane.xlu0 %1646
    %v1648 = vsel %vm161, %v1634, 0.0
    %1649 = vadd.xlane.f32.xlu0 %v1648
    %v1650 = vpop.xlane.xlu0 %1649
    %v1651 = vsel %vm161, %v1635, 0.0
    %1652 = vadd.xlane.f32.xlu0 %v1651
    %v1653 = vpop.xlane.xlu0 %1652
    %v1654 = vmul.f32 %v1638, %v186
    %v1655 = vmul.f32 %v1641, %v186
    %v1656 = vmul.f32 %v1644, %v186
    %v1657 = vmul.f32 %v1647, %v186
    %v1658 = vmul.f32 %v1650, %v186
    %v1659 = vmul.f32 %v1653, %v186
    %v1660 = vadd.f32 %v1654, 1e-05
    %v1661 = vadd.f32 %v1655, 1e-05
    %v1662 = vadd.f32 %v1656, 1e-05
    %v1663 = vadd.f32 %v1657, 1e-05
    %v1664 = vadd.f32 %v1658, 1e-05
    %v1665 = vadd.f32 %v1659, 1e-05
    %v1666 = vrsqrt.pop %v1660
    %v1667 = vmul.f32 %v1666, %v1660
    %v1668 = vmul.f32 %v1667, %v1666
    %v1669 = vmul.f32 0.5, %v1668
    %v1670 = vsub.f32 1.5, %v1669
    %v1671 = vmul.f32 %v1666, %v1670
    %vm1672 = vweird.f32 %v1660
    %vm1673 = vweird.f32 %v1666
    %vm1674 = vmor %vm1672, %vm1673
    %v1675 = vsel %vm1674, %v1666, %v1671
    %v1676 = vrsqrt.pop %v1661
    %v1677 = vmul.f32 %v1676, %v1661
    %v1678 = vmul.f32 %v1677, %v1676
    %v1679 = vmul.f32 0.5, %v1678
    %v1680 = vsub.f32 1.5, %v1679
    %v1681 = vmul.f32 %v1676, %v1680
    %vm1682 = vweird.f32 %v1661
    %vm1683 = vweird.f32 %v1676
    %vm1684 = vmor %vm1682, %vm1683
    %v1685 = vsel %vm1684, %v1676, %v1681
    %v1686 = vrsqrt.pop %v1662
    %v1687 = vmul.f32 %v1686, %v1662
    %v1688 = vmul.f32 %v1687, %v1686
    %v1689 = vmul.f32 0.5, %v1688
    %v1690 = vsub.f32 1.5, %v1689
    %v1691 = vmul.f32 %v1686, %v1690
    %vm1692 = vweird.f32 %v1662
    %vm1693 = vweird.f32 %v1686
    %vm1694 = vmor %vm1692, %vm1693
    %v1695 = vsel %vm1694, %v1686, %v1691
    %v1696 = vrsqrt.pop %v1663
    %v1697 = vmul.f32 %v1696, %v1663
    %v1698 = vmul.f32 %v1697, %v1696
    %v1699 = vmul.f32 0.5, %v1698
    %v1700 = vsub.f32 1.5, %v1699
    %v1701 = vmul.f32 %v1696, %v1700
    %vm1702 = vweird.f32 %v1663
    %vm1703 = vweird.f32 %v1696
    %vm1704 = vmor %vm1702, %vm1703
    %v1705 = vsel %vm1704, %v1696, %v1701
    %v1706 = vrsqrt.pop %v1664
    %v1707 = vmul.f32 %v1706, %v1664
    %v1708 = vmul.f32 %v1707, %v1706
    %v1709 = vmul.f32 0.5, %v1708
    %v1710 = vsub.f32 1.5, %v1709
    %v1711 = vmul.f32 %v1706, %v1710
    %vm1712 = vweird.f32 %v1664
    %vm1713 = vweird.f32 %v1706
    %vm1714 = vmor %vm1712, %vm1713
    %v1715 = vsel %vm1714, %v1706, %v1711
    %v1716 = vrsqrt.pop %v1665
    %v1717 = vmul.f32 %v1716, %v1665
    %v1718 = vmul.f32 %v1717, %v1716
    %v1719 = vmul.f32 0.5, %v1718
    %v1720 = vsub.f32 1.5, %v1719
    %v1721 = vmul.f32 %v1716, %v1720
    %vm1722 = vweird.f32 %v1665
    %vm1723 = vweird.f32 %v1716
    %vm1724 = vmor %vm1722, %vm1723
    %v1725 = vsel %vm1724, %v1716, %v1721
    %v1726 = vmul.f32 %v1624, %v1675
    %v1727 = vmul.f32 %v1625, %v1685
    %v1728 = vmul.f32 %v1626, %v1695
    %v1729 = vmul.f32 %v1627, %v1705
    %v1730 = vmul.f32 %v1628, %v1715
    %v1731 = vmul.f32 %v1629, %v1725
    %v1733 = vperm.slane %v1598, 0
    %v1735 = vmul.f32 %v1726, %v1733
    %v1736 = vmul.f32 %v1727, %v1733
    %v1737 = vmul.f32 %v1728, %v1733
    %v1738 = vmul.f32 %v1729, %v1733
    %v1739 = vmul.f32 %v1730, %v1733
    %v1740 = vmul.f32 %v1731, %v1733
    %v1742 = vperm.slane %v1599, 0
    %v1744 = vadd.f32 %v1735, %v1742
    %v1745 = vadd.f32 %v1736, %v1742
    %v1746 = vadd.f32 %v1737, %v1742
    %v1747 = vadd.f32 %v1738, %v1742
    %v1748 = vadd.f32 %v1739, %v1742
    %v1749 = vadd.f32 %v1740, %v1742
    %v1750 = vld [vmem:[%s13] sm:$0xff]
    %v1751 = vld [vmem:[%s13 + $0x8] sm:$0xff]
    %v1752 = vld [vmem:[%s13 + $0x10] sm:$0xff]
    %v1753 = vld [vmem:[%s13 + $0x18] sm:$0xff]
    %v1754 = vld [vmem:[%s14] sm:$0x1]
    %v1756 = vperm.slane %v1754, 0
    %v1759 = vsel %vm161, %v1744, 0
    %v1762 = vsel %vm161, %v1745, 0
    %v1765 = vsel %vm161, %v1746, 0
    %v1768 = vsel %vm161, %v1747, 0
    %v1771 = vsel %vm161, %v1748, 0
    %v1774 = vsel %vm161, %v1749, 0
    %1776 = vmatpush.msra.mxu0 0.0
    %1777 = vmatpush.msra.mxu0 0.0
    %1778 = vmatpush.msra.mxu0 0.0
    %1779 = vmatpush.msra.mxu0 0.0
    %1780 = vmatpush.msra.mxu0 0.0
    %1781 = vmatpush.msra.mxu0 0.0
    %1782 = vmatpush.msra.mxu0 0.0
    %1783 = vmatpush.msra.mxu0 0.0
    %1784 = vmatpush.msra.mxu0 0.0
    %1785 = vmatpush.msra.mxu0 0.0
    %1786 = vmatpush.msra.mxu0 0.0
    %1787 = vmatpush.msra.mxu0 0.0
    %1788 = vmatpush.msra.mxu0 %v1753
    %1789 = vmatpush.msra.mxu0 %v1752
    %1790 = vmatpush.msra.mxu0 %v1751
    %1791 = vmatpush.msra.mxu0 %v1750
    %1792 = vmatmul.f32.gmra.mxu0 %v1759
    %v1793 = vpop.f32.mrf.mxu0
    %v1794 = vadd.f32 %v1756, %v1793
    %1795 = vmatmul.f32.gmra.mxu0 %v1762
    %v1796 = vpop.f32.mrf.mxu0
    %v1797 = vadd.f32 %v1756, %v1796
    %1798 = vmatmul.f32.gmra.mxu0 %v1765
    %v1799 = vpop.f32.mrf.mxu0
    %v1800 = vadd.f32 %v1756, %v1799
    %1801 = vmatmul.f32.gmra.mxu0 %v1768
    %v1802 = vpop.f32.mrf.mxu0
    %v1803 = vadd.f32 %v1756, %v1802
    %1804 = vmatmul.f32.gmra.mxu0 %v1771
    %v1805 = vpop.f32.mrf.mxu0
    %v1806 = vadd.f32 %v1756, %v1805
    %1807 = vmatmul.f32.gmra.mxu0 %v1774
    %v1808 = vpop.f32.mrf.mxu0
    %v1809 = vadd.f32 %v1756, %v1808
    %1810 = vdwg.mxu0
    %v1811 = vmul.f32 %v1794, 0.5
    %v1812 = vmul.f32 %v1797, 0.5
    %v1813 = vmul.f32 %v1800, 0.5
    %v1814 = vmul.f32 %v1803, 0.5
    %v1815 = vmul.f32 %v1806, 0.5
    %v1816 = vmul.f32 %v1809, 0.5
    %v1817 = vmul.f32 %v1794, 0.044715
    %v1818 = vmul.f32 %v1797, 0.044715
    %v1819 = vmul.f32 %v1800, 0.044715
    %v1820 = vmul.f32 %v1803, 0.044715
    %v1821 = vmul.f32 %v1806, 0.044715
    %v1822 = vmul.f32 %v1809, 0.044715
    %v1823 = vmul.f32 %v1817, %v1794
    %v1824 = vmul.f32 %v1818, %v1797
    %v1825 = vmul.f32 %v1819, %v1800
    %v1826 = vmul.f32 %v1820, %v1803
    %v1827 = vmul.f32 %v1821, %v1806
    %v1828 = vmul.f32 %v1822, %v1809
    %v1829 = vmul.f32 %v1823, %v1794
    %v1830 = vmul.f32 %v1824, %v1797
    %v1831 = vmul.f32 %v1825, %v1800
    %v1832 = vmul.f32 %v1826, %v1803
    %v1833 = vmul.f32 %v1827, %v1806
    %v1834 = vmul.f32 %v1828, %v1809
    %v1835 = vadd.f32 %v1794, %v1829
    %v1836 = vadd.f32 %v1797, %v1830
    %v1837 = vadd.f32 %v1800, %v1831
    %v1838 = vadd.f32 %v1803, %v1832
    %v1839 = vadd.f32 %v1806, %v1833
    %v1840 = vadd.f32 %v1809, %v1834
    %v1841 = vmul.f32 %v1835, 0.7978846
    %v1842 = vmul.f32 %v1836, 0.7978846
    %v1843 = vmul.f32 %v1837, 0.7978846
    %v1844 = vmul.f32 %v1838, 0.7978846
    %v1845 = vmul.f32 %v1839, 0.7978846
    %v1846 = vmul.f32 %v1840, 0.7978846
    %v1847 = vtanh.pop %v1841
    %v1848 = vtanh.pop %v1842
    %v1849 = vtanh.pop %v1843
    %v1850 = vtanh.pop %v1844
    %v1851 = vtanh.pop %v1845
    %v1852 = vtanh.pop %v1846
    %v1853 = vadd.f32 %v1847, 1.0
    %v1854 = vadd.f32 %v1848, 1.0
    %v1855 = vadd.f32 %v1849, 1.0
    %v1856 = vadd.f32 %v1850, 1.0
    %v1857 = vadd.f32 %v1851, 1.0
    %v1858 = vadd.f32 %v1852, 1.0
    %v1859 = vmul.f32 %v1811, %v1853
    %v1860 = vmul.f32 %v1812, %v1854
    %v1861 = vmul.f32 %v1813, %v1855
    %v1862 = vmul.f32 %v1814, %v1856
    %v1863 = vmul.f32 %v1815, %v1857
    %v1864 = vmul.f32 %v1816, %v1858
    %v1865 = vld [vmem:[%s15] sm:$0xff]
    %v1866 = vld [vmem:[%s15 + $0x8] sm:$0xff]
    %v1867 = vld [vmem:[%s15 + $0x10] sm:$0xff]
    %v1868 = vld [vmem:[%s15 + $0x18] sm:$0xff]
    %v1869 = vld [vmem:[%s15 + $0x20] sm:$0xff]
    %v1870 = vld [vmem:[%s15 + $0x28] sm:$0xff]
    %v1871 = vld [vmem:[%s15 + $0x30] sm:$0xff]
    %v1872 = vld [vmem:[%s15 + $0x38] sm:$0xff]
    %v1873 = vld [vmem:[%s16] sm:$0x1]
    %v1875 = vperm.slane %v1873, 0
    %vm1877 = vcmask 523264
    %v1879 = vsel %vm1877, %v1859, 0
    %v1882 = vsel %vm1877, %v1860, 0
    %v1885 = vsel %vm1877, %v1861, 0
    %v1888 = vsel %vm1877, %v1862, 0
    %v1891 = vsel %vm1877, %v1863, 0
    %v1894 = vsel %vm1877, %v1864, 0
    %1896 = vmatpush.msra.mxu0 0.0
    %1897 = vmatpush.msra.mxu0 0.0
    %1898 = vmatpush.msra.mxu0 0.0
    %1899 = vmatpush.msra.mxu0 0.0
    %1900 = vmatpush.msra.mxu0 0.0
    %1901 = vmatpush.msra.mxu0 0.0
    %1902 = vmatpush.msra.mxu0 0.0
    %1903 = vmatpush.msra.mxu0 0.0
    %1904 = vmatpush.msra.mxu0 %v1872
    %1905 = vmatpush.msra.mxu0 %v1871
    %1906 = vmatpush.msra.mxu0 %v1870
    %1907 = vmatpush.msra.mxu0 %v1869
    %1908 = vmatpush.msra.mxu0 %v1868
    %1909 = vmatpush.msra.mxu0 %v1867
    %1910 = vmatpush.msra.mxu0 %v1866
    %1911 = vmatpush.msra.mxu0 %v1865
    %1912 = vmatmul.f32.gmra.mxu0 %v1879
    %v1913 = vpop.f32.mrf.mxu0
    %v1914 = vadd.f32 %v1875, %v1913
    %1915 = vmatmul.f32.gmra.mxu0 %v1882
    %v1916 = vpop.f32.mrf.mxu0
    %v1917 = vadd.f32 %v1875, %v1916
    %1918 = vmatmul.f32.gmra.mxu0 %v1885
    %v1919 = vpop.f32.mrf.mxu0
    %v1920 = vadd.f32 %v1875, %v1919
    %1921 = vmatmul.f32.gmra.mxu0 %v1888
    %v1922 = vpop.f32.mrf.mxu0
    %v1923 = vadd.f32 %v1875, %v1922
    %1924 = vmatmul.f32.gmra.mxu0 %v1891
    %v1925 = vpop.f32.mrf.mxu0
    %v1926 = vadd.f32 %v1875, %v1925
    %1927 = vmatmul.f32.gmra.mxu0 %v1894
    %v1928 = vpop.f32.mrf.mxu0
    %v1929 = vadd.f32 %v1875, %v1928
    %1930 = vdwg.mxu0
    %v1931 = vadd.f32 %v1592, %v1914
    %v1932 = vadd.f32 %v1593, %v1917
    %v1933 = vadd.f32 %v1594, %v1920
    %v1934 = vadd.f32 %v1595, %v1923
    %v1935 = vadd.f32 %v1596, %v1926
    %v1936 = vadd.f32 %v1597, %v1929
    %s1937 = scalar_lea.vmem %s5, 1
    %v1938 = vld [vmem:[%s1937] sm:$0x1]
    %s1939 = scalar_lea.vmem %s6, 1
    %v1940 = vld [vmem:[%s1939] sm:$0x1]
    %v1941 = vsel %vm161, %v1931, 0.0
    %1942 = vadd.xlane.f32.xlu0 %v1941
    %v1943 = vpop.xlane.xlu0 %1942
    %v1944 = vsel %vm161, %v1932, 0.0
    %1945 = vadd.xlane.f32.xlu0 %v1944
    %v1946 = vpop.xlane.xlu0 %1945
    %v1947 = vsel %vm161, %v1933, 0.0
    %1948 = vadd.xlane.f32.xlu0 %v1947
    %v1949 = vpop.xlane.xlu0 %1948
    %v1950 = vsel %vm161, %v1934, 0.0
    %1951 = vadd.xlane.f32.xlu0 %v1950
    %v1952 = vpop.xlane.xlu0 %1951
    %v1953 = vsel %vm161, %v1935, 0.0
    %1954 = vadd.xlane.f32.xlu0 %v1953
    %v1955 = vpop.xlane.xlu0 %1954
    %v1956 = vsel %vm161, %v1936, 0.0
    %1957 = vadd.xlane.f32.xlu0 %v1956
    %v1958 = vpop.xlane.xlu0 %1957
    %v1959 = vmul.f32 %v1943, %v186
    %v1960 = vmul.f32 %v1946, %v186
    %v1961 = vmul.f32 %v1949, %v186
    %v1962 = vmul.f32 %v1952, %v186
    %v1963 = vmul.f32 %v1955, %v186
    %v1964 = vmul.f32 %v1958, %v186
    %v1965 = vsub.f32 %v1931, %v1959
    %v1966 = vsub.f32 %v1932, %v1960
    %v1967 = vsub.f32 %v1933, %v1961
    %v1968 = vsub.f32 %v1934, %v1962
    %v1969 = vsub.f32 %v1935, %v1963
    %v1970 = vsub.f32 %v1936, %v1964
    %v1971 = vmul.f32 %v1965, %v1965
    %v1972 = vmul.f32 %v1966, %v1966
    %v1973 = vmul.f32 %v1967, %v1967
    %v1974 = vmul.f32 %v1968, %v1968
    %v1975 = vmul.f32 %v1969, %v1969
    %v1976 = vmul.f32 %v1970, %v1970
    %v1977 = vsel %vm161, %v1971, 0.0
    %1978 = vadd.xlane.f32.xlu0 %v1977
    %v1979 = vpop.xlane.xlu0 %1978
    %v1980 = vsel %vm161, %v1972, 0.0
    %1981 = vadd.xlane.f32.xlu0 %v1980
    %v1982 = vpop.xlane.xlu0 %1981
    %v1983 = vsel %vm161, %v1973, 0.0
    %1984 = vadd.xlane.f32.xlu0 %v1983
    %v1985 = vpop.xlane.xlu0 %1984
    %v1986 = vsel %vm161, %v1974, 0.0
    %1987 = vadd.xlane.f32.xlu0 %v1986
    %v1988 = vpop.xlane.xlu0 %1987
    %v1989 = vsel %vm161, %v1975, 0.0
    %1990 = vadd.xlane.f32.xlu0 %v1989
    %v1991 = vpop.xlane.xlu0 %1990
    %v1992 = vsel %vm161, %v1976, 0.0
    %1993 = vadd.xlane.f32.xlu0 %v1992
    %v1994 = vpop.xlane.xlu0 %1993
    %v1995 = vmul.f32 %v1979, %v186
    %v1996 = vmul.f32 %v1982, %v186
    %v1997 = vmul.f32 %v1985, %v186
    %v1998 = vmul.f32 %v1988, %v186
    %v1999 = vmul.f32 %v1991, %v186
    %v2000 = vmul.f32 %v1994, %v186
    %v2001 = vadd.f32 %v1995, 1e-05
    %v2002 = vadd.f32 %v1996, 1e-05
    %v2003 = vadd.f32 %v1997, 1e-05
    %v2004 = vadd.f32 %v1998, 1e-05
    %v2005 = vadd.f32 %v1999, 1e-05
    %v2006 = vadd.f32 %v2000, 1e-05
    %v2007 = vrsqrt.pop %v2001
    %v2008 = vmul.f32 %v2007, %v2001
    %v2009 = vmul.f32 %v2008, %v2007
    %v2010 = vmul.f32 0.5, %v2009
    %v2011 = vsub.f32 1.5, %v2010
    %v2012 = vmul.f32 %v2007, %v2011
    %vm2013 = vweird.f32 %v2001
    %vm2014 = vweird.f32 %v2007
    %vm2015 = vmor %vm2013, %vm2014
    %v2016 = vsel %vm2015, %v2007, %v2012
    %v2017 = vrsqrt.pop %v2002
    %v2018 = vmul.f32 %v2017, %v2002
    %v2019 = vmul.f32 %v2018, %v2017
    %v2020 = vmul.f32 0.5, %v2019
    %v2021 = vsub.f32 1.5, %v2020
    %v2022 = vmul.f32 %v2017, %v2021
    %vm2023 = vweird.f32 %v2002
    %vm2024 = vweird.f32 %v2017
    %vm2025 = vmor %vm2023, %vm2024
    %v2026 = vsel %vm2025, %v2017, %v2022
    %v2027 = vrsqrt.pop %v2003
    %v2028 = vmul.f32 %v2027, %v2003
    %v2029 = vmul.f32 %v2028, %v2027
    %v2030 = vmul.f32 0.5, %v2029
    %v2031 = vsub.f32 1.5, %v2030
    %v2032 = vmul.f32 %v2027, %v2031
    %vm2033 = vweird.f32 %v2003
    %vm2034 = vweird.f32 %v2027
    %vm2035 = vmor %vm2033, %vm2034
    %v2036 = vsel %vm2035, %v2027, %v2032
    %v2037 = vrsqrt.pop %v2004
    %v2038 = vmul.f32 %v2037, %v2004
    %v2039 = vmul.f32 %v2038, %v2037
    %v2040 = vmul.f32 0.5, %v2039
    %v2041 = vsub.f32 1.5, %v2040
    %v2042 = vmul.f32 %v2037, %v2041
    %vm2043 = vweird.f32 %v2004
    %vm2044 = vweird.f32 %v2037
    %vm2045 = vmor %vm2043, %vm2044
    %v2046 = vsel %vm2045, %v2037, %v2042
    %v2047 = vrsqrt.pop %v2005
    %v2048 = vmul.f32 %v2047, %v2005
    %v2049 = vmul.f32 %v2048, %v2047
    %v2050 = vmul.f32 0.5, %v2049
    %v2051 = vsub.f32 1.5, %v2050
    %v2052 = vmul.f32 %v2047, %v2051
    %vm2053 = vweird.f32 %v2005
    %vm2054 = vweird.f32 %v2047
    %vm2055 = vmor %vm2053, %vm2054
    %v2056 = vsel %vm2055, %v2047, %v2052
    %v2057 = vrsqrt.pop %v2006
    %v2058 = vmul.f32 %v2057, %v2006
    %v2059 = vmul.f32 %v2058, %v2057
    %v2060 = vmul.f32 0.5, %v2059
    %v2061 = vsub.f32 1.5, %v2060
    %v2062 = vmul.f32 %v2057, %v2061
    %vm2063 = vweird.f32 %v2006
    %vm2064 = vweird.f32 %v2057
    %vm2065 = vmor %vm2063, %vm2064
    %v2066 = vsel %vm2065, %v2057, %v2062
    %v2067 = vmul.f32 %v1965, %v2016
    %v2068 = vmul.f32 %v1966, %v2026
    %v2069 = vmul.f32 %v1967, %v2036
    %v2070 = vmul.f32 %v1968, %v2046
    %v2071 = vmul.f32 %v1969, %v2056
    %v2072 = vmul.f32 %v1970, %v2066
    %v2074 = vperm.slane %v1938, 0
    %v2076 = vmul.f32 %v2067, %v2074
    %v2077 = vmul.f32 %v2068, %v2074
    %v2078 = vmul.f32 %v2069, %v2074
    %v2079 = vmul.f32 %v2070, %v2074
    %v2080 = vmul.f32 %v2071, %v2074
    %v2081 = vmul.f32 %v2072, %v2074
    %v2083 = vperm.slane %v1940, 0
    %v2085 = vadd.f32 %v2076, %v2083
    %v2086 = vadd.f32 %v2077, %v2083
    %v2087 = vadd.f32 %v2078, %v2083
    %v2088 = vadd.f32 %v2079, %v2083
    %v2089 = vadd.f32 %v2080, %v2083
    %v2090 = vadd.f32 %v2081, %v2083
    %s2091 = scalar_lea.vmem %s7, 32
    %v2092 = vld [vmem:[%s2091] sm:$0xff]
    %v2093 = vld [vmem:[%s2091 + $0x8] sm:$0xff]
    %v2094 = vld [vmem:[%s2091 + $0x10] sm:$0xff]
    %v2095 = vld [vmem:[%s2091 + $0x18] sm:$0xff]
    %s2096 = scalar_lea.vmem %s8, 1
    %v2097 = vld [vmem:[%s2096] sm:$0x1]
    %v2099 = vperm.slane %v2097, 0
    %v2102 = vsel %vm161, %v2085, 0
    %v2105 = vsel %vm161, %v2086, 0
    %v2108 = vsel %vm161, %v2087, 0
    %v2111 = vsel %vm161, %v2088, 0
    %v2114 = vsel %vm161, %v2089, 0
    %v2117 = vsel %vm161, %v2090, 0
    %2119 = vmatpush.msra.mxu0 0.0
    %2120 = vmatpush.msra.mxu0 0.0
    %2121 = vmatpush.msra.mxu0 0.0
    %2122 = vmatpush.msra.mxu0 0.0
    %2123 = vmatpush.msra.mxu0 0.0
    %2124 = vmatpush.msra.mxu0 0.0
    %2125 = vmatpush.msra.mxu0 0.0
    %2126 = vmatpush.msra.mxu0 0.0
    %2127 = vmatpush.msra.mxu0 0.0
    %2128 = vmatpush.msra.mxu0 0.0
    %2129 = vmatpush.msra.mxu0 0.0
    %2130 = vmatpush.msra.mxu0 0.0
    %2131 = vmatpush.msra.mxu0 %v2095
    %2132 = vmatpush.msra.mxu0 %v2094
    %2133 = vmatpush.msra.mxu0 %v2093
    %2134 = vmatpush.msra.mxu0 %v2092
    %2135 = vmatmul.f32.gmra.mxu0 %v2102
    %v2136 = vpop.f32.mrf.mxu0
    %v2137 = vadd.f32 %v2099, %v2136
    %2138 = vmatmul.f32.gmra.mxu0 %v2105
    %v2139 = vpop.f32.mrf.mxu0
    %v2140 = vadd.f32 %v2099, %v2139
    %2141 = vmatmul.f32.gmra.mxu0 %v2108
    %v2142 = vpop.f32.mrf.mxu0
    %v2143 = vadd.f32 %v2099, %v2142
    %2144 = vmatmul.f32.gmra.mxu0 %v2111
    %v2145 = vpop.f32.mrf.mxu0
    %v2146 = vadd.f32 %v2099, %v2145
    %2147 = vmatmul.f32.gmra.mxu0 %v2114
    %v2148 = vpop.f32.mrf.mxu0
    %v2149 = vadd.f32 %v2099, %v2148
    %2150 = vmatmul.f32.gmra.mxu0 %v2117
    %v2151 = vpop.f32.mrf.mxu0
    %v2152 = vadd.f32 %v2099, %v2151
    %2153 = vdwg.mxu0
    %2157 = vrot.lane.b32.xlu0 %v2137, 96
    %v2158 = vpop.permute.xlu0 %2157
    %2159 = vrot.lane.b32.xlu0 %v2140, 96
    %v2160 = vpop.permute.xlu0 %2159
    %2161 = vrot.lane.b32.xlu0 %v2143, 96
    %v2162 = vpop.permute.xlu0 %2161
    %v2163 = vsel %vm389, %v2137, 0
    %v2165 = vsel %vm389, %v2140, 0
    %v2167 = vsel %vm389, %v2143, 0
    %v2169 = vsel %vm389, %v2158, 0
    %v2171 = vsel %vm389, %v2160, 0
    %v2173 = vsel %vm389, %v2162, 0
    %2175 = vmatpush.xpose.msra.mxu0 0.0
    %2176 = vmatpush.xpose.msra.mxu0 0.0
    %2177 = vmatpush.xpose.msra.mxu0 0.0
    %2178 = vmatpush.xpose.msra.mxu0 0.0
    %2179 = vmatpush.xpose.msra.mxu0 0.0
    %2180 = vmatpush.xpose.msra.mxu0 0.0
    %2181 = vmatpush.xpose.msra.mxu0 0.0
    %2182 = vmatpush.xpose.msra.mxu0 0.0
    %2183 = vmatpush.xpose.msra.mxu0 0.0
    %2184 = vmatpush.xpose.msra.mxu0 0.0
    %2185 = vmatpush.xpose.msra.mxu0 0.0
    %2186 = vmatpush.xpose.msra.mxu0 0.0
    %2187 = vmatpush.xpose.msra.mxu0 0.0
    %2188 = vmatpush.xpose.msra.mxu0 %v2173
    %2189 = vmatpush.xpose.msra.mxu0 %v2171
    %2190 = vmatpush.xpose.msra.mxu0 %v2169
    %2191 = vmatmul.f32.gmra.mxu0 %v2163
    %v2192 = vpop.f32.mrf.mxu0
    %v2193 = vadd.f32 0.0, %v2192
    %2194 = vmatmul.f32.gmra.mxu0 %v2165
    %v2195 = vpop.f32.mrf.mxu0
    %v2196 = vadd.f32 0.0, %v2195
    %2197 = vmatmul.f32.gmra.mxu0 %v2167
    %v2198 = vpop.f32.mrf.mxu0
    %v2199 = vadd.f32 0.0, %v2198
    %2200 = vdwg.mxu0
    %v2201 = vmul.f32 %v2193, 0.35355338
    %v2202 = vmul.f32 %v2196, 0.35355338
    %v2203 = vmul.f32 %v2199, 0.35355338
    %v2204 = vsel %vm158, %v2201, -1e+30
    %v2205 = vsel %vm158, %v2202, -1e+30
    %v2206 = vsel %vm158, %v2203, -1e+30
    %v2207 = vsel %vm434, %v2204, -inf
    %2208 = vmax.xlane.f32.xlu0 %v2207
    %v2209 = vpop.xlane.xlu0 %2208
    %v2210 = vsel %vm434, %v2205, -inf
    %2211 = vmax.xlane.f32.xlu0 %v2210
    %v2212 = vpop.xlane.xlu0 %2211
    %v2213 = vsel %vm434, %v2206, -inf
    %2214 = vmax.xlane.f32.xlu0 %v2213
    %v2215 = vpop.xlane.xlu0 %2214
    %v2216 = vsub.f32 %v2204, %v2209
    %v2217 = vsub.f32 %v2205, %v2212
    %v2218 = vsub.f32 %v2206, %v2215
    %v2219 = vmul.f32 %v2216, 1.442695
    %v2220 = vpow.pop %v2219
    %v2221 = vmul.f32 %v2217, 1.442695
    %v2222 = vpow.pop %v2221
    %v2223 = vmul.f32 %v2218, 1.442695
    %v2224 = vpow.pop %v2223
    %v2225 = vsel %vm434, %v2220, 0.0
    %2226 = vadd.xlane.f32.xlu0 %v2225
    %v2227 = vpop.xlane.xlu0 %2226
    %v2228 = vsel %vm434, %v2222, 0.0
    %2229 = vadd.xlane.f32.xlu0 %v2228
    %v2230 = vpop.xlane.xlu0 %2229
    %v2231 = vsel %vm434, %v2224, 0.0
    %2232 = vadd.xlane.f32.xlu0 %v2231
    %v2233 = vpop.xlane.xlu0 %2232
    %v2234 = vrcp.pop %v2227
    %v2235 = vrcp.pop %v2230
    %v2236 = vrcp.pop %v2233
    %v2237 = vmul.f32 %v2220, %v2234
    %v2238 = vmul.f32 %v2222, %v2235
    %v2239 = vmul.f32 %v2224, %v2236
    %2240 = vrot.lane.b32.xlu0 %v2137, 64
    %v2241 = vpop.permute.xlu0 %2240
    %2242 = vrot.lane.b32.xlu0 %v2140, 64
    %v2243 = vpop.permute.xlu0 %2242
    %2244 = vrot.lane.b32.xlu0 %v2143, 64
    %v2245 = vpop.permute.xlu0 %2244
    %v2250 = vsel %vm434, %v2237, 0
    %v2253 = vsel %vm434, %v2238, 0
    %v2256 = vsel %vm434, %v2239, 0
    %2258 = vmatpush.msra.mxu0 0.0
    %2259 = vmatpush.msra.mxu0 0.0
    %2260 = vmatpush.msra.mxu0 0.0
    %2261 = vmatpush.msra.mxu0 0.0
    %2262 = vmatpush.msra.mxu0 0.0
    %2263 = vmatpush.msra.mxu0 0.0
    %2264 = vmatpush.msra.mxu0 0.0
    %2265 = vmatpush.msra.mxu0 0.0
    %2266 = vmatpush.msra.mxu0 0.0
    %2267 = vmatpush.msra.mxu0 0.0
    %2268 = vmatpush.msra.mxu0 0.0
    %2269 = vmatpush.msra.mxu0 0.0
    %2270 = vmatpush.msra.mxu0 0.0
    %2271 = vmatpush.msra.mxu0 %v2245
    %2272 = vmatpush.msra.mxu0 %v2243
    %2273 = vmatpush.msra.mxu0 %v2241
    %2274 = vmatmul.f32.gmra.mxu0 %v2250
    %v2275 = vpop.f32.mrf.mxu0
    %v2276 = vadd.f32 0.0, %v2275
    %2277 = vmatmul.f32.gmra.mxu0 %v2253
    %v2278 = vpop.f32.mrf.mxu0
    %v2279 = vadd.f32 0.0, %v2278
    %2280 = vmatmul.f32.gmra.mxu0 %v2256
    %v2281 = vpop.f32.mrf.mxu0
    %v2282 = vadd.f32 0.0, %v2281
    %2283 = vdwg.mxu0
    %2284 = vrot.lane.b32.xlu0 %v2137, 120
    %v2285 = vpop.permute.xlu0 %2284
    %2286 = vrot.lane.b32.xlu0 %v2140, 120
    %v2287 = vpop.permute.xlu0 %2286
    %2288 = vrot.lane.b32.xlu0 %v2143, 120
    %v2289 = vpop.permute.xlu0 %2288
    %2290 = vrot.lane.b32.xlu0 %v2137, 88
    %v2291 = vpop.permute.xlu0 %2290
    %2292 = vrot.lane.b32.xlu0 %v2140, 88
    %v2293 = vpop.permute.xlu0 %2292
    %2294 = vrot.lane.b32.xlu0 %v2143, 88
    %v2295 = vpop.permute.xlu0 %2294
    %v2296 = vsel %vm389, %v2285, 0
    %v2298 = vsel %vm389, %v2287, 0
    %v2300 = vsel %vm389, %v2289, 0
    %v2302 = vsel %vm389, %v2291, 0
    %v2304 = vsel %vm389, %v2293, 0
    %v2306 = vsel %vm389, %v2295, 0
    %2308 = vmatpush.xpose.msra.mxu0 0.0
    %2309 = vmatpush.xpose.msra.mxu0 0.0
    %2310 = vmatpush.xpose.msra.mxu0 0.0
    %2311 = vmatpush.xpose.msra.mxu0 0.0
    %2312 = vmatpush.xpose.msra.mxu0 0.0
    %2313 = vmatpush.xpose.msra.mxu0 0.0
    %2314 = vmatpush.xpose.msra.mxu0 0.0
    %2315 = vmatpush.xpose.msra.mxu0 0.0
    %2316 = vmatpush.xpose.msra.mxu0 0.0
    %2317 = vmatpush.xpose.msra.mxu0 0.0
    %2318 = vmatpush.xpose.msra.mxu0 0.0
    %2319 = vmatpush.xpose.msra.mxu0 0.0
    %2320 = vmatpush.xpose.msra.mxu0 0.0
    %2321 = vmatpush.xpose.msra.mxu0 %v2306
    %2322 = vmatpush.xpose.msra.mxu0 %v2304
    %2323 = vmatpush.xpose.msra.mxu0 %v2302
    %2324 = vmatmul.f32.gmra.mxu0 %v2296
    %v2325 = vpop.f32.mrf.mxu0
    %v2326 = vadd.f32 0.0, %v2325
    %2327 = vmatmul.f32.gmra.mxu0 %v2298
    %v2328 = vpop.f32.mrf.mxu0
    %v2329 = vadd.f32 0.0, %v2328
    %2330 = vmatmul.f32.gmra.mxu0 %v2300
    %v2331 = vpop.f32.mrf.mxu0
    %v2332 = vadd.f32 0.0, %v2331
    %2333 = vdwg.mxu0
    %v2334 = vmul.f32 %v2326, 0.35355338
    %v2335 = vmul.f32 %v2329, 0.35355338
    %v2336 = vmul.f32 %v2332, 0.35355338
    %v2337 = vsel %vm158, %v2334, -1e+30
    %v2338 = vsel %vm158, %v2335, -1e+30
    %v2339 = vsel %vm158, %v2336, -1e+30
    %v2340 = vsel %vm434, %v2337, -inf
    %2341 = vmax.xlane.f32.xlu0 %v2340
    %v2342 = vpop.xlane.xlu0 %2341
    %v2343 = vsel %vm434, %v2338, -inf
    %2344 = vmax.xlane.f32.xlu0 %v2343
    %v2345 = vpop.xlane.xlu0 %2344
    %v2346 = vsel %vm434, %v2339, -inf
    %2347 = vmax.xlane.f32.xlu0 %v2346
    %v2348 = vpop.xlane.xlu0 %2347
    %v2349 = vsub.f32 %v2337, %v2342
    %v2350 = vsub.f32 %v2338, %v2345
    %v2351 = vsub.f32 %v2339, %v2348
    %v2352 = vmul.f32 %v2349, 1.442695
    %v2353 = vpow.pop %v2352
    %v2354 = vmul.f32 %v2350, 1.442695
    %v2355 = vpow.pop %v2354
    %v2356 = vmul.f32 %v2351, 1.442695
    %v2357 = vpow.pop %v2356
    %v2358 = vsel %vm434, %v2353, 0.0
    %2359 = vadd.xlane.f32.xlu0 %v2358
    %v2360 = vpop.xlane.xlu0 %2359
    %v2361 = vsel %vm434, %v2355, 0.0
    %2362 = vadd.xlane.f32.xlu0 %v2361
    %v2363 = vpop.xlane.xlu0 %2362
    %v2364 = vsel %vm434, %v2357, 0.0
    %2365 = vadd.xlane.f32.xlu0 %v2364
    %v2366 = vpop.xlane.xlu0 %2365
    %v2367 = vrcp.pop %v2360
    %v2368 = vrcp.pop %v2363
    %v2369 = vrcp.pop %v2366
    %v2370 = vmul.f32 %v2353, %v2367
    %v2371 = vmul.f32 %v2355, %v2368
    %v2372 = vmul.f32 %v2357, %v2369
    %2373 = vrot.lane.b32.xlu0 %v2137, 56
    %v2374 = vpop.permute.xlu0 %2373
    %2375 = vrot.lane.b32.xlu0 %v2140, 56
    %v2376 = vpop.permute.xlu0 %2375
    %2377 = vrot.lane.b32.xlu0 %v2143, 56
    %v2378 = vpop.permute.xlu0 %2377
    %v2383 = vsel %vm434, %v2370, 0
    %v2386 = vsel %vm434, %v2371, 0
    %v2389 = vsel %vm434, %v2372, 0
    %2391 = vmatpush.msra.mxu0 0.0
    %2392 = vmatpush.msra.mxu0 0.0
    %2393 = vmatpush.msra.mxu0 0.0
    %2394 = vmatpush.msra.mxu0 0.0
    %2395 = vmatpush.msra.mxu0 0.0
    %2396 = vmatpush.msra.mxu0 0.0
    %2397 = vmatpush.msra.mxu0 0.0
    %2398 = vmatpush.msra.mxu0 0.0
    %2399 = vmatpush.msra.mxu0 0.0
    %2400 = vmatpush.msra.mxu0 0.0
    %2401 = vmatpush.msra.mxu0 0.0
    %2402 = vmatpush.msra.mxu0 0.0
    %2403 = vmatpush.msra.mxu0 0.0
    %2404 = vmatpush.msra.mxu0 %v2378
    %2405 = vmatpush.msra.mxu0 %v2376
    %2406 = vmatpush.msra.mxu0 %v2374
    %2407 = vmatmul.f32.gmra.mxu0 %v2383
    %v2408 = vpop.f32.mrf.mxu0
    %v2409 = vadd.f32 0.0, %v2408
    %2410 = vmatmul.f32.gmra.mxu0 %v2386
    %v2411 = vpop.f32.mrf.mxu0
    %v2412 = vadd.f32 0.0, %v2411
    %2413 = vmatmul.f32.gmra.mxu0 %v2389
    %v2414 = vpop.f32.mrf.mxu0
    %v2415 = vadd.f32 0.0, %v2414
    %2416 = vdwg.mxu0
    %2417 = vrot.lane.b32.xlu0 %v2137, 112
    %v2418 = vpop.permute.xlu0 %2417
    %2419 = vrot.lane.b32.xlu0 %v2140, 112
    %v2420 = vpop.permute.xlu0 %2419
    %2421 = vrot.lane.b32.xlu0 %v2143, 112
    %v2422 = vpop.permute.xlu0 %2421
    %2423 = vrot.lane.b32.xlu0 %v2137, 80
    %v2424 = vpop.permute.xlu0 %2423
    %2425 = vrot.lane.b32.xlu0 %v2140, 80
    %v2426 = vpop.permute.xlu0 %2425
    %2427 = vrot.lane.b32.xlu0 %v2143, 80
    %v2428 = vpop.permute.xlu0 %2427
    %v2429 = vsel %vm389, %v2418, 0
    %v2431 = vsel %vm389, %v2420, 0
    %v2433 = vsel %vm389, %v2422, 0
    %v2435 = vsel %vm389, %v2424, 0
    %v2437 = vsel %vm389, %v2426, 0
    %v2439 = vsel %vm389, %v2428, 0
    %2441 = vmatpush.xpose.msra.mxu0 0.0
    %2442 = vmatpush.xpose.msra.mxu0 0.0
    %2443 = vmatpush.xpose.msra.mxu0 0.0
    %2444 = vmatpush.xpose.msra.mxu0 0.0
    %2445 = vmatpush.xpose.msra.mxu0 0.0
    %2446 = vmatpush.xpose.msra.mxu0 0.0
    %2447 = vmatpush.xpose.msra.mxu0 0.0
    %2448 = vmatpush.xpose.msra.mxu0 0.0
    %2449 = vmatpush.xpose.msra.mxu0 0.0
    %2450 = vmatpush.xpose.msra.mxu0 0.0
    %2451 = vmatpush.xpose.msra.mxu0 0.0
    %2452 = vmatpush.xpose.msra.mxu0 0.0
    %2453 = vmatpush.xpose.msra.mxu0 0.0
    %2454 = vmatpush.xpose.msra.mxu0 %v2439
    %2455 = vmatpush.xpose.msra.mxu0 %v2437
    %2456 = vmatpush.xpose.msra.mxu0 %v2435
    %2457 = vmatmul.f32.gmra.mxu0 %v2429
    %v2458 = vpop.f32.mrf.mxu0
    %v2459 = vadd.f32 0.0, %v2458
    %2460 = vmatmul.f32.gmra.mxu0 %v2431
    %v2461 = vpop.f32.mrf.mxu0
    %v2462 = vadd.f32 0.0, %v2461
    %2463 = vmatmul.f32.gmra.mxu0 %v2433
    %v2464 = vpop.f32.mrf.mxu0
    %v2465 = vadd.f32 0.0, %v2464
    %2466 = vdwg.mxu0
    %v2467 = vmul.f32 %v2459, 0.35355338
    %v2468 = vmul.f32 %v2462, 0.35355338
    %v2469 = vmul.f32 %v2465, 0.35355338
    %v2470 = vsel %vm158, %v2467, -1e+30
    %v2471 = vsel %vm158, %v2468, -1e+30
    %v2472 = vsel %vm158, %v2469, -1e+30
    %v2473 = vsel %vm434, %v2470, -inf
    %2474 = vmax.xlane.f32.xlu0 %v2473
    %v2475 = vpop.xlane.xlu0 %2474
    %v2476 = vsel %vm434, %v2471, -inf
    %2477 = vmax.xlane.f32.xlu0 %v2476
    %v2478 = vpop.xlane.xlu0 %2477
    %v2479 = vsel %vm434, %v2472, -inf
    %2480 = vmax.xlane.f32.xlu0 %v2479
    %v2481 = vpop.xlane.xlu0 %2480
    %v2482 = vsub.f32 %v2470, %v2475
    %v2483 = vsub.f32 %v2471, %v2478
    %v2484 = vsub.f32 %v2472, %v2481
    %v2485 = vmul.f32 %v2482, 1.442695
    %v2486 = vpow.pop %v2485
    %v2487 = vmul.f32 %v2483, 1.442695
    %v2488 = vpow.pop %v2487
    %v2489 = vmul.f32 %v2484, 1.442695
    %v2490 = vpow.pop %v2489
    %v2491 = vsel %vm434, %v2486, 0.0
    %2492 = vadd.xlane.f32.xlu0 %v2491
    %v2493 = vpop.xlane.xlu0 %2492
    %v2494 = vsel %vm434, %v2488, 0.0
    %2495 = vadd.xlane.f32.xlu0 %v2494
    %v2496 = vpop.xlane.xlu0 %2495
    %v2497 = vsel %vm434, %v2490, 0.0
    %2498 = vadd.xlane.f32.xlu0 %v2497
    %v2499 = vpop.xlane.xlu0 %2498
    %v2500 = vrcp.pop %v2493
    %v2501 = vrcp.pop %v2496
    %v2502 = vrcp.pop %v2499
    %v2503 = vmul.f32 %v2486, %v2500
    %v2504 = vmul.f32 %v2488, %v2501
    %v2505 = vmul.f32 %v2490, %v2502
    %2506 = vrot.lane.b32.xlu0 %v2137, 48
    %v2507 = vpop.permute.xlu0 %2506
    %2508 = vrot.lane.b32.xlu0 %v2140, 48
    %v2509 = vpop.permute.xlu0 %2508
    %2510 = vrot.lane.b32.xlu0 %v2143, 48
    %v2511 = vpop.permute.xlu0 %2510
    %v2516 = vsel %vm434, %v2503, 0
    %v2519 = vsel %vm434, %v2504, 0
    %v2522 = vsel %vm434, %v2505, 0
    %2524 = vmatpush.msra.mxu0 0.0
    %2525 = vmatpush.msra.mxu0 0.0
    %2526 = vmatpush.msra.mxu0 0.0
    %2527 = vmatpush.msra.mxu0 0.0
    %2528 = vmatpush.msra.mxu0 0.0
    %2529 = vmatpush.msra.mxu0 0.0
    %2530 = vmatpush.msra.mxu0 0.0
    %2531 = vmatpush.msra.mxu0 0.0
    %2532 = vmatpush.msra.mxu0 0.0
    %2533 = vmatpush.msra.mxu0 0.0
    %2534 = vmatpush.msra.mxu0 0.0
    %2535 = vmatpush.msra.mxu0 0.0
    %2536 = vmatpush.msra.mxu0 0.0
    %2537 = vmatpush.msra.mxu0 %v2511
    %2538 = vmatpush.msra.mxu0 %v2509
    %2539 = vmatpush.msra.mxu0 %v2507
    %2540 = vmatmul.f32.gmra.mxu0 %v2516
    %v2541 = vpop.f32.mrf.mxu0
    %v2542 = vadd.f32 0.0, %v2541
    %2543 = vmatmul.f32.gmra.mxu0 %v2519
    %v2544 = vpop.f32.mrf.mxu0
    %v2545 = vadd.f32 0.0, %v2544
    %2546 = vmatmul.f32.gmra.mxu0 %v2522
    %v2547 = vpop.f32.mrf.mxu0
    %v2548 = vadd.f32 0.0, %v2547
    %2549 = vdwg.mxu0
    %2550 = vrot.lane.b32.xlu0 %v2137, 104
    %v2551 = vpop.permute.xlu0 %2550
    %2552 = vrot.lane.b32.xlu0 %v2140, 104
    %v2553 = vpop.permute.xlu0 %2552
    %2554 = vrot.lane.b32.xlu0 %v2143, 104
    %v2555 = vpop.permute.xlu0 %2554
    %2556 = vrot.lane.b32.xlu0 %v2137, 72
    %v2557 = vpop.permute.xlu0 %2556
    %2558 = vrot.lane.b32.xlu0 %v2140, 72
    %v2559 = vpop.permute.xlu0 %2558
    %2560 = vrot.lane.b32.xlu0 %v2143, 72
    %v2561 = vpop.permute.xlu0 %2560
    %v2562 = vsel %vm389, %v2551, 0
    %v2564 = vsel %vm389, %v2553, 0
    %v2566 = vsel %vm389, %v2555, 0
    %v2568 = vsel %vm389, %v2557, 0
    %v2570 = vsel %vm389, %v2559, 0
    %v2572 = vsel %vm389, %v2561, 0
    %2574 = vmatpush.xpose.msra.mxu0 0.0
    %2575 = vmatpush.xpose.msra.mxu0 0.0
    %2576 = vmatpush.xpose.msra.mxu0 0.0
    %2577 = vmatpush.xpose.msra.mxu0 0.0
    %2578 = vmatpush.xpose.msra.mxu0 0.0
    %2579 = vmatpush.xpose.msra.mxu0 0.0
    %2580 = vmatpush.xpose.msra.mxu0 0.0
    %2581 = vmatpush.xpose.msra.mxu0 0.0
    %2582 = vmatpush.xpose.msra.mxu0 0.0
    %2583 = vmatpush.xpose.msra.mxu0 0.0
    %2584 = vmatpush.xpose.msra.mxu0 0.0
    %2585 = vmatpush.xpose.msra.mxu0 0.0
    %2586 = vmatpush.xpose.msra.mxu0 0.0
    %2587 = vmatpush.xpose.msra.mxu0 %v2572
    %2588 = vmatpush.xpose.msra.mxu0 %v2570
    %2589 = vmatpush.xpose.msra.mxu0 %v2568
    %2590 = vmatmul.f32.gmra.mxu0 %v2562
    %v2591 = vpop.f32.mrf.mxu0
    %v2592 = vadd.f32 0.0, %v2591
    %2593 = vmatmul.f32.gmra.mxu0 %v2564
    %v2594 = vpop.f32.mrf.mxu0
    %v2595 = vadd.f32 0.0, %v2594
    %2596 = vmatmul.f32.gmra.mxu0 %v2566
    %v2597 = vpop.f32.mrf.mxu0
    %v2598 = vadd.f32 0.0, %v2597
    %2599 = vdwg.mxu0
    %v2600 = vmul.f32 %v2592, 0.35355338
    %v2601 = vmul.f32 %v2595, 0.35355338
    %v2602 = vmul.f32 %v2598, 0.35355338
    %v2603 = vsel %vm158, %v2600, -1e+30
    %v2604 = vsel %vm158, %v2601, -1e+30
    %v2605 = vsel %vm158, %v2602, -1e+30
    %v2606 = vsel %vm434, %v2603, -inf
    %2607 = vmax.xlane.f32.xlu0 %v2606
    %v2608 = vpop.xlane.xlu0 %2607
    %v2609 = vsel %vm434, %v2604, -inf
    %2610 = vmax.xlane.f32.xlu0 %v2609
    %v2611 = vpop.xlane.xlu0 %2610
    %v2612 = vsel %vm434, %v2605, -inf
    %2613 = vmax.xlane.f32.xlu0 %v2612
    %v2614 = vpop.xlane.xlu0 %2613
    %v2615 = vsub.f32 %v2603, %v2608
    %v2616 = vsub.f32 %v2604, %v2611
    %v2617 = vsub.f32 %v2605, %v2614
    %v2618 = vmul.f32 %v2615, 1.442695
    %v2619 = vpow.pop %v2618
    %v2620 = vmul.f32 %v2616, 1.442695
    %v2621 = vpow.pop %v2620
    %v2622 = vmul.f32 %v2617, 1.442695
    %v2623 = vpow.pop %v2622
    %v2624 = vsel %vm434, %v2619, 0.0
    %2625 = vadd.xlane.f32.xlu0 %v2624
    %v2626 = vpop.xlane.xlu0 %2625
    %v2627 = vsel %vm434, %v2621, 0.0
    %2628 = vadd.xlane.f32.xlu0 %v2627
    %v2629 = vpop.xlane.xlu0 %2628
    %v2630 = vsel %vm434, %v2623, 0.0
    %2631 = vadd.xlane.f32.xlu0 %v2630
    %v2632 = vpop.xlane.xlu0 %2631
    %v2633 = vrcp.pop %v2626
    %v2634 = vrcp.pop %v2629
    %v2635 = vrcp.pop %v2632
    %v2636 = vmul.f32 %v2619, %v2633
    %v2637 = vmul.f32 %v2621, %v2634
    %v2638 = vmul.f32 %v2623, %v2635
    %2639 = vrot.lane.b32.xlu0 %v2137, 40
    %v2640 = vpop.permute.xlu0 %2639
    %2641 = vrot.lane.b32.xlu0 %v2140, 40
    %v2642 = vpop.permute.xlu0 %2641
    %2643 = vrot.lane.b32.xlu0 %v2143, 40
    %v2644 = vpop.permute.xlu0 %2643
    %v2649 = vsel %vm434, %v2636, 0
    %v2652 = vsel %vm434, %v2637, 0
    %v2655 = vsel %vm434, %v2638, 0
    %2657 = vmatpush.msra.mxu0 0.0
    %2658 = vmatpush.msra.mxu0 0.0
    %2659 = vmatpush.msra.mxu0 0.0
    %2660 = vmatpush.msra.mxu0 0.0
    %2661 = vmatpush.msra.mxu0 0.0
    %2662 = vmatpush.msra.mxu0 0.0
    %2663 = vmatpush.msra.mxu0 0.0
    %2664 = vmatpush.msra.mxu0 0.0
    %2665 = vmatpush.msra.mxu0 0.0
    %2666 = vmatpush.msra.mxu0 0.0
    %2667 = vmatpush.msra.mxu0 0.0
    %2668 = vmatpush.msra.mxu0 0.0
    %2669 = vmatpush.msra.mxu0 0.0
    %2670 = vmatpush.msra.mxu0 %v2644
    %2671 = vmatpush.msra.mxu0 %v2642
    %2672 = vmatpush.msra.mxu0 %v2640
    %2673 = vmatmul.f32.gmra.mxu0 %v2649
    %v2674 = vpop.f32.mrf.mxu0
    %v2675 = vadd.f32 0.0, %v2674
    %2676 = vmatmul.f32.gmra.mxu0 %v2652
    %v2677 = vpop.f32.mrf.mxu0
    %v2678 = vadd.f32 0.0, %v2677
    %2679 = vmatmul.f32.gmra.mxu0 %v2655
    %v2680 = vpop.f32.mrf.mxu0
    %v2681 = vadd.f32 0.0, %v2680
    %2682 = vdwg.mxu0
    %2686 = vrot.lane.b32.xlu0 %v2409, 8
    %v2687 = vpop.permute.xlu0 %2686
    %2688 = vrot.lane.b32.xlu0 %v2412, 8
    %v2689 = vpop.permute.xlu0 %2688
    %2690 = vrot.lane.b32.xlu0 %v2415, 8
    %v2691 = vpop.permute.xlu0 %2690
    %2698 = vrot.lane.b32.xlu0 %v2542, 16
    %v2699 = vpop.permute.xlu0 %2698
    %2700 = vrot.lane.b32.xlu0 %v2545, 16
    %v2701 = vpop.permute.xlu0 %2700
    %2702 = vrot.lane.b32.xlu0 %v2548, 16
    %v2703 = vpop.permute.xlu0 %2702
    %2710 = vrot.lane.b32.xlu0 %v2675, 24
    %v2711 = vpop.permute.xlu0 %2710
    %2712 = vrot.lane.b32.xlu0 %v2678, 24
    %v2713 = vpop.permute.xlu0 %2712
    %2714 = vrot.lane.b32.xlu0 %v2681, 24
    %v2715 = vpop.permute.xlu0 %2714
    %v2719 = vsel %vm389, %v2276, %v2687
    %v2720 = vsel %vm389, %v2279, %v2689
    %v2721 = vsel %vm389, %v2282, %v2691
    %v2722 = vsel %vm950, %v2719, %v2699
    %v2723 = vsel %vm950, %v2720, %v2701
    %v2724 = vsel %vm950, %v2721, %v2703
    %v2725 = vsel %vm434, %v2722, %v2711
    %v2726 = vsel %vm434, %v2723, %v2713
    %v2727 = vsel %vm434, %v2724, %v2715
    %2731 = vrot.lane.b32.xlu0 %v2146, 96
    %v2732 = vpop.permute.xlu0 %2731
    %2733 = vrot.lane.b32.xlu0 %v2149, 96
    %v2734 = vpop.permute.xlu0 %2733
    %2735 = vrot.lane.b32.xlu0 %v2152, 96
    %v2736 = vpop.permute.xlu0 %2735
    %v2737 = vsel %vm389, %v2146, 0
    %v2739 = vsel %vm389, %v2149, 0
    %v2741 = vsel %vm389, %v2152, 0
    %v2743 = vsel %vm389, %v2732, 0
    %v2745 = vsel %vm389, %v2734, 0
    %v2747 = vsel %vm389, %v2736, 0
    %2749 = vmatpush.xpose.msra.mxu0 0.0
    %2750 = vmatpush.xpose.msra.mxu0 0.0
    %2751 = vmatpush.xpose.msra.mxu0 0.0
    %2752 = vmatpush.xpose.msra.mxu0 0.0
    %2753 = vmatpush.xpose.msra.mxu0 0.0
    %2754 = vmatpush.xpose.msra.mxu0 0.0
    %2755 = vmatpush.xpose.msra.mxu0 0.0
    %2756 = vmatpush.xpose.msra.mxu0 0.0
    %2757 = vmatpush.xpose.msra.mxu0 0.0
    %2758 = vmatpush.xpose.msra.mxu0 0.0
    %2759 = vmatpush.xpose.msra.mxu0 0.0
    %2760 = vmatpush.xpose.msra.mxu0 0.0
    %2761 = vmatpush.xpose.msra.mxu0 0.0
    %2762 = vmatpush.xpose.msra.mxu0 %v2747
    %2763 = vmatpush.xpose.msra.mxu0 %v2745
    %2764 = vmatpush.xpose.msra.mxu0 %v2743
    %2765 = vmatmul.f32.gmra.mxu0 %v2737
    %v2766 = vpop.f32.mrf.mxu0
    %v2767 = vadd.f32 0.0, %v2766
    %2768 = vmatmul.f32.gmra.mxu0 %v2739
    %v2769 = vpop.f32.mrf.mxu0
    %v2770 = vadd.f32 0.0, %v2769
    %2771 = vmatmul.f32.gmra.mxu0 %v2741
    %v2772 = vpop.f32.mrf.mxu0
    %v2773 = vadd.f32 0.0, %v2772
    %2774 = vdwg.mxu0
    %v2775 = vmul.f32 %v2767, 0.35355338
    %v2776 = vmul.f32 %v2770, 0.35355338
    %v2777 = vmul.f32 %v2773, 0.35355338
    %v2778 = vsel %vm158, %v2775, -1e+30
    %v2779 = vsel %vm158, %v2776, -1e+30
    %v2780 = vsel %vm158, %v2777, -1e+30
    %v2781 = vsel %vm434, %v2778, -inf
    %2782 = vmax.xlane.f32.xlu0 %v2781
    %v2783 = vpop.xlane.xlu0 %2782
    %v2784 = vsel %vm434, %v2779, -inf
    %2785 = vmax.xlane.f32.xlu0 %v2784
    %v2786 = vpop.xlane.xlu0 %2785
    %v2787 = vsel %vm434, %v2780, -inf
    %2788 = vmax.xlane.f32.xlu0 %v2787
    %v2789 = vpop.xlane.xlu0 %2788
    %v2790 = vsub.f32 %v2778, %v2783
    %v2791 = vsub.f32 %v2779, %v2786
    %v2792 = vsub.f32 %v2780, %v2789
    %v2793 = vmul.f32 %v2790, 1.442695
    %v2794 = vpow.pop %v2793
    %v2795 = vmul.f32 %v2791, 1.442695
    %v2796 = vpow.pop %v2795
    %v2797 = vmul.f32 %v2792, 1.442695
    %v2798 = vpow.pop %v2797
    %v2799 = vsel %vm434, %v2794, 0.0
    %2800 = vadd.xlane.f32.xlu0 %v2799
    %v2801 = vpop.xlane.xlu0 %2800
    %v2802 = vsel %vm434, %v2796, 0.0
    %2803 = vadd.xlane.f32.xlu0 %v2802
    %v2804 = vpop.xlane.xlu0 %2803
    %v2805 = vsel %vm434, %v2798, 0.0
    %2806 = vadd.xlane.f32.xlu0 %v2805
    %v2807 = vpop.xlane.xlu0 %2806
    %v2808 = vrcp.pop %v2801
    %v2809 = vrcp.pop %v2804
    %v2810 = vrcp.pop %v2807
    %v2811 = vmul.f32 %v2794, %v2808
    %v2812 = vmul.f32 %v2796, %v2809
    %v2813 = vmul.f32 %v2798, %v2810
    %2814 = vrot.lane.b32.xlu0 %v2146, 64
    %v2815 = vpop.permute.xlu0 %2814
    %2816 = vrot.lane.b32.xlu0 %v2149, 64
    %v2817 = vpop.permute.xlu0 %2816
    %2818 = vrot.lane.b32.xlu0 %v2152, 64
    %v2819 = vpop.permute.xlu0 %2818
    %v2824 = vsel %vm434, %v2811, 0
    %v2827 = vsel %vm434, %v2812, 0
    %v2830 = vsel %vm434, %v2813, 0
    %2832 = vmatpush.msra.mxu0 0.0
    %2833 = vmatpush.msra.mxu0 0.0
    %2834 = vmatpush.msra.mxu0 0.0
    %2835 = vmatpush.msra.mxu0 0.0
    %2836 = vmatpush.msra.mxu0 0.0
    %2837 = vmatpush.msra.mxu0 0.0
    %2838 = vmatpush.msra.mxu0 0.0
    %2839 = vmatpush.msra.mxu0 0.0
    %2840 = vmatpush.msra.mxu0 0.0
    %2841 = vmatpush.msra.mxu0 0.0
    %2842 = vmatpush.msra.mxu0 0.0
    %2843 = vmatpush.msra.mxu0 0.0
    %2844 = vmatpush.msra.mxu0 0.0
    %2845 = vmatpush.msra.mxu0 %v2819
    %2846 = vmatpush.msra.mxu0 %v2817
    %2847 = vmatpush.msra.mxu0 %v2815
    %2848 = vmatmul.f32.gmra.mxu0 %v2824
    %v2849 = vpop.f32.mrf.mxu0
    %v2850 = vadd.f32 0.0, %v2849
    %2851 = vmatmul.f32.gmra.mxu0 %v2827
    %v2852 = vpop.f32.mrf.mxu0
    %v2853 = vadd.f32 0.0, %v2852
    %2854 = vmatmul.f32.gmra.mxu0 %v2830
    %v2855 = vpop.f32.mrf.mxu0
    %v2856 = vadd.f32 0.0, %v2855
    %2857 = vdwg.mxu0
    %2858 = vrot.lane.b32.xlu0 %v2146, 120
    %v2859 = vpop.permute.xlu0 %2858
    %2860 = vrot.lane.b32.xlu0 %v2149, 120
    %v2861 = vpop.permute.xlu0 %2860
    %2862 = vrot.lane.b32.xlu0 %v2152, 120
    %v2863 = vpop.permute.xlu0 %2862
    %2864 = vrot.lane.b32.xlu0 %v2146, 88
    %v2865 = vpop.permute.xlu0 %2864
    %2866 = vrot.lane.b32.xlu0 %v2149, 88
    %v2867 = vpop.permute.xlu0 %2866
    %2868 = vrot.lane.b32.xlu0 %v2152, 88
    %v2869 = vpop.permute.xlu0 %2868
    %v2870 = vsel %vm389, %v2859, 0
    %v2872 = vsel %vm389, %v2861, 0
    %v2874 = vsel %vm389, %v2863, 0
    %v2876 = vsel %vm389, %v2865, 0
    %v2878 = vsel %vm389, %v2867, 0
    %v2880 = vsel %vm389, %v2869, 0
    %2882 = vmatpush.xpose.msra.mxu0 0.0
    %2883 = vmatpush.xpose.msra.mxu0 0.0
    %2884 = vmatpush.xpose.msra.mxu0 0.0
    %2885 = vmatpush.xpose.msra.mxu0 0.0
    %2886 = vmatpush.xpose.msra.mxu0 0.0
    %2887 = vmatpush.xpose.msra.mxu0 0.0
    %2888 = vmatpush.xpose.msra.mxu0 0.0
    %2889 = vmatpush.xpose.msra.mxu0 0.0
    %2890 = vmatpush.xpose.msra.mxu0 0.0
    %2891 = vmatpush.xpose.msra.mxu0 0.0
    %2892 = vmatpush.xpose.msra.mxu0 0.0
    %2893 = vmatpush.xpose.msra.mxu0 0.0
    %2894 = vmatpush.xpose.msra.mxu0 0.0
    %2895 = vmatpush.xpose.msra.mxu0 %v2880
    %2896 = vmatpush.xpose.msra.mxu0 %v2878
    %2897 = vmatpush.xpose.msra.mxu0 %v2876
    %2898 = vmatmul.f32.gmra.mxu0 %v2870
    %v2899 = vpop.f32.mrf.mxu0
    %v2900 = vadd.f32 0.0, %v2899
    %2901 = vmatmul.f32.gmra.mxu0 %v2872
    %v2902 = vpop.f32.mrf.mxu0
    %v2903 = vadd.f32 0.0, %v2902
    %2904 = vmatmul.f32.gmra.mxu0 %v2874
    %v2905 = vpop.f32.mrf.mxu0
    %v2906 = vadd.f32 0.0, %v2905
    %2907 = vdwg.mxu0
    %v2908 = vmul.f32 %v2900, 0.35355338
    %v2909 = vmul.f32 %v2903, 0.35355338
    %v2910 = vmul.f32 %v2906, 0.35355338
    %v2911 = vsel %vm158, %v2908, -1e+30
    %v2912 = vsel %vm158, %v2909, -1e+30
    %v2913 = vsel %vm158, %v2910, -1e+30
    %v2914 = vsel %vm434, %v2911, -inf
    %2915 = vmax.xlane.f32.xlu0 %v2914
    %v2916 = vpop.xlane.xlu0 %2915
    %v2917 = vsel %vm434, %v2912, -inf
    %2918 = vmax.xlane.f32.xlu0 %v2917
    %v2919 = vpop.xlane.xlu0 %2918
    %v2920 = vsel %vm434, %v2913, -inf
    %2921 = vmax.xlane.f32.xlu0 %v2920
    %v2922 = vpop.xlane.xlu0 %2921
    %v2923 = vsub.f32 %v2911, %v2916
    %v2924 = vsub.f32 %v2912, %v2919
    %v2925 = vsub.f32 %v2913, %v2922
    %v2926 = vmul.f32 %v2923, 1.442695
    %v2927 = vpow.pop %v2926
    %v2928 = vmul.f32 %v2924, 1.442695
    %v2929 = vpow.pop %v2928
    %v2930 = vmul.f32 %v2925, 1.442695
    %v2931 = vpow.pop %v2930
    %v2932 = vsel %vm434, %v2927, 0.0
    %2933 = vadd.xlane.f32.xlu0 %v2932
    %v2934 = vpop.xlane.xlu0 %2933
    %v2935 = vsel %vm434, %v2929, 0.0
    %2936 = vadd.xlane.f32.xlu0 %v2935
    %v2937 = vpop.xlane.xlu0 %2936
    %v2938 = vsel %vm434, %v2931, 0.0
    %2939 = vadd.xlane.f32.xlu0 %v2938
    %v2940 = vpop.xlane.xlu0 %2939
    %v2941 = vrcp.pop %v2934
    %v2942 = vrcp.pop %v2937
    %v2943 = vrcp.pop %v2940
    %v2944 = vmul.f32 %v2927, %v2941
    %v2945 = vmul.f32 %v2929, %v2942
    %v2946 = vmul.f32 %v2931, %v2943
    %2947 = vrot.lane.b32.xlu0 %v2146, 56
    %v2948 = vpop.permute.xlu0 %2947
    %2949 = vrot.lane.b32.xlu0 %v2149, 56
    %v2950 = vpop.permute.xlu0 %2949
    %2951 = vrot.lane.b32.xlu0 %v2152, 56
    %v2952 = vpop.permute.xlu0 %2951
    %v2957 = vsel %vm434, %v2944, 0
    %v2960 = vsel %vm434, %v2945, 0
    %v2963 = vsel %vm434, %v2946, 0
    %2965 = vmatpush.msra.mxu0 0.0
    %2966 = vmatpush.msra.mxu0 0.0
    %2967 = vmatpush.msra.mxu0 0.0
    %2968 = vmatpush.msra.mxu0 0.0
    %2969 = vmatpush.msra.mxu0 0.0
    %2970 = vmatpush.msra.mxu0 0.0
    %2971 = vmatpush.msra.mxu0 0.0
    %2972 = vmatpush.msra.mxu0 0.0
    %2973 = vmatpush.msra.mxu0 0.0
    %2974 = vmatpush.msra.mxu0 0.0
    %2975 = vmatpush.msra.mxu0 0.0
    %2976 = vmatpush.msra.mxu0 0.0
    %2977 = vmatpush.msra.mxu0 0.0
    %2978 = vmatpush.msra.mxu0 %v2952
    %2979 = vmatpush.msra.mxu0 %v2950
    %2980 = vmatpush.msra.mxu0 %v2948
    %2981 = vmatmul.f32.gmra.mxu0 %v2957
    %v2982 = vpop.f32.mrf.mxu0
    %v2983 = vadd.f32 0.0, %v2982
    %2984 = vmatmul.f32.gmra.mxu0 %v2960
    %v2985 = vpop.f32.mrf.mxu0
    %v2986 = vadd.f32 0.0, %v2985
    %2987 = vmatmul.f32.gmra.mxu0 %v2963
    %v2988 = vpop.f32.mrf.mxu0
    %v2989 = vadd.f32 0.0, %v2988
    %2990 = vdwg.mxu0
    %2991 = vrot.lane.b32.xlu0 %v2146, 112
    %v2992 = vpop.permute.xlu0 %2991
    %2993 = vrot.lane.b32.xlu0 %v2149, 112
    %v2994 = vpop.permute.xlu0 %2993
    %2995 = vrot.lane.b32.xlu0 %v2152, 112
    %v2996 = vpop.permute.xlu0 %2995
    %2997 = vrot.lane.b32.xlu0 %v2146, 80
    %v2998 = vpop.permute.xlu0 %2997
    %2999 = vrot.lane.b32.xlu0 %v2149, 80
    %v3000 = vpop.permute.xlu0 %2999
    %3001 = vrot.lane.b32.xlu0 %v2152, 80
    %v3002 = vpop.permute.xlu0 %3001
    %v3003 = vsel %vm389, %v2992, 0
    %v3005 = vsel %vm389, %v2994, 0
    %v3007 = vsel %vm389, %v2996, 0
    %v3009 = vsel %vm389, %v2998, 0
    %v3011 = vsel %vm389, %v3000, 0
    %v3013 = vsel %vm389, %v3002, 0
    %3015 = vmatpush.xpose.msra.mxu0 0.0
    %3016 = vmatpush.xpose.msra.mxu0 0.0
    %3017 = vmatpush.xpose.msra.mxu0 0.0
    %3018 = vmatpush.xpose.msra.mxu0 0.0
    %3019 = vmatpush.xpose.msra.mxu0 0.0
    %3020 = vmatpush.xpose.msra.mxu0 0.0
    %3021 = vmatpush.xpose.msra.mxu0 0.0
    %3022 = vmatpush.xpose.msra.mxu0 0.0
    %3023 = vmatpush.xpose.msra.mxu0 0.0
    %3024 = vmatpush.xpose.msra.mxu0 0.0
    %3025 = vmatpush.xpose.msra.mxu0 0.0
    %3026 = vmatpush.xpose.msra.mxu0 0.0
    %3027 = vmatpush.xpose.msra.mxu0 0.0
    %3028 = vmatpush.xpose.msra.mxu0 %v3013
    %3029 = vmatpush.xpose.msra.mxu0 %v3011
    %3030 = vmatpush.xpose.msra.mxu0 %v3009
    %3031 = vmatmul.f32.gmra.mxu0 %v3003
    %v3032 = vpop.f32.mrf.mxu0
    %v3033 = vadd.f32 0.0, %v3032
    %3034 = vmatmul.f32.gmra.mxu0 %v3005
    %v3035 = vpop.f32.mrf.mxu0
    %v3036 = vadd.f32 0.0, %v3035
    %3037 = vmatmul.f32.gmra.mxu0 %v3007
    %v3038 = vpop.f32.mrf.mxu0
    %v3039 = vadd.f32 0.0, %v3038
    %3040 = vdwg.mxu0
    %v3041 = vmul.f32 %v3033, 0.35355338
    %v3042 = vmul.f32 %v3036, 0.35355338
    %v3043 = vmul.f32 %v3039, 0.35355338
    %v3044 = vsel %vm158, %v3041, -1e+30
    %v3045 = vsel %vm158, %v3042, -1e+30
    %v3046 = vsel %vm158, %v3043, -1e+30
    %v3047 = vsel %vm434, %v3044, -inf
    %3048 = vmax.xlane.f32.xlu0 %v3047
    %v3049 = vpop.xlane.xlu0 %3048
    %v3050 = vsel %vm434, %v3045, -inf
    %3051 = vmax.xlane.f32.xlu0 %v3050
    %v3052 = vpop.xlane.xlu0 %3051
    %v3053 = vsel %vm434, %v3046, -inf
    %3054 = vmax.xlane.f32.xlu0 %v3053
    %v3055 = vpop.xlane.xlu0 %3054
    %v3056 = vsub.f32 %v3044, %v3049
    %v3057 = vsub.f32 %v3045, %v3052
    %v3058 = vsub.f32 %v3046, %v3055
    %v3059 = vmul.f32 %v3056, 1.442695
    %v3060 = vpow.pop %v3059
    %v3061 = vmul.f32 %v3057, 1.442695
    %v3062 = vpow.pop %v3061
    %v3063 = vmul.f32 %v3058, 1.442695
    %v3064 = vpow.pop %v3063
    %v3065 = vsel %vm434, %v3060, 0.0
    %3066 = vadd.xlane.f32.xlu0 %v3065
    %v3067 = vpop.xlane.xlu0 %3066
    %v3068 = vsel %vm434, %v3062, 0.0
    %3069 = vadd.xlane.f32.xlu0 %v3068
    %v3070 = vpop.xlane.xlu0 %3069
    %v3071 = vsel %vm434, %v3064, 0.0
    %3072 = vadd.xlane.f32.xlu0 %v3071
    %v3073 = vpop.xlane.xlu0 %3072
    %v3074 = vrcp.pop %v3067
    %v3075 = vrcp.pop %v3070
    %v3076 = vrcp.pop %v3073
    %v3077 = vmul.f32 %v3060, %v3074
    %v3078 = vmul.f32 %v3062, %v3075
    %v3079 = vmul.f32 %v3064, %v3076
    %3080 = vrot.lane.b32.xlu0 %v2146, 48
    %v3081 = vpop.permute.xlu0 %3080
    %3082 = vrot.lane.b32.xlu0 %v2149, 48
    %v3083 = vpop.permute.xlu0 %3082
    %3084 = vrot.lane.b32.xlu0 %v2152, 48
    %v3085 = vpop.permute.xlu0 %3084
    %v3090 = vsel %vm434, %v3077, 0
    %v3093 = vsel %vm434, %v3078, 0
    %v3096 = vsel %vm434, %v3079, 0
    %3098 = vmatpush.msra.mxu0 0.0
    %3099 = vmatpush.msra.mxu0 0.0
    %3100 = vmatpush.msra.mxu0 0.0
    %3101 = vmatpush.msra.mxu0 0.0
    %3102 = vmatpush.msra.mxu0 0.0
    %3103 = vmatpush.msra.mxu0 0.0
    %3104 = vmatpush.msra.mxu0 0.0
    %3105 = vmatpush.msra.mxu0 0.0
    %3106 = vmatpush.msra.mxu0 0.0
    %3107 = vmatpush.msra.mxu0 0.0
    %3108 = vmatpush.msra.mxu0 0.0
    %3109 = vmatpush.msra.mxu0 0.0
    %3110 = vmatpush.msra.mxu0 0.0
    %3111 = vmatpush.msra.mxu0 %v3085
    %3112 = vmatpush.msra.mxu0 %v3083
    %3113 = vmatpush.msra.mxu0 %v3081
    %3114 = vmatmul.f32.gmra.mxu0 %v3090
    %v3115 = vpop.f32.mrf.mxu0
    %v3116 = vadd.f32 0.0, %v3115
    %3117 = vmatmul.f32.gmra.mxu0 %v3093
    %v3118 = vpop.f32.mrf.mxu0
    %v3119 = vadd.f32 0.0, %v3118
    %3120 = vmatmul.f32.gmra.mxu0 %v3096
    %v3121 = vpop.f32.mrf.mxu0
    %v3122 = vadd.f32 0.0, %v3121
    %3123 = vdwg.mxu0
    %3124 = vrot.lane.b32.xlu0 %v2146, 104
    %v3125 = vpop.permute.xlu0 %3124
    %3126 = vrot.lane.b32.xlu0 %v2149, 104
    %v3127 = vpop.permute.xlu0 %3126
    %3128 = vrot.lane.b32.xlu0 %v2152, 104
    %v3129 = vpop.permute.xlu0 %3128
    %3130 = vrot.lane.b32.xlu0 %v2146, 72
    %v3131 = vpop.permute.xlu0 %3130
    %3132 = vrot.lane.b32.xlu0 %v2149, 72
    %v3133 = vpop.permute.xlu0 %3132
    %3134 = vrot.lane.b32.xlu0 %v2152, 72
    %v3135 = vpop.permute.xlu0 %3134
    %v3136 = vsel %vm389, %v3125, 0
    %v3138 = vsel %vm389, %v3127, 0
    %v3140 = vsel %vm389, %v3129, 0
    %v3142 = vsel %vm389, %v3131, 0
    %v3144 = vsel %vm389, %v3133, 0
    %v3146 = vsel %vm389, %v3135, 0
    %3148 = vmatpush.xpose.msra.mxu0 0.0
    %3149 = vmatpush.xpose.msra.mxu0 0.0
    %3150 = vmatpush.xpose.msra.mxu0 0.0
    %3151 = vmatpush.xpose.msra.mxu0 0.0
    %3152 = vmatpush.xpose.msra.mxu0 0.0
    %3153 = vmatpush.xpose.msra.mxu0 0.0
    %3154 = vmatpush.xpose.msra.mxu0 0.0
    %3155 = vmatpush.xpose.msra.mxu0 0.0
    %3156 = vmatpush.xpose.msra.mxu0 0.0
    %3157 = vmatpush.xpose.msra.mxu0 0.0
    %3158 = vmatpush.xpose.msra.mxu0 0.0
    %3159 = vmatpush.xpose.msra.mxu0 0.0
    %3160 = vmatpush.xpose.msra.mxu0 0.0
    %3161 = vmatpush.xpose.msra.mxu0 %v3146
    %3162 = vmatpush.xpose.msra.mxu0 %v3144
    %3163 = vmatpush.xpose.msra.mxu0 %v3142
    %3164 = vmatmul.f32.gmra.mxu0 %v3136
    %v3165 = vpop.f32.mrf.mxu0
    %v3166 = vadd.f32 0.0, %v3165
    %3167 = vmatmul.f32.gmra.mxu0 %v3138
    %v3168 = vpop.f32.mrf.mxu0
    %v3169 = vadd.f32 0.0, %v3168
    %3170 = vmatmul.f32.gmra.mxu0 %v3140
    %v3171 = vpop.f32.mrf.mxu0
    %v3172 = vadd.f32 0.0, %v3171
    %3173 = vdwg.mxu0
    %v3174 = vmul.f32 %v3166, 0.35355338
    %v3175 = vmul.f32 %v3169, 0.35355338
    %v3176 = vmul.f32 %v3172, 0.35355338
    %v3177 = vsel %vm158, %v3174, -1e+30
    %v3178 = vsel %vm158, %v3175, -1e+30
    %v3179 = vsel %vm158, %v3176, -1e+30
    %v3180 = vsel %vm434, %v3177, -inf
    %3181 = vmax.xlane.f32.xlu0 %v3180
    %v3182 = vpop.xlane.xlu0 %3181
    %v3183 = vsel %vm434, %v3178, -inf
    %3184 = vmax.xlane.f32.xlu0 %v3183
    %v3185 = vpop.xlane.xlu0 %3184
    %v3186 = vsel %vm434, %v3179, -inf
    %3187 = vmax.xlane.f32.xlu0 %v3186
    %v3188 = vpop.xlane.xlu0 %3187
    %v3189 = vsub.f32 %v3177, %v3182
    %v3190 = vsub.f32 %v3178, %v3185
    %v3191 = vsub.f32 %v3179, %v3188
    %v3192 = vmul.f32 %v3189, 1.442695
    %v3193 = vpow.pop %v3192
    %v3194 = vmul.f32 %v3190, 1.442695
    %v3195 = vpow.pop %v3194
    %v3196 = vmul.f32 %v3191, 1.442695
    %v3197 = vpow.pop %v3196
    %v3198 = vsel %vm434, %v3193, 0.0
    %3199 = vadd.xlane.f32.xlu0 %v3198
    %v3200 = vpop.xlane.xlu0 %3199
    %v3201 = vsel %vm434, %v3195, 0.0
    %3202 = vadd.xlane.f32.xlu0 %v3201
    %v3203 = vpop.xlane.xlu0 %3202
    %v3204 = vsel %vm434, %v3197, 0.0
    %3205 = vadd.xlane.f32.xlu0 %v3204
    %v3206 = vpop.xlane.xlu0 %3205
    %v3207 = vrcp.pop %v3200
    %v3208 = vrcp.pop %v3203
    %v3209 = vrcp.pop %v3206
    %v3210 = vmul.f32 %v3193, %v3207
    %v3211 = vmul.f32 %v3195, %v3208
    %v3212 = vmul.f32 %v3197, %v3209
    %3213 = vrot.lane.b32.xlu0 %v2146, 40
    %v3214 = vpop.permute.xlu0 %3213
    %3215 = vrot.lane.b32.xlu0 %v2149, 40
    %v3216 = vpop.permute.xlu0 %3215
    %3217 = vrot.lane.b32.xlu0 %v2152, 40
    %v3218 = vpop.permute.xlu0 %3217
    %v3223 = vsel %vm434, %v3210, 0
    %v3226 = vsel %vm434, %v3211, 0
    %v3229 = vsel %vm434, %v3212, 0
    %3231 = vmatpush.msra.mxu0 0.0
    %3232 = vmatpush.msra.mxu0 0.0
    %3233 = vmatpush.msra.mxu0 0.0
    %3234 = vmatpush.msra.mxu0 0.0
    %3235 = vmatpush.msra.mxu0 0.0
    %3236 = vmatpush.msra.mxu0 0.0
    %3237 = vmatpush.msra.mxu0 0.0
    %3238 = vmatpush.msra.mxu0 0.0
    %3239 = vmatpush.msra.mxu0 0.0
    %3240 = vmatpush.msra.mxu0 0.0
    %3241 = vmatpush.msra.mxu0 0.0
    %3242 = vmatpush.msra.mxu0 0.0
    %3243 = vmatpush.msra.mxu0 0.0
    %3244 = vmatpush.msra.mxu0 %v3218
    %3245 = vmatpush.msra.mxu0 %v3216
    %3246 = vmatpush.msra.mxu0 %v3214
    %3247 = vmatmul.f32.gmra.mxu0 %v3223
    %v3248 = vpop.f32.mrf.mxu0
    %v3249 = vadd.f32 0.0, %v3248
    %3250 = vmatmul.f32.gmra.mxu0 %v3226
    %v3251 = vpop.f32.mrf.mxu0
    %v3252 = vadd.f32 0.0, %v3251
    %3253 = vmatmul.f32.gmra.mxu0 %v3229
    %v3254 = vpop.f32.mrf.mxu0
    %v3255 = vadd.f32 0.0, %v3254
    %3256 = vdwg.mxu0
    %3260 = vrot.lane.b32.xlu0 %v2983, 8
    %v3261 = vpop.permute.xlu0 %3260
    %3262 = vrot.lane.b32.xlu0 %v2986, 8
    %v3263 = vpop.permute.xlu0 %3262
    %3264 = vrot.lane.b32.xlu0 %v2989, 8
    %v3265 = vpop.permute.xlu0 %3264
    %3272 = vrot.lane.b32.xlu0 %v3116, 16
    %v3273 = vpop.permute.xlu0 %3272
    %3274 = vrot.lane.b32.xlu0 %v3119, 16
    %v3275 = vpop.permute.xlu0 %3274
    %3276 = vrot.lane.b32.xlu0 %v3122, 16
    %v3277 = vpop.permute.xlu0 %3276
    %3284 = vrot.lane.b32.xlu0 %v3249, 24
    %v3285 = vpop.permute.xlu0 %3284
    %3286 = vrot.lane.b32.xlu0 %v3252, 24
    %v3287 = vpop.permute.xlu0 %3286
    %3288 = vrot.lane.b32.xlu0 %v3255, 24
    %v3289 = vpop.permute.xlu0 %3288
    %v3293 = vsel %vm389, %v2850, %v3261
    %v3294 = vsel %vm389, %v2853, %v3263
    %v3295 = vsel %vm389, %v2856, %v3265
    %v3296 = vsel %vm950, %v3293, %v3273
    %v3297 = vsel %vm950, %v3294, %v3275
    %v3298 = vsel %vm950, %v3295, %v3277
    %v3299 = vsel %vm434, %v3296, %v3285
    %v3300 = vsel %vm434, %v3297, %v3287
    %v3301 = vsel %vm434, %v3298, %v3289
    %s3302 = scalar_lea.vmem %s9, 32
    %v3303 = vld [vmem:[%s3302] sm:$0xff]
    %v3304 = vld [vmem:[%s3302 + $0x8] sm:$0xff]
    %v3305 = vld [vmem:[%s3302 + $0x10] sm:$0xff]
    %v3306 = vld [vmem:[%s3302 + $0x18] sm:$0xff]
    %s3307 = scalar_lea.vmem %s10, 1
    %v3308 = vld [vmem:[%s3307] sm:$0x1]
    %v3310 = vperm.slane %v3308, 0
    %v3313 = vsel %vm161, %v2725, 0
    %v3316 = vsel %vm161, %v2726, 0
    %v3319 = vsel %vm161, %v2727, 0
    %v3322 = vsel %vm161, %v3299, 0
    %v3325 = vsel %vm161, %v3300, 0
    %v3328 = vsel %vm161, %v3301, 0
    %3330 = vmatpush.msra.mxu0 0.0
    %3331 = vmatpush.msra.mxu0 0.0
    %3332 = vmatpush.msra.mxu0 0.0
    %3333 = vmatpush.msra.mxu0 0.0
    %3334 = vmatpush.msra.mxu0 0.0
    %3335 = vmatpush.msra.mxu0 0.0
    %3336 = vmatpush.msra.mxu0 0.0
    %3337 = vmatpush.msra.mxu0 0.0
    %3338 = vmatpush.msra.mxu0 0.0
    %3339 = vmatpush.msra.mxu0 0.0
    %3340 = vmatpush.msra.mxu0 0.0
    %3341 = vmatpush.msra.mxu0 0.0
    %3342 = vmatpush.msra.mxu0 %v3306
    %3343 = vmatpush.msra.mxu0 %v3305
    %3344 = vmatpush.msra.mxu0 %v3304
    %3345 = vmatpush.msra.mxu0 %v3303
    %3346 = vmatmul.f32.gmra.mxu0 %v3313
    %v3347 = vpop.f32.mrf.mxu0
    %v3348 = vadd.f32 %v3310, %v3347
    %3349 = vmatmul.f32.gmra.mxu0 %v3316
    %v3350 = vpop.f32.mrf.mxu0
    %v3351 = vadd.f32 %v3310, %v3350
    %3352 = vmatmul.f32.gmra.mxu0 %v3319
    %v3353 = vpop.f32.mrf.mxu0
    %v3354 = vadd.f32 %v3310, %v3353
    %3355 = vmatmul.f32.gmra.mxu0 %v3322
    %v3356 = vpop.f32.mrf.mxu0
    %v3357 = vadd.f32 %v3310, %v3356
    %3358 = vmatmul.f32.gmra.mxu0 %v3325
    %v3359 = vpop.f32.mrf.mxu0
    %v3360 = vadd.f32 %v3310, %v3359
    %3361 = vmatmul.f32.gmra.mxu0 %v3328
    %v3362 = vpop.f32.mrf.mxu0
    %v3363 = vadd.f32 %v3310, %v3362
    %3364 = vdwg.mxu0
    %v3365 = vadd.f32 %v1931, %v3348
    %v3366 = vadd.f32 %v1932, %v3351
    %v3367 = vadd.f32 %v1933, %v3354
    %v3368 = vadd.f32 %v1934, %v3357
    %v3369 = vadd.f32 %v1935, %v3360
    %v3370 = vadd.f32 %v1936, %v3363
    %s3371 = scalar_lea.vmem %s11, 1
    %v3372 = vld [vmem:[%s3371] sm:$0x1]
    %s3373 = scalar_lea.vmem %s12, 1
    %v3374 = vld [vmem:[%s3373] sm:$0x1]
    %v3375 = vsel %vm161, %v3365, 0.0
    %3376 = vadd.xlane.f32.xlu0 %v3375
    %v3377 = vpop.xlane.xlu0 %3376
    %v3378 = vsel %vm161, %v3366, 0.0
    %3379 = vadd.xlane.f32.xlu0 %v3378
    %v3380 = vpop.xlane.xlu0 %3379
    %v3381 = vsel %vm161, %v3367, 0.0
    %3382 = vadd.xlane.f32.xlu0 %v3381
    %v3383 = vpop.xlane.xlu0 %3382
    %v3384 = vsel %vm161, %v3368, 0.0
    %3385 = vadd.xlane.f32.xlu0 %v3384
    %v3386 = vpop.xlane.xlu0 %3385
    %v3387 = vsel %vm161, %v3369, 0.0
    %3388 = vadd.xlane.f32.xlu0 %v3387
    %v3389 = vpop.xlane.xlu0 %3388
    %v3390 = vsel %vm161, %v3370, 0.0
    %3391 = vadd.xlane.f32.xlu0 %v3390
    %v3392 = vpop.xlane.xlu0 %3391
    %v3393 = vmul.f32 %v3377, %v186
    %v3394 = vmul.f32 %v3380, %v186
    %v3395 = vmul.f32 %v3383, %v186
    %v3396 = vmul.f32 %v3386, %v186
    %v3397 = vmul.f32 %v3389, %v186
    %v3398 = vmul.f32 %v3392, %v186
    %v3399 = vsub.f32 %v3365, %v3393
    %v3400 = vsub.f32 %v3366, %v3394
    %v3401 = vsub.f32 %v3367, %v3395
    %v3402 = vsub.f32 %v3368, %v3396
    %v3403 = vsub.f32 %v3369, %v3397
    %v3404 = vsub.f32 %v3370, %v3398
    %v3405 = vmul.f32 %v3399, %v3399
    %v3406 = vmul.f32 %v3400, %v3400
    %v3407 = vmul.f32 %v3401, %v3401
    %v3408 = vmul.f32 %v3402, %v3402
    %v3409 = vmul.f32 %v3403, %v3403
    %v3410 = vmul.f32 %v3404, %v3404
    %v3411 = vsel %vm161, %v3405, 0.0
    %3412 = vadd.xlane.f32.xlu0 %v3411
    %v3413 = vpop.xlane.xlu0 %3412
    %v3414 = vsel %vm161, %v3406, 0.0
    %3415 = vadd.xlane.f32.xlu0 %v3414
    %v3416 = vpop.xlane.xlu0 %3415
    %v3417 = vsel %vm161, %v3407, 0.0
    %3418 = vadd.xlane.f32.xlu0 %v3417
    %v3419 = vpop.xlane.xlu0 %3418
    %v3420 = vsel %vm161, %v3408, 0.0
    %3421 = vadd.xlane.f32.xlu0 %v3420
    %v3422 = vpop.xlane.xlu0 %3421
    %v3423 = vsel %vm161, %v3409, 0.0
    %3424 = vadd.xlane.f32.xlu0 %v3423
    %v3425 = vpop.xlane.xlu0 %3424
    %v3426 = vsel %vm161, %v3410, 0.0
    %3427 = vadd.xlane.f32.xlu0 %v3426
    %v3428 = vpop.xlane.xlu0 %3427
    %v3429 = vmul.f32 %v3413, %v186
    %v3430 = vmul.f32 %v3416, %v186
    %v3431 = vmul.f32 %v3419, %v186
    %v3432 = vmul.f32 %v3422, %v186
    %v3433 = vmul.f32 %v3425, %v186
    %v3434 = vmul.f32 %v3428, %v186
    %v3435 = vadd.f32 %v3429, 1e-05
    %v3436 = vadd.f32 %v3430, 1e-05
    %v3437 = vadd.f32 %v3431, 1e-05
    %v3438 = vadd.f32 %v3432, 1e-05
    %v3439 = vadd.f32 %v3433, 1e-05
    %v3440 = vadd.f32 %v3434, 1e-05
    %v3441 = vrsqrt.pop %v3435
    %v3442 = vmul.f32 %v3441, %v3435
    %v3443 = vmul.f32 %v3442, %v3441
    %v3444 = vmul.f32 0.5, %v3443
    %v3445 = vsub.f32 1.5, %v3444
    %v3446 = vmul.f32 %v3441, %v3445
    %vm3447 = vweird.f32 %v3435
    %vm3448 = vweird.f32 %v3441
    %vm3449 = vmor %vm3447, %vm3448
    %v3450 = vsel %vm3449, %v3441, %v3446
    %v3451 = vrsqrt.pop %v3436
    %v3452 = vmul.f32 %v3451, %v3436
    %v3453 = vmul.f32 %v3452, %v3451
    %v3454 = vmul.f32 0.5, %v3453
    %v3455 = vsub.f32 1.5, %v3454
    %v3456 = vmul.f32 %v3451, %v3455
    %vm3457 = vweird.f32 %v3436
    %vm3458 = vweird.f32 %v3451
    %vm3459 = vmor %vm3457, %vm3458
    %v3460 = vsel %vm3459, %v3451, %v3456
    %v3461 = vrsqrt.pop %v3437
    %v3462 = vmul.f32 %v3461, %v3437
    %v3463 = vmul.f32 %v3462, %v3461
    %v3464 = vmul.f32 0.5, %v3463
    %v3465 = vsub.f32 1.5, %v3464
    %v3466 = vmul.f32 %v3461, %v3465
    %vm3467 = vweird.f32 %v3437
    %vm3468 = vweird.f32 %v3461
    %vm3469 = vmor %vm3467, %vm3468
    %v3470 = vsel %vm3469, %v3461, %v3466
    %v3471 = vrsqrt.pop %v3438
    %v3472 = vmul.f32 %v3471, %v3438
    %v3473 = vmul.f32 %v3472, %v3471
    %v3474 = vmul.f32 0.5, %v3473
    %v3475 = vsub.f32 1.5, %v3474
    %v3476 = vmul.f32 %v3471, %v3475
    %vm3477 = vweird.f32 %v3438
    %vm3478 = vweird.f32 %v3471
    %vm3479 = vmor %vm3477, %vm3478
    %v3480 = vsel %vm3479, %v3471, %v3476
    %v3481 = vrsqrt.pop %v3439
    %v3482 = vmul.f32 %v3481, %v3439
    %v3483 = vmul.f32 %v3482, %v3481
    %v3484 = vmul.f32 0.5, %v3483
    %v3485 = vsub.f32 1.5, %v3484
    %v3486 = vmul.f32 %v3481, %v3485
    %vm3487 = vweird.f32 %v3439
    %vm3488 = vweird.f32 %v3481
    %vm3489 = vmor %vm3487, %vm3488
    %v3490 = vsel %vm3489, %v3481, %v3486
    %v3491 = vrsqrt.pop %v3440
    %v3492 = vmul.f32 %v3491, %v3440
    %v3493 = vmul.f32 %v3492, %v3491
    %v3494 = vmul.f32 0.5, %v3493
    %v3495 = vsub.f32 1.5, %v3494
    %v3496 = vmul.f32 %v3491, %v3495
    %vm3497 = vweird.f32 %v3440
    %vm3498 = vweird.f32 %v3491
    %vm3499 = vmor %vm3497, %vm3498
    %v3500 = vsel %vm3499, %v3491, %v3496
    %v3501 = vmul.f32 %v3399, %v3450
    %v3502 = vmul.f32 %v3400, %v3460
    %v3503 = vmul.f32 %v3401, %v3470
    %v3504 = vmul.f32 %v3402, %v3480
    %v3505 = vmul.f32 %v3403, %v3490
    %v3506 = vmul.f32 %v3404, %v3500
    %v3508 = vperm.slane %v3372, 0
    %v3510 = vmul.f32 %v3501, %v3508
    %v3511 = vmul.f32 %v3502, %v3508
    %v3512 = vmul.f32 %v3503, %v3508
    %v3513 = vmul.f32 %v3504, %v3508
    %v3514 = vmul.f32 %v3505, %v3508
    %v3515 = vmul.f32 %v3506, %v3508
    %v3517 = vperm.slane %v3374, 0
    %v3519 = vadd.f32 %v3510, %v3517
    %v3520 = vadd.f32 %v3511, %v3517
    %v3521 = vadd.f32 %v3512, %v3517
    %v3522 = vadd.f32 %v3513, %v3517
    %v3523 = vadd.f32 %v3514, %v3517
    %v3524 = vadd.f32 %v3515, %v3517
    %s3525 = scalar_lea.vmem %s13, 32
    %v3526 = vld [vmem:[%s3525] sm:$0xff]
    %v3527 = vld [vmem:[%s3525 + $0x8] sm:$0xff]
    %v3528 = vld [vmem:[%s3525 + $0x10] sm:$0xff]
    %v3529 = vld [vmem:[%s3525 + $0x18] sm:$0xff]
    %s3530 = scalar_lea.vmem %s14, 1
    %v3531 = vld [vmem:[%s3530] sm:$0x1]
    %v3533 = vperm.slane %v3531, 0
    %v3536 = vsel %vm161, %v3519, 0
    %v3539 = vsel %vm161, %v3520, 0
    %v3542 = vsel %vm161, %v3521, 0
    %v3545 = vsel %vm161, %v3522, 0
    %v3548 = vsel %vm161, %v3523, 0
    %v3551 = vsel %vm161, %v3524, 0
    %3553 = vmatpush.msra.mxu0 0.0
    %3554 = vmatpush.msra.mxu0 0.0
    %3555 = vmatpush.msra.mxu0 0.0
    %3556 = vmatpush.msra.mxu0 0.0
    %3557 = vmatpush.msra.mxu0 0.0
    %3558 = vmatpush.msra.mxu0 0.0
    %3559 = vmatpush.msra.mxu0 0.0
    %3560 = vmatpush.msra.mxu0 0.0
    %3561 = vmatpush.msra.mxu0 0.0
    %3562 = vmatpush.msra.mxu0 0.0
    %3563 = vmatpush.msra.mxu0 0.0
    %3564 = vmatpush.msra.mxu0 0.0
    %3565 = vmatpush.msra.mxu0 %v3529
    %3566 = vmatpush.msra.mxu0 %v3528
    %3567 = vmatpush.msra.mxu0 %v3527
    %3568 = vmatpush.msra.mxu0 %v3526
    %3569 = vmatmul.f32.gmra.mxu0 %v3536
    %v3570 = vpop.f32.mrf.mxu0
    %v3571 = vadd.f32 %v3533, %v3570
    %3572 = vmatmul.f32.gmra.mxu0 %v3539
    %v3573 = vpop.f32.mrf.mxu0
    %v3574 = vadd.f32 %v3533, %v3573
    %3575 = vmatmul.f32.gmra.mxu0 %v3542
    %v3576 = vpop.f32.mrf.mxu0
    %v3577 = vadd.f32 %v3533, %v3576
    %3578 = vmatmul.f32.gmra.mxu0 %v3545
    %v3579 = vpop.f32.mrf.mxu0
    %v3580 = vadd.f32 %v3533, %v3579
    %3581 = vmatmul.f32.gmra.mxu0 %v3548
    %v3582 = vpop.f32.mrf.mxu0
    %v3583 = vadd.f32 %v3533, %v3582
    %3584 = vmatmul.f32.gmra.mxu0 %v3551
    %v3585 = vpop.f32.mrf.mxu0
    %v3586 = vadd.f32 %v3533, %v3585
    %3587 = vdwg.mxu0
    %v3588 = vmul.f32 %v3571, 0.5
    %v3589 = vmul.f32 %v3574, 0.5
    %v3590 = vmul.f32 %v3577, 0.5
    %v3591 = vmul.f32 %v3580, 0.5
    %v3592 = vmul.f32 %v3583, 0.5
    %v3593 = vmul.f32 %v3586, 0.5
    %v3594 = vmul.f32 %v3571, 0.044715
    %v3595 = vmul.f32 %v3574, 0.044715
    %v3596 = vmul.f32 %v3577, 0.044715
    %v3597 = vmul.f32 %v3580, 0.044715
    %v3598 = vmul.f32 %v3583, 0.044715
    %v3599 = vmul.f32 %v3586, 0.044715
    %v3600 = vmul.f32 %v3594, %v3571
    %v3601 = vmul.f32 %v3595, %v3574
    %v3602 = vmul.f32 %v3596, %v3577
    %v3603 = vmul.f32 %v3597, %v3580
    %v3604 = vmul.f32 %v3598, %v3583
    %v3605 = vmul.f32 %v3599, %v3586
    %v3606 = vmul.f32 %v3600, %v3571
    %v3607 = vmul.f32 %v3601, %v3574
    %v3608 = vmul.f32 %v3602, %v3577
    %v3609 = vmul.f32 %v3603, %v3580
    %v3610 = vmul.f32 %v3604, %v3583
    %v3611 = vmul.f32 %v3605, %v3586
    %v3612 = vadd.f32 %v3571, %v3606
    %v3613 = vadd.f32 %v3574, %v3607
    %v3614 = vadd.f32 %v3577, %v3608
    %v3615 = vadd.f32 %v3580, %v3609
    %v3616 = vadd.f32 %v3583, %v3610
    %v3617 = vadd.f32 %v3586, %v3611
    %v3618 = vmul.f32 %v3612, 0.7978846
    %v3619 = vmul.f32 %v3613, 0.7978846
    %v3620 = vmul.f32 %v3614, 0.7978846
    %v3621 = vmul.f32 %v3615, 0.7978846
    %v3622 = vmul.f32 %v3616, 0.7978846
    %v3623 = vmul.f32 %v3617, 0.7978846
    %v3624 = vtanh.pop %v3618
    %v3625 = vtanh.pop %v3619
    %v3626 = vtanh.pop %v3620
    %v3627 = vtanh.pop %v3621
    %v3628 = vtanh.pop %v3622
    %v3629 = vtanh.pop %v3623
    %v3630 = vadd.f32 %v3624, 1.0
    %v3631 = vadd.f32 %v3625, 1.0
    %v3632 = vadd.f32 %v3626, 1.0
    %v3633 = vadd.f32 %v3627, 1.0
    %v3634 = vadd.f32 %v3628, 1.0
    %v3635 = vadd.f32 %v3629, 1.0
    %v3636 = vmul.f32 %v3588, %v3630
    %v3637 = vmul.f32 %v3589, %v3631
    %v3638 = vmul.f32 %v3590, %v3632
    %v3639 = vmul.f32 %v3591, %v3633
    %v3640 = vmul.f32 %v3592, %v3634
    %v3641 = vmul.f32 %v3593, %v3635
    %s3642 = scalar_lea.vmem %s15, 64
    %v3643 = vld [vmem:[%s3642] sm:$0xff]
    %v3644 = vld [vmem:[%s3642 + $0x8] sm:$0xff]
    %v3645 = vld [vmem:[%s3642 + $0x10] sm:$0xff]
    %v3646 = vld [vmem:[%s3642 + $0x18] sm:$0xff]
    %v3647 = vld [vmem:[%s3642 + $0x20] sm:$0xff]
    %v3648 = vld [vmem:[%s3642 + $0x28] sm:$0xff]
    %v3649 = vld [vmem:[%s3642 + $0x30] sm:$0xff]
    %v3650 = vld [vmem:[%s3642 + $0x38] sm:$0xff]
    %s3651 = scalar_lea.vmem %s16, 1
    %v3652 = vld [vmem:[%s3651] sm:$0x1]
    %v3654 = vperm.slane %v3652, 0
    %v3657 = vsel %vm1877, %v3636, 0
    %v3660 = vsel %vm1877, %v3637, 0
    %v3663 = vsel %vm1877, %v3638, 0
    %v3666 = vsel %vm1877, %v3639, 0
    %v3669 = vsel %vm1877, %v3640, 0
    %v3672 = vsel %vm1877, %v3641, 0
    %3674 = vmatpush.msra.mxu0 0.0
    %3675 = vmatpush.msra.mxu0 0.0
    %3676 = vmatpush.msra.mxu0 0.0
    %3677 = vmatpush.msra.mxu0 0.0
    %3678 = vmatpush.msra.mxu0 0.0
    %3679 = vmatpush.msra.mxu0 0.0
    %3680 = vmatpush.msra.mxu0 0.0
    %3681 = vmatpush.msra.mxu0 0.0
    %3682 = vmatpush.msra.mxu0 %v3650
    %3683 = vmatpush.msra.mxu0 %v3649
    %3684 = vmatpush.msra.mxu0 %v3648
    %3685 = vmatpush.msra.mxu0 %v3647
    %3686 = vmatpush.msra.mxu0 %v3646
    %3687 = vmatpush.msra.mxu0 %v3645
    %3688 = vmatpush.msra.mxu0 %v3644
    %3689 = vmatpush.msra.mxu0 %v3643
    %3690 = vmatmul.f32.gmra.mxu0 %v3657
    %v3691 = vpop.f32.mrf.mxu0
    %v3692 = vadd.f32 %v3654, %v3691
    %3693 = vmatmul.f32.gmra.mxu0 %v3660
    %v3694 = vpop.f32.mrf.mxu0
    %3695 = vmatmul.f32.gmra.mxu0 %v3663
    %v3696 = vpop.f32.mrf.mxu0
    %3697 = vmatmul.f32.gmra.mxu0 %v3666
    %v3698 = vpop.f32.mrf.mxu0
    %v3699 = vadd.f32 %v3654, %v3698
    %3700 = vmatmul.f32.gmra.mxu0 %v3669
    %v3701 = vpop.f32.mrf.mxu0
    %3702 = vmatmul.f32.gmra.mxu0 %v3672
    %v3703 = vpop.f32.mrf.mxu0
    %3704 = vdwg.mxu0
    %v3705 = vadd.f32 %v3365, %v3692
    %v3706 = vadd.f32 %v3368, %v3699
    %v3707 = vld [vmem:[%s17] sm:$0x1]
    %v3708 = vld [vmem:[%s18] sm:$0x1]
    %v3709 = vsel %vm161, %v3705, 0.0
    %3710 = vadd.xlane.f32.xlu0 %v3709
    %v3711 = vpop.xlane.xlu0 %3710
    %v3712 = vsel %vm161, %v3706, 0.0
    %3713 = vadd.xlane.f32.xlu0 %v3712
    %v3714 = vpop.xlane.xlu0 %3713
    %v3715 = vmul.f32 %v3711, %v186
    %v3716 = vmul.f32 %v3714, %v186
    %v3717 = vsub.f32 %v3705, %v3715
    %v3718 = vsub.f32 %v3706, %v3716
    %v3719 = vmul.f32 %v3717, %v3717
    %v3720 = vmul.f32 %v3718, %v3718
    %v3721 = vsel %vm161, %v3719, 0.0
    %3722 = vadd.xlane.f32.xlu0 %v3721
    %v3723 = vpop.xlane.xlu0 %3722
    %v3724 = vsel %vm161, %v3720, 0.0
    %3725 = vadd.xlane.f32.xlu0 %v3724
    %v3726 = vpop.xlane.xlu0 %3725
    %v3727 = vmul.f32 %v3723, %v186
    %v3728 = vmul.f32 %v3726, %v186
    %v3729 = vadd.f32 %v3727, 1e-05
    %v3730 = vadd.f32 %v3728, 1e-05
    %v3731 = vrsqrt.pop %v3729
    %v3732 = vmul.f32 %v3731, %v3729
    %v3733 = vmul.f32 %v3732, %v3731
    %v3734 = vmul.f32 0.5, %v3733
    %v3735 = vsub.f32 1.5, %v3734
    %v3736 = vmul.f32 %v3731, %v3735
    %vm3737 = vweird.f32 %v3729
    %vm3738 = vweird.f32 %v3731
    %vm3739 = vmor %vm3737, %vm3738
    %v3740 = vsel %vm3739, %v3731, %v3736
    %v3741 = vrsqrt.pop %v3730
    %v3742 = vmul.f32 %v3741, %v3730
    %v3743 = vmul.f32 %v3742, %v3741
    %v3744 = vmul.f32 0.5, %v3743
    %v3745 = vsub.f32 1.5, %v3744
    %v3746 = vmul.f32 %v3741, %v3745
    %vm3747 = vweird.f32 %v3730
    %vm3748 = vweird.f32 %v3741
    %vm3749 = vmor %vm3747, %vm3748
    %v3750 = vsel %vm3749, %v3741, %v3746
    %v3751 = vmul.f32 %v3717, %v3740
    %v3752 = vmul.f32 %v3718, %v3750
    %v3754 = vperm.slane %v3707, 0
    %v3756 = vmul.f32 %v3751, %v3754
    %v3757 = vmul.f32 %v3752, %v3754
    %v3759 = vperm.slane %v3708, 0
    %v3761 = vadd.f32 %v3756, %v3759
    %v3762 = vadd.f32 %v3757, %v3759
    %v3763 = vadd.f32 %v3761, 0.0
    %v3764 = vadd.f32 %v3762, 0.0
    %v3766 = vrot.slane %v3764, 7
    %v3768 = vsel %vm131, %v3763, %v3766
    %v3769 = vld [vmem:[%s19] sm:$0xff]
    %v3770 = vld [vmem:[%s19 + $0x8] sm:$0xff]
    %v3771 = vld [vmem:[%s19 + $0x10] sm:$0xff]
    %v3772 = vld [vmem:[%s19 + $0x18] sm:$0xff]
    %v3773 = vld [vmem:[%s20] sm:$0x1]
    %v3775 = vperm.slane %v3773, 0
    %v3778 = vsel %vm161, %v3768, 0
    %3780 = vmatpush.msra.mxu0 0.0
    %3781 = vmatpush.msra.mxu0 0.0
    %3782 = vmatpush.msra.mxu0 0.0
    %3783 = vmatpush.msra.mxu0 0.0
    %3784 = vmatpush.msra.mxu0 0.0
    %3785 = vmatpush.msra.mxu0 0.0
    %3786 = vmatpush.msra.mxu0 0.0
    %3787 = vmatpush.msra.mxu0 0.0
    %3788 = vmatpush.msra.mxu0 0.0
    %3789 = vmatpush.msra.mxu0 0.0
    %3790 = vmatpush.msra.mxu0 0.0
    %3791 = vmatpush.msra.mxu0 0.0
    %3792 = vmatpush.msra.mxu0 %v3772
    %3793 = vmatpush.msra.mxu0 %v3771
    %3794 = vmatpush.msra.mxu0 %v3770
    %3795 = vmatpush.msra.mxu0 %v3769
    %3796 = vmatmul.f32.gmra.mxu0 %v3778
    %v3797 = vpop.f32.mrf.mxu0
    %v3798 = vadd.f32 %v3775, %v3797
    %3799 = vdwg.mxu0
    %vm3800 = vcmask 123904
    %3801 = vst.msk [vmem:[#allocation2] sm:$0x3] %vm3800, %v3798
    // Predicated region
    $region86: #{vit_forward.1} parent=1 // pred_check
      _
    $region87: #{vit_forward.1} parent=1 // pred_check_branch
      %3803 = sbr.rel (0) target = $region89
    $region88: #{vit_forward.1} parent=1 // pred_region
      %3805 = vsyncadd [#allocation3], 0
      %s3807 = sshll.u32 [#allocation2], 4
      %s3808 = int_to_ptr.vmem [resolvable:$true] %s3807
      %s3809 = sshll.u32 %s21, 4
      %s3810 = int_to_ptr.hbm [resolvable:$true] %s3809
      %3812 = dma.vmem_to_hbm [thread:$0]  %s3808, 32, %s3810, [#allocation3]
    $region89: #{vit_forward.1} parent=1 // pred_fallthru
      _
    // Predicated region
    $region90: #{vit_forward.1} parent=1 // pred_check
      _
    $region91: #{vit_forward.1} parent=1 // pred_check_branch
      %3814 = sbr.rel (0) target = $region93
    $region92: #{vit_forward.1} parent=1 // pred_region
      %3816 = dma.done [#allocation3], 32
    $region93: #{vit_forward.1} parent=1 // pred_fallthru
      _
    %3817 = vsyncpa [#allocation3], 1

</llo_original>
